<compile_context>
chip_gen: v6e
topology: v6e:2x2x1
jax: 0.10.0
libtpu: 0.0.40
codegen_flags: <defaults>
</compile_context>

<pallas_src>
import functools

import numpy as np
import jax
import jax.numpy as jnp
from jax.experimental import pallas as pl
from jax.experimental.pallas import tpu as pltpu


# ----------------------------------------------------------------------------
# Fused Pallas kernel: whole MultiHeadAttLayer forward (sliding attention)
# ----------------------------------------------------------------------------

def _mha_sliding_kernel(x1_ref, xv_ref, pm_ref, wqk_ref, bqk_ref, wv_ref,
                        bv_ref, wo_ref, bo_ref, wf_ref, bf_ref, o_ref,
                        att_scr, *, num_head, cq, ck, cv, v_dim, bl, half,
                        fw, nb, L, scale, cdt):
    wl = bl + 2 * half           # sliding-window width
    Lp = nb * bl                 # block-padded length
    Lpad = Lp + 2 * half         # block-padded + halo length (input length)

    x1 = x1_ref[...]
    xv = xv_ref[...]
    pm = pm_ref[...]             # (1, Lpad) padding mask (0 on halo/tail)

    # ---- all-head q/k projection (one matmul) and all-head v projection ----
    qk = jnp.dot(wqk_ref[...].astype(cdt), x1.astype(cdt),
                 preferred_element_type=jnp.float32) + bqk_ref[...]
    vh = jnp.dot(wv_ref[...].astype(cdt), xv.astype(cdt),
                 preferred_element_type=jnp.float32) + bv_ref[...]

    # The reference zero-pads v (post-conv) on the halo and the [L, Lp) tail;
    # zero those columns so the tiny soft-mask attention leakage matches
    # exactly.  (k does not need this: masked energies are zeroed anyway.)
    col = jax.lax.broadcasted_iota(jnp.int32, (1, Lpad), 1)
    kv_valid = jnp.logical_and(col >= half, col < half + L).astype(jnp.float32)
    vh = vh * kv_valid

    # Static window * bounded-future (tril) mask, built in-kernel (no DMA).
    # Reference window mask: columns 0..2*bl-2 are 1 for every row.
    r = jax.lax.broadcasted_iota(jnp.int32, (bl, wl), 0)
    c = jax.lax.broadcasted_iota(jnp.int32, (bl, wl), 1)
    wmask = jnp.logical_and(c <= 2 * bl - 2,
                            c - r <= half + fw).astype(jnp.float32)

    pm_q = pm[:, half:half + Lp]              # per-query-frame mask, (1, Lp)
    wf = wf_ref[...]                          # (v_dim, num_head * v_dim)

    stride = cq + ck
    acc = jnp.zeros((v_dim, Lp), jnp.float32)
    for h in range(num_head):
        q = qk[h * stride:h * stride + cq, :]
        k = qk[h * stride + cq:(h + 1) * stride, :]
        v = vh[h * cv:(h + 1) * cv, :]

        # sliding-window scalar-dot attention, all nb blocks in this launch
        for i in range(nb):
            qi = q[:, half + i * bl: half + (i + 1) * bl]      # (cq, bl)
            ki = k[:, i * bl: i * bl + wl]                     # (ck, wl)
            vi = v[:, i * bl: i * bl + wl]                     # (cv, wl)
            mi = wmask * pm[:, i * bl: i * bl + wl]            # (bl, wl)

            e = jax.lax.dot_general(qi.astype(cdt), ki.astype(cdt),
                                    (((0,), (0,)), ((), ())),
                                    preferred_element_type=jnp.float32)
            a = e * mi * scale + jnp.log(mi + 1e-6)
            a = a - jnp.max(a, axis=-1, keepdims=True)
            a = jnp.exp(a)
            a = a * pl.reciprocal(jnp.sum(a, axis=-1, keepdims=True))
            oi = jax.lax.dot_general(vi.astype(cdt), a.astype(cdt),
                                     (((1,), (1,)), ((), ())),
                                     preferred_element_type=jnp.float32)
            att_scr[:, i * bl:(i + 1) * bl] = oi               # (cv, bl)

        att = att_scr[...]                                     # (cv, Lp)
        # per-head AttLayer epilogue: conv_out(relu(.)) * padding mask
        ho = jnp.dot(wo_ref[h].astype(cdt),
                     jnp.maximum(att, 0.0).astype(cdt),
                     preferred_element_type=jnp.float32) + bo_ref[h]
        ho = ho * pm_q
        # MultiHeadAttLayer conv_out over the concatenated heads, accumulated
        # per head (dropout p=0.5 is an eval-mode identity).
        # TODO(synk): training-mode dropout (RNG) is not implemented.
        acc = acc + jnp.dot(wf[:, h * v_dim:(h + 1) * v_dim].astype(cdt),
                            ho.astype(cdt),
                            preferred_element_type=jnp.float32)

    o_ref[...] = (acc + bf_ref[...]).astype(o_ref.dtype)       # lane-dense


# ----------------------------------------------------------------------------
# Wrapper
# ----------------------------------------------------------------------------

def fuse_params(params):
    """Concatenate per-head projection weights once (outside jit)."""
    heads = params['heads']
    return {
        'wqk': jnp.concatenate(
            [jnp.concatenate([h['wq'], h['wk']], 0) for h in heads], 0),
        'bqk': jnp.concatenate(
            [jnp.concatenate([h['bq'], h['bk']], 0) for h in heads], 0)[:, None],
        'wv': jnp.concatenate([h['wv'] for h in heads], 0),
        'bv': jnp.concatenate([h['bv'] for h in heads], 0)[:, None],
        'wo': jnp.stack([h['wo'] for h in heads], 0),
        'bo': jnp.stack([h['bo'] for h in heads], 0)[..., None],
        'wf': params['wf'],
        'bf': params['bf'][:, None],
    }


def multi_head_att_layer_forward(fused, x1, x2, mask, *, num_head, cq, ck, cv,
                                 bl, future_window, stage='encoder',
                                 compute_dtype=jnp.float32):
    """x1: (1, q_dim, L), x2: (1, v_dim, L) or None, mask: (1, Cm, L)."""
    assert x1.shape[0] == 1, "sliding-window attention requires batch == 1"
    L = x1.shape[2]
    v_dim = fused['wf'].shape[0]
    xv = x2 if (stage == 'decoder' and x2 is not None) else x1

    half = bl // 2
    nb = -(-L // bl)
    Lp = nb * bl
    Lpad = Lp + 2 * half
    pad_r = Lpad - half - L

    # Single zero-pad of the raw inputs; no per-block slab materialization.
    x1p = jnp.pad(x1[0], ((0, 0), (half, pad_r)))
    xvp = jnp.pad(xv[0], ((0, 0), (half, pad_r)))
    pmp = jnp.pad(mask[0, 0:1, :].astype(jnp.float32), ((0, 0), (half, pad_r)))

    kernel = functools.partial(
        _mha_sliding_kernel, num_head=num_head, cq=cq, ck=ck, cv=cv,
        v_dim=v_dim, bl=bl, half=half, fw=future_window, nb=nb, L=L,
        scale=1.0 / float(np.sqrt(cq)), cdt=compute_dtype)

    vmem = lambda: pl.BlockSpec(memory_space=pltpu.MemorySpace.VMEM)
    out = pl.pallas_call(
        kernel,
        out_shape=jax.ShapeDtypeStruct((v_dim, Lp), jnp.float32),
        in_specs=[vmem() for _ in range(11)],
        out_specs=vmem(),
        scratch_shapes=[pltpu.VMEM((cv, Lp), jnp.float32)],
    )(x1p, xvp, pmp, fused['wqk'], fused['bqk'], fused['wv'], fused['bv'],
      fused['wo'], fused['bo'], fused['wf'], fused['bf'])

    return out[None, :, :L]


# ----------------------------------------------------------------------------
# Pure-JAX reference (mirrors the PyTorch module, for correctness check)
# ----------------------------------------------------------------------------

def _pw_conv_ref(w, b, x):
    return jnp.einsum('oc,bcl->bol', w, x,
                      precision=jax.lax.Precision.HIGHEST) + b[None, :, None]


def _att_layer_ref(hp, x1, x2, mask, bl, fw, stage):
    q = _pw_conv_ref(hp['wq'], hp['bq'], x1)
    k = _pw_conv_ref(hp['wk'], hp['bk'], x1)
    v = _pw_conv_ref(hp['wv'], hp['bv'],
                     x2 if (stage == 'decoder' and x2 is not None) else x1)
    m, c1, L = q.shape
    c3 = v.shape[1]
    nb = L // bl
    if L % bl != 0:
        pad = bl - L % bl
        q = jnp.pad(q, ((0, 0), (0, 0), (0, pad)))
        k = jnp.pad(k, ((0, 0), (0, 0), (0, pad)))
        v = jnp.pad(v, ((0, 0), (0, 0), (0, pad)))
        nb += 1
    pmask = jnp.concatenate(
        [jnp.ones((m, 1, L)) * mask[:, 0:1, :],
         jnp.zeros((m, 1, bl * nb - L))], axis=-1)
    q = q.reshape(m, c1, nb, bl).transpose(0, 2, 1, 3).reshape(m * nb, c1, bl)
    half = bl // 2
    wl = bl + 2 * half
    k = jnp.pad(k, ((0, 0), (0, 0), (half, half)))
    v = jnp.pad(v, ((0, 0), (0, 0), (half, half)))
    pmask = jnp.pad(pmask, ((0, 0), (0, 0), (half, half)))
    k = jnp.concatenate([k[:, :, i * bl:i * bl + wl] for i in range(nb)], 0)
    v = jnp.concatenate([v[:, :, i * bl:i * bl + wl] for i in range(nb)], 0)
    pmask = jnp.concatenate(
        [pmask[:, :, i * bl:i * bl + wl] for i in range(nb)], 0)
    wm = np.zeros((1, bl, wl), np.float32)
    for i in range(bl):
        wm[:, :, i:i + bl] = 1.0
    final_mask = jnp.asarray(wm) * pmask
    energy = jnp.einsum('ncq,nck->nqk', q, k,
                        precision=jax.lax.Precision.HIGHEST)
    rows = np.arange(bl)[:, None]
    cols = np.arange(wl)[None, :]
    tril = jnp.asarray((cols - rows <= bl // 2 + fw).astype(np.float32))
    bfm = final_mask * tril[None]
    att = (energy * bfm) / np.sqrt(c1) + jnp.log(bfm + 1e-6)
    att = jax.nn.softmax(att, axis=-1)
    out = jnp.einsum('ncw,nqw->ncq', v, att,
                     precision=jax.lax.Precision.HIGHEST)
    out = out.reshape(m, nb, c3, bl).transpose(0, 2, 1, 3).reshape(m, c3, nb * bl)
    out = _pw_conv_ref(hp['wo'], hp['bo'], jax.nn.relu(out))
    out = out[:, :, :L]
    return out * mask[:, 0:1, :]


def multi_head_att_layer_ref(params, x1, x2, mask, bl, fw, stage):
    outs = [_att_layer_ref(hp, x1, x2, mask, bl, fw, stage)
            for hp in params['heads']]
    cat = jnp.concatenate(outs, axis=1)
    return _pw_conv_ref(params['wf'], params['bf'], cat)   # dropout = identity


# ----------------------------------------------------------------------------
# Deterministic parameter init (shapes per the nn.Module __init__)
# ----------------------------------------------------------------------------

def init_params(key, num_head, q_dim, k_dim, v_dim, r1, r2, r3):
    cq, ck, cv = q_dim // r1, k_dim // r2, v_dim // r3
    keys = iter(jax.random.split(key, 8 * num_head + 2))

    def conv(cout, cin):
        w = 0.1 * jax.random.normal(next(keys), (cout, cin), jnp.float32)
        b = 0.1 * jax.random.normal(next(keys), (cout,), jnp.float32)
        return w, b

    heads = []
    for _ in range(num_head):
        h = {}
        h['wq'], h['bq'] = conv(cq, q_dim)       # query_conv
        h['wk'], h['bk'] = conv(ck, k_dim)       # key_conv
        h['wv'], h['bv'] = conv(cv, v_dim)       # value_conv
        h['wo'], h['bo'] = conv(v_dim, cv)       # AttLayer.conv_out
        heads.append(h)
    wf, bf = conv(v_dim, v_dim * num_head)       # MultiHeadAttLayer.conv_out
    return {'heads': heads, 'wf': wf, 'bf': bf}


# ----------------------------------------------------------------------------
# Main
# ----------------------------------------------------------------------------

if __name__ == "__main__":
    q_dim = k_dim = v_dim = 32
    r1 = r2 = r3 = 2
    cq, ck, cv = q_dim // r1, k_dim // r2, v_dim // r3
    bl = 4
    num_head = 2
    future_window = 2
    stage = 'encoder'            # 'sliding_att', encoder stage (value <- x1)
    B, L = 1, 14                 # L not a multiple of bl: exercises padding

    key = jax.random.PRNGKey(0)
    kp, kx = jax.random.split(key)
    params = init_params(kp, num_head, q_dim, k_dim, v_dim, r1, r2, r3)
    x1 = jax.random.normal(kx, (B, q_dim, L), jnp.float32)
    mask = jnp.ones((B, 1, L), jnp.float32).at[:, :, L - 3:].set(0.0)

    fused = fuse_params(params)
    fwd = jax.jit(functools.partial(
        multi_head_att_layer_forward, num_head=num_head, cq=cq, ck=ck, cv=cv,
        bl=bl, future_window=future_window, stage=stage,
        compute_dtype=jnp.float32))   # flip to jnp.bfloat16 on v6e/v7x at large L

    out = fwd(fused, x1, None, mask)
    jax.block_until_ready(out)

    ref = multi_head_att_layer_ref(params, x1, None, mask, bl, future_window,
                                   stage)

    assert out.shape == (B, v_dim, L), out.shape
    assert bool(jnp.all(jnp.isfinite(out)))
    err = float(jnp.max(jnp.abs(out - ref)))
    assert err < 2e-2, f"max abs err vs reference: {err}"
    print("KERNEL_OK")
</pallas_src>

<mosaic_0001>
module attributes {stable_mosaic.version = 11 : i64} {
  func.func @_mha_sliding_kernel(%arg0: memref<32x20xf32, #tpu.memory_space<vmem>>, %arg1: memref<32x20xf32, #tpu.memory_space<vmem>>, %arg2: memref<1x20xf32, #tpu.memory_space<vmem>>, %arg3: memref<64x32xf32, #tpu.memory_space<vmem>>, %arg4: memref<64x1xf32, #tpu.memory_space<vmem>>, %arg5: memref<32x32xf32, #tpu.memory_space<vmem>>, %arg6: memref<32x1xf32, #tpu.memory_space<vmem>>, %arg7: memref<2x32x16xf32, #tpu.memory_space<vmem>>, %arg8: memref<2x32x1xf32, #tpu.memory_space<vmem>>, %arg9: memref<32x64xf32, #tpu.memory_space<vmem>>, %arg10: memref<32x1xf32, #tpu.memory_space<vmem>>, %arg11: memref<32x16xf32, #tpu.memory_space<vmem>>, %arg12: memref<16x16xf32, #tpu.memory_space<vmem>>) attributes {dimension_semantics = [], scalar_prefetch = 0 : i64, scratch_operands = 1 : i64, tpu.core_type = #tpu.core_type<tc>} {
    %c0 = arith.constant 0 : index
    %c0_0 = arith.constant 0 : index
    %0 = vector.load %arg0[%c0, %c0_0] : memref<32x20xf32, #tpu.memory_space<vmem>>, vector<32x20xf32>
    %c0_1 = arith.constant 0 : index
    %c0_2 = arith.constant 0 : index
    %1 = vector.load %arg1[%c0_1, %c0_2] : memref<32x20xf32, #tpu.memory_space<vmem>>, vector<32x20xf32>
    %c0_3 = arith.constant 0 : index
    %c0_4 = arith.constant 0 : index
    %2 = vector.load %arg2[%c0_3, %c0_4] : memref<1x20xf32, #tpu.memory_space<vmem>>, vector<1x20xf32>
    %c0_5 = arith.constant 0 : index
    %c0_6 = arith.constant 0 : index
    %3 = vector.load %arg3[%c0_5, %c0_6] : memref<64x32xf32, #tpu.memory_space<vmem>>, vector<64x32xf32>
    %cst = arith.constant dense<0.000000e+00> : vector<64x20xf32>
    %4 = tpu.matmul %3, %0, %cst {dimension_numbers = #tpu.dot_dimension_numbers<[1], [0], [0], [1], [0, 0, 1, 1], [], []>} : vector<64x32xf32>, vector<32x20xf32>, vector<64x20xf32> -> vector<64x20xf32>
    %c0_7 = arith.constant 0 : index
    %c0_8 = arith.constant 0 : index
    %5 = vector.load %arg4[%c0_7, %c0_8] : memref<64x1xf32, #tpu.memory_space<vmem>>, vector<64x1xf32>
    %6 = vector.broadcast %5 : vector<64x1xf32> to vector<64x20xf32>
    %7 = arith.addf %4, %6 : vector<64x20xf32>
    %c0_9 = arith.constant 0 : index
    %c0_10 = arith.constant 0 : index
    %8 = vector.load %arg5[%c0_9, %c0_10] : memref<32x32xf32, #tpu.memory_space<vmem>>, vector<32x32xf32>
    %cst_11 = arith.constant dense<0.000000e+00> : vector<32x20xf32>
    %9 = tpu.matmul %8, %1, %cst_11 {dimension_numbers = #tpu.dot_dimension_numbers<[1], [0], [0], [1], [0, 0, 1, 1], [], []>} : vector<32x32xf32>, vector<32x20xf32>, vector<32x20xf32> -> vector<32x20xf32>
    %c0_12 = arith.constant 0 : index
    %c0_13 = arith.constant 0 : index
    %10 = vector.load %arg6[%c0_12, %c0_13] : memref<32x1xf32, #tpu.memory_space<vmem>>, vector<32x1xf32>
    %11 = vector.broadcast %10 : vector<32x1xf32> to vector<32x20xf32>
    %12 = arith.addf %9, %11 : vector<32x20xf32>
    %13 = tpu.iota {dimensions = array<i32: 1>} : vector<1x20xi32>
    %c2_i32 = arith.constant 2 : i32
    %14 = vector.broadcast %c2_i32 : i32 to vector<1x20xi32>
    %15 = arith.cmpi sge, %13, %14 : vector<1x20xi32>
    %c16_i32 = arith.constant 16 : i32
    %16 = vector.broadcast %c16_i32 : i32 to vector<1x20xi32>
    %17 = arith.cmpi slt, %13, %16 : vector<1x20xi32>
    %18 = arith.andi %15, %17 : vector<1x20xi1>
    %19 = arith.extui %18 : vector<1x20xi1> to vector<1x20xi32>
    %20 = arith.sitofp %19 : vector<1x20xi32> to vector<1x20xf32>
    %21 = vector.broadcast %20 : vector<1x20xf32> to vector<32x20xf32>
    %22 = arith.mulf %12, %21 : vector<32x20xf32>
    %23 = tpu.iota {dimensions = array<i32: 0>} : vector<4x8xi32>
    %24 = tpu.iota {dimensions = array<i32: 1>} : vector<4x8xi32>
    %c6_i32 = arith.constant 6 : i32
    %25 = vector.broadcast %c6_i32 : i32 to vector<4x8xi32>
    %26 = arith.cmpi sle, %24, %25 : vector<4x8xi32>
    %27 = arith.subi %24, %23 : vector<4x8xi32>
    %c4_i32 = arith.constant 4 : i32
    %28 = vector.broadcast %c4_i32 : i32 to vector<4x8xi32>
    %29 = arith.cmpi sle, %27, %28 : vector<4x8xi32>
    %30 = arith.andi %26, %29 : vector<4x8xi1>
    %31 = arith.extui %30 : vector<4x8xi1> to vector<4x8xi32>
    %32 = arith.sitofp %31 : vector<4x8xi32> to vector<4x8xf32>
    %33 = vector.extract_strided_slice %2 {offsets = [0, 2], sizes = [1, 16], strides = [1, 1]} : vector<1x20xf32> to vector<1x16xf32>
    %c0_14 = arith.constant 0 : index
    %c0_15 = arith.constant 0 : index
    %34 = vector.load %arg9[%c0_14, %c0_15] : memref<32x64xf32, #tpu.memory_space<vmem>>, vector<32x64xf32>
    %cst_16 = arith.constant 0.000000e+00 : f32
    %35 = vector.broadcast %cst_16 : f32 to vector<32x16xf32>
    %36 = vector.extract_strided_slice %7 {offsets = [0, 0], sizes = [16, 20], strides = [1, 1]} : vector<64x20xf32> to vector<16x20xf32>
    %37 = vector.extract_strided_slice %7 {offsets = [16, 0], sizes = [16, 20], strides = [1, 1]} : vector<64x20xf32> to vector<16x20xf32>
    %38 = vector.extract_strided_slice %22 {offsets = [0, 0], sizes = [16, 20], strides = [1, 1]} : vector<32x20xf32> to vector<16x20xf32>
    %39 = vector.extract_strided_slice %36 {offsets = [0, 2], sizes = [16, 4], strides = [1, 1]} : vector<16x20xf32> to vector<16x4xf32>
    %40 = vector.extract_strided_slice %37 {offsets = [0, 0], sizes = [16, 8], strides = [1, 1]} : vector<16x20xf32> to vector<16x8xf32>
    %41 = vector.extract_strided_slice %38 {offsets = [0, 0], sizes = [16, 8], strides = [1, 1]} : vector<16x20xf32> to vector<16x8xf32>
    %42 = vector.extract_strided_slice %2 {offsets = [0, 0], sizes = [1, 8], strides = [1, 1]} : vector<1x20xf32> to vector<1x8xf32>
    %43 = vector.broadcast %42 : vector<1x8xf32> to vector<4x8xf32>
    %44 = arith.mulf %32, %43 : vector<4x8xf32>
    %cst_17 = arith.constant dense<0.000000e+00> : vector<4x8xf32>
    %45 = tpu.matmul %39, %40, %cst_17 {dimension_numbers = #tpu.dot_dimension_numbers<[0], [0], [1], [1], [0, 1, 1, 1], [], []>} : vector<16x4xf32>, vector<16x8xf32>, vector<4x8xf32> -> vector<4x8xf32>
    %46 = arith.mulf %45, %44 : vector<4x8xf32>
    %cst_18 = arith.constant 2.500000e-01 : f32
    %47 = vector.broadcast %cst_18 : f32 to vector<4x8xf32>
    %48 = arith.mulf %46, %47 : vector<4x8xf32>
    %cst_19 = arith.constant 9.99999997E-7 : f32
    %49 = vector.broadcast %cst_19 : f32 to vector<4x8xf32>
    %50 = arith.addf %44, %49 : vector<4x8xf32>
    %51 = math.log %50 : vector<4x8xf32>
    %52 = arith.addf %48, %51 : vector<4x8xf32>
    %cst_20 = arith.constant dense<0xFF800000> : vector<4xf32>
    %53 = vector.multi_reduction <maximumf>, %52, %cst_20 [1] : vector<4x8xf32> to vector<4xf32>
    %54 = vector.shape_cast %53 : vector<4xf32> to vector<4x1xf32>
    %55 = vector.broadcast %54 : vector<4x1xf32> to vector<4x8xf32>
    %56 = arith.subf %52, %55 : vector<4x8xf32>
    %57 = math.exp %56 : vector<4x8xf32>
    %cst_21 = arith.constant dense<0.000000e+00> : vector<4xf32>
    %58 = vector.multi_reduction <add>, %57, %cst_21 [1] : vector<4x8xf32> to vector<4xf32>
    %59 = vector.shape_cast %58 : vector<4xf32> to vector<4x1xf32>
    %60 = tpu.reciprocal %59 : vector<4x1xf32> -> vector<4x1xf32>
    %61 = vector.broadcast %60 : vector<4x1xf32> to vector<4x8xf32>
    %62 = arith.mulf %57, %61 : vector<4x8xf32>
    %cst_22 = arith.constant dense<0.000000e+00> : vector<16x4xf32>
    %63 = tpu.matmul %41, %62, %cst_22 {dimension_numbers = #tpu.dot_dimension_numbers<[1], [1], [0], [0], [0, 0, 1, 0], [], []>} : vector<16x8xf32>, vector<4x8xf32>, vector<16x4xf32> -> vector<16x4xf32>
    %c0_23 = arith.constant 0 : index
    %c0_24 = arith.constant 0 : index
    %64 = vector.load %arg12[%c0_23, %c0_24] : memref<16x16xf32, #tpu.memory_space<vmem>>, vector<16x4xf32>
    tpu.vector_store %arg12[%c0_23, %c0_24], %63 {strides = array<i32>} : memref<16x16xf32, #tpu.memory_space<vmem>>, vector<16x4xf32>,
    %65 = vector.extract_strided_slice %36 {offsets = [0, 6], sizes = [16, 4], strides = [1, 1]} : vector<16x20xf32> to vector<16x4xf32>
    %66 = vector.extract_strided_slice %37 {offsets = [0, 4], sizes = [16, 8], strides = [1, 1]} : vector<16x20xf32> to vector<16x8xf32>
    %67 = vector.extract_strided_slice %38 {offsets = [0, 4], sizes = [16, 8], strides = [1, 1]} : vector<16x20xf32> to vector<16x8xf32>
    %68 = vector.extract_strided_slice %2 {offsets = [0, 4], sizes = [1, 8], strides = [1, 1]} : vector<1x20xf32> to vector<1x8xf32>
    %69 = vector.broadcast %68 : vector<1x8xf32> to vector<4x8xf32>
    %70 = arith.mulf %32, %69 : vector<4x8xf32>
    %cst_25 = arith.constant dense<0.000000e+00> : vector<4x8xf32>
    %71 = tpu.matmul %65, %66, %cst_25 {dimension_numbers = #tpu.dot_dimension_numbers<[0], [0], [1], [1], [0, 1, 1, 1], [], []>} : vector<16x4xf32>, vector<16x8xf32>, vector<4x8xf32> -> vector<4x8xf32>
    %72 = arith.mulf %71, %70 : vector<4x8xf32>
    %cst_26 = arith.constant 2.500000e-01 : f32
    %73 = vector.broadcast %cst_26 : f32 to vector<4x8xf32>
    %74 = arith.mulf %72, %73 : vector<4x8xf32>
    %cst_27 = arith.constant 9.99999997E-7 : f32
    %75 = vector.broadcast %cst_27 : f32 to vector<4x8xf32>
    %76 = arith.addf %70, %75 : vector<4x8xf32>
    %77 = math.log %76 : vector<4x8xf32>
    %78 = arith.addf %74, %77 : vector<4x8xf32>
    %cst_28 = arith.constant dense<0xFF800000> : vector<4xf32>
    %79 = vector.multi_reduction <maximumf>, %78, %cst_28 [1] : vector<4x8xf32> to vector<4xf32>
    %80 = vector.shape_cast %79 : vector<4xf32> to vector<4x1xf32>
    %81 = vector.broadcast %80 : vector<4x1xf32> to vector<4x8xf32>
    %82 = arith.subf %78, %81 : vector<4x8xf32>
    %83 = math.exp %82 : vector<4x8xf32>
    %cst_29 = arith.constant dense<0.000000e+00> : vector<4xf32>
    %84 = vector.multi_reduction <add>, %83, %cst_29 [1] : vector<4x8xf32> to vector<4xf32>
    %85 = vector.shape_cast %84 : vector<4xf32> to vector<4x1xf32>
    %86 = tpu.reciprocal %85 : vector<4x1xf32> -> vector<4x1xf32>
    %87 = vector.broadcast %86 : vector<4x1xf32> to vector<4x8xf32>
    %88 = arith.mulf %83, %87 : vector<4x8xf32>
    %cst_30 = arith.constant dense<0.000000e+00> : vector<16x4xf32>
    %89 = tpu.matmul %67, %88, %cst_30 {dimension_numbers = #tpu.dot_dimension_numbers<[1], [1], [0], [0], [0, 0, 1, 0], [], []>} : vector<16x8xf32>, vector<4x8xf32>, vector<16x4xf32> -> vector<16x4xf32>
    %c0_31 = arith.constant 0 : index
    %c4 = arith.constant 4 : index
    %90 = vector.load %arg12[%c0_31, %c4] : memref<16x16xf32, #tpu.memory_space<vmem>>, vector<16x4xf32>
    tpu.vector_store %arg12[%c0_31, %c4], %89 {strides = array<i32>} : memref<16x16xf32, #tpu.memory_space<vmem>>, vector<16x4xf32>,
    %91 = vector.extract_strided_slice %36 {offsets = [0, 10], sizes = [16, 4], strides = [1, 1]} : vector<16x20xf32> to vector<16x4xf32>
    %92 = vector.extract_strided_slice %37 {offsets = [0, 8], sizes = [16, 8], strides = [1, 1]} : vector<16x20xf32> to vector<16x8xf32>
    %93 = vector.extract_strided_slice %38 {offsets = [0, 8], sizes = [16, 8], strides = [1, 1]} : vector<16x20xf32> to vector<16x8xf32>
    %94 = vector.extract_strided_slice %2 {offsets = [0, 8], sizes = [1, 8], strides = [1, 1]} : vector<1x20xf32> to vector<1x8xf32>
    %95 = vector.broadcast %94 : vector<1x8xf32> to vector<4x8xf32>
    %96 = arith.mulf %32, %95 : vector<4x8xf32>
    %cst_32 = arith.constant dense<0.000000e+00> : vector<4x8xf32>
    %97 = tpu.matmul %91, %92, %cst_32 {dimension_numbers = #tpu.dot_dimension_numbers<[0], [0], [1], [1], [0, 1, 1, 1], [], []>} : vector<16x4xf32>, vector<16x8xf32>, vector<4x8xf32> -> vector<4x8xf32>
    %98 = arith.mulf %97, %96 : vector<4x8xf32>
    %cst_33 = arith.constant 2.500000e-01 : f32
    %99 = vector.broadcast %cst_33 : f32 to vector<4x8xf32>
    %100 = arith.mulf %98, %99 : vector<4x8xf32>
    %cst_34 = arith.constant 9.99999997E-7 : f32
    %101 = vector.broadcast %cst_34 : f32 to vector<4x8xf32>
    %102 = arith.addf %96, %101 : vector<4x8xf32>
    %103 = math.log %102 : vector<4x8xf32>
    %104 = arith.addf %100, %103 : vector<4x8xf32>
    %cst_35 = arith.constant dense<0xFF800000> : vector<4xf32>
    %105 = vector.multi_reduction <maximumf>, %104, %cst_35 [1] : vector<4x8xf32> to vector<4xf32>
    %106 = vector.shape_cast %105 : vector<4xf32> to vector<4x1xf32>
    %107 = vector.broadcast %106 : vector<4x1xf32> to vector<4x8xf32>
    %108 = arith.subf %104, %107 : vector<4x8xf32>
    %109 = math.exp %108 : vector<4x8xf32>
    %cst_36 = arith.constant dense<0.000000e+00> : vector<4xf32>
    %110 = vector.multi_reduction <add>, %109, %cst_36 [1] : vector<4x8xf32> to vector<4xf32>
    %111 = vector.shape_cast %110 : vector<4xf32> to vector<4x1xf32>
    %112 = tpu.reciprocal %111 : vector<4x1xf32> -> vector<4x1xf32>
    %113 = vector.broadcast %112 : vector<4x1xf32> to vector<4x8xf32>
    %114 = arith.mulf %109, %113 : vector<4x8xf32>
    %cst_37 = arith.constant dense<0.000000e+00> : vector<16x4xf32>
    %115 = tpu.matmul %93, %114, %cst_37 {dimension_numbers = #tpu.dot_dimension_numbers<[1], [1], [0], [0], [0, 0, 1, 0], [], []>} : vector<16x8xf32>, vector<4x8xf32>, vector<16x4xf32> -> vector<16x4xf32>
    %c0_38 = arith.constant 0 : index
    %c8 = arith.constant 8 : index
    %116 = vector.load %arg12[%c0_38, %c8] : memref<16x16xf32, #tpu.memory_space<vmem>>, vector<16x4xf32>
    tpu.vector_store %arg12[%c0_38, %c8], %115 {strides = array<i32>} : memref<16x16xf32, #tpu.memory_space<vmem>>, vector<16x4xf32>,
    %117 = vector.extract_strided_slice %36 {offsets = [0, 14], sizes = [16, 4], strides = [1, 1]} : vector<16x20xf32> to vector<16x4xf32>
    %118 = vector.extract_strided_slice %37 {offsets = [0, 12], sizes = [16, 8], strides = [1, 1]} : vector<16x20xf32> to vector<16x8xf32>
    %119 = vector.extract_strided_slice %38 {offsets = [0, 12], sizes = [16, 8], strides = [1, 1]} : vector<16x20xf32> to vector<16x8xf32>
    %120 = vector.extract_strided_slice %2 {offsets = [0, 12], sizes = [1, 8], strides = [1, 1]} : vector<1x20xf32> to vector<1x8xf32>
    %121 = vector.broadcast %120 : vector<1x8xf32> to vector<4x8xf32>
    %122 = arith.mulf %32, %121 : vector<4x8xf32>
    %cst_39 = arith.constant dense<0.000000e+00> : vector<4x8xf32>
    %123 = tpu.matmul %117, %118, %cst_39 {dimension_numbers = #tpu.dot_dimension_numbers<[0], [0], [1], [1], [0, 1, 1, 1], [], []>} : vector<16x4xf32>, vector<16x8xf32>, vector<4x8xf32> -> vector<4x8xf32>
    %124 = arith.mulf %123, %122 : vector<4x8xf32>
    %cst_40 = arith.constant 2.500000e-01 : f32
    %125 = vector.broadcast %cst_40 : f32 to vector<4x8xf32>
    %126 = arith.mulf %124, %125 : vector<4x8xf32>
    %cst_41 = arith.constant 9.99999997E-7 : f32
    %127 = vector.broadcast %cst_41 : f32 to vector<4x8xf32>
    %128 = arith.addf %122, %127 : vector<4x8xf32>
    %129 = math.log %128 : vector<4x8xf32>
    %130 = arith.addf %126, %129 : vector<4x8xf32>
    %cst_42 = arith.constant dense<0xFF800000> : vector<4xf32>
    %131 = vector.multi_reduction <maximumf>, %130, %cst_42 [1] : vector<4x8xf32> to vector<4xf32>
    %132 = vector.shape_cast %131 : vector<4xf32> to vector<4x1xf32>
    %133 = vector.broadcast %132 : vector<4x1xf32> to vector<4x8xf32>
    %134 = arith.subf %130, %133 : vector<4x8xf32>
    %135 = math.exp %134 : vector<4x8xf32>
    %cst_43 = arith.constant dense<0.000000e+00> : vector<4xf32>
    %136 = vector.multi_reduction <add>, %135, %cst_43 [1] : vector<4x8xf32> to vector<4xf32>
    %137 = vector.shape_cast %136 : vector<4xf32> to vector<4x1xf32>
    %138 = tpu.reciprocal %137 : vector<4x1xf32> -> vector<4x1xf32>
    %139 = vector.broadcast %138 : vector<4x1xf32> to vector<4x8xf32>
    %140 = arith.mulf %135, %139 : vector<4x8xf32>
    %cst_44 = arith.constant dense<0.000000e+00> : vector<16x4xf32>
    %141 = tpu.matmul %119, %140, %cst_44 {dimension_numbers = #tpu.dot_dimension_numbers<[1], [1], [0], [0], [0, 0, 1, 0], [], []>} : vector<16x8xf32>, vector<4x8xf32>, vector<16x4xf32> -> vector<16x4xf32>
    %c0_45 = arith.constant 0 : index
    %c12 = arith.constant 12 : index
    %142 = vector.load %arg12[%c0_45, %c12] : memref<16x16xf32, #tpu.memory_space<vmem>>, vector<16x4xf32>
    tpu.vector_store %arg12[%c0_45, %c12], %141 {strides = array<i32>} : memref<16x16xf32, #tpu.memory_space<vmem>>, vector<16x4xf32>,
    %c0_46 = arith.constant 0 : index
    %c0_47 = arith.constant 0 : index
    %143 = vector.load %arg12[%c0_46, %c0_47] : memref<16x16xf32, #tpu.memory_space<vmem>>, vector<16x16xf32>
    %c0_48 = arith.constant 0 : index
    %c0_49 = arith.constant 0 : index
    %c0_50 = arith.constant 0 : index
    %144 = vector.load %arg7[%c0_48, %c0_49, %c0_50] : memref<2x32x16xf32, #tpu.memory_space<vmem>>, vector<1x32x16xf32>
    %145 = vector.shape_cast %144 : vector<1x32x16xf32> to vector<32x16xf32>
    %cst_51 = arith.constant 0.000000e+00 : f32
    %146 = vector.broadcast %cst_51 : f32 to vector<16x16xf32>
    %147 = arith.maximumf %143, %146 : vector<16x16xf32>
    %cst_52 = arith.constant dense<0.000000e+00> : vector<32x16xf32>
    %148 = tpu.matmul %145, %147, %cst_52 {dimension_numbers = #tpu.dot_dimension_numbers<[1], [0], [0], [1], [0, 0, 1, 1], [], []>} : vector<32x16xf32>, vector<16x16xf32>, vector<32x16xf32> -> vector<32x16xf32>
    %c0_53 = arith.constant 0 : index
    %c0_54 = arith.constant 0 : index
    %c0_55 = arith.constant 0 : index
    %149 = vector.load %arg8[%c0_53, %c0_54, %c0_55] : memref<2x32x1xf32, #tpu.memory_space<vmem>>, vector<1x32x1xf32>
    %150 = vector.shape_cast %149 : vector<1x32x1xf32> to vector<32x1xf32>
    %151 = vector.broadcast %150 : vector<32x1xf32> to vector<32x16xf32>
    %152 = arith.addf %148, %151 : vector<32x16xf32>
    %153 = vector.broadcast %33 : vector<1x16xf32> to vector<32x16xf32>
    %154 = arith.mulf %152, %153 : vector<32x16xf32>
    %155 = vector.extract_strided_slice %34 {offsets = [0, 0], sizes = [32, 32], strides = [1, 1]} : vector<32x64xf32> to vector<32x32xf32>
    %cst_56 = arith.constant dense<0.000000e+00> : vector<32x16xf32>
    %156 = tpu.matmul %155, %154, %cst_56 {dimension_numbers = #tpu.dot_dimension_numbers<[1], [0], [0], [1], [0, 0, 1, 1], [], []>} : vector<32x32xf32>, vector<32x16xf32>, vector<32x16xf32> -> vector<32x16xf32>
    %157 = arith.addf %35, %156 : vector<32x16xf32>
    %158 = vector.extract_strided_slice %7 {offsets = [32, 0], sizes = [16, 20], strides = [1, 1]} : vector<64x20xf32> to vector<16x20xf32>
    %159 = vector.extract_strided_slice %7 {offsets = [48, 0], sizes = [16, 20], strides = [1, 1]} : vector<64x20xf32> to vector<16x20xf32>
    %160 = vector.extract_strided_slice %22 {offsets = [16, 0], sizes = [16, 20], strides = [1, 1]} : vector<32x20xf32> to vector<16x20xf32>
    %161 = vector.extract_strided_slice %158 {offsets = [0, 2], sizes = [16, 4], strides = [1, 1]} : vector<16x20xf32> to vector<16x4xf32>
    %162 = vector.extract_strided_slice %159 {offsets = [0, 0], sizes = [16, 8], strides = [1, 1]} : vector<16x20xf32> to vector<16x8xf32>
    %163 = vector.extract_strided_slice %160 {offsets = [0, 0], sizes = [16, 8], strides = [1, 1]} : vector<16x20xf32> to vector<16x8xf32>
    %164 = vector.extract_strided_slice %2 {offsets = [0, 0], sizes = [1, 8], strides = [1, 1]} : vector<1x20xf32> to vector<1x8xf32>
    %165 = vector.broadcast %164 : vector<1x8xf32> to vector<4x8xf32>
    %166 = arith.mulf %32, %165 : vector<4x8xf32>
    %cst_57 = arith.constant dense<0.000000e+00> : vector<4x8xf32>
    %167 = tpu.matmul %161, %162, %cst_57 {dimension_numbers = #tpu.dot_dimension_numbers<[0], [0], [1], [1], [0, 1, 1, 1], [], []>} : vector<16x4xf32>, vector<16x8xf32>, vector<4x8xf32> -> vector<4x8xf32>
    %168 = arith.mulf %167, %166 : vector<4x8xf32>
    %cst_58 = arith.constant 2.500000e-01 : f32
    %169 = vector.broadcast %cst_58 : f32 to vector<4x8xf32>
    %170 = arith.mulf %168, %169 : vector<4x8xf32>
    %cst_59 = arith.constant 9.99999997E-7 : f32
    %171 = vector.broadcast %cst_59 : f32 to vector<4x8xf32>
    %172 = arith.addf %166, %171 : vector<4x8xf32>
    %173 = math.log %172 : vector<4x8xf32>
    %174 = arith.addf %170, %173 : vector<4x8xf32>
    %cst_60 = arith.constant dense<0xFF800000> : vector<4xf32>
    %175 = vector.multi_reduction <maximumf>, %174, %cst_60 [1] : vector<4x8xf32> to vector<4xf32>
    %176 = vector.shape_cast %175 : vector<4xf32> to vector<4x1xf32>
    %177 = vector.broadcast %176 : vector<4x1xf32> to vector<4x8xf32>
    %178 = arith.subf %174, %177 : vector<4x8xf32>
    %179 = math.exp %178 : vector<4x8xf32>
    %cst_61 = arith.constant dense<0.000000e+00> : vector<4xf32>
    %180 = vector.multi_reduction <add>, %179, %cst_61 [1] : vector<4x8xf32> to vector<4xf32>
    %181 = vector.shape_cast %180 : vector<4xf32> to vector<4x1xf32>
    %182 = tpu.reciprocal %181 : vector<4x1xf32> -> vector<4x1xf32>
    %183 = vector.broadcast %182 : vector<4x1xf32> to vector<4x8xf32>
    %184 = arith.mulf %179, %183 : vector<4x8xf32>
    %cst_62 = arith.constant dense<0.000000e+00> : vector<16x4xf32>
    %185 = tpu.matmul %163, %184, %cst_62 {dimension_numbers = #tpu.dot_dimension_numbers<[1], [1], [0], [0], [0, 0, 1, 0], [], []>} : vector<16x8xf32>, vector<4x8xf32>, vector<16x4xf32> -> vector<16x4xf32>
    %c0_63 = arith.constant 0 : index
    %c0_64 = arith.constant 0 : index
    %186 = vector.load %arg12[%c0_63, %c0_64] : memref<16x16xf32, #tpu.memory_space<vmem>>, vector<16x4xf32>
    tpu.vector_store %arg12[%c0_63, %c0_64], %185 {strides = array<i32>} : memref<16x16xf32, #tpu.memory_space<vmem>>, vector<16x4xf32>,
    %187 = vector.extract_strided_slice %158 {offsets = [0, 6], sizes = [16, 4], strides = [1, 1]} : vector<16x20xf32> to vector<16x4xf32>
    %188 = vector.extract_strided_slice %159 {offsets = [0, 4], sizes = [16, 8], strides = [1, 1]} : vector<16x20xf32> to vector<16x8xf32>
    %189 = vector.extract_strided_slice %160 {offsets = [0, 4], sizes = [16, 8], strides = [1, 1]} : vector<16x20xf32> to vector<16x8xf32>
    %190 = vector.extract_strided_slice %2 {offsets = [0, 4], sizes = [1, 8], strides = [1, 1]} : vector<1x20xf32> to vector<1x8xf32>
    %191 = vector.broadcast %190 : vector<1x8xf32> to vector<4x8xf32>
    %192 = arith.mulf %32, %191 : vector<4x8xf32>
    %cst_65 = arith.constant dense<0.000000e+00> : vector<4x8xf32>
    %193 = tpu.matmul %187, %188, %cst_65 {dimension_numbers = #tpu.dot_dimension_numbers<[0], [0], [1], [1], [0, 1, 1, 1], [], []>} : vector<16x4xf32>, vector<16x8xf32>, vector<4x8xf32> -> vector<4x8xf32>
    %194 = arith.mulf %193, %192 : vector<4x8xf32>
    %cst_66 = arith.constant 2.500000e-01 : f32
    %195 = vector.broadcast %cst_66 : f32 to vector<4x8xf32>
    %196 = arith.mulf %194, %195 : vector<4x8xf32>
    %cst_67 = arith.constant 9.99999997E-7 : f32
    %197 = vector.broadcast %cst_67 : f32 to vector<4x8xf32>
    %198 = arith.addf %192, %197 : vector<4x8xf32>
    %199 = math.log %198 : vector<4x8xf32>
    %200 = arith.addf %196, %199 : vector<4x8xf32>
    %cst_68 = arith.constant dense<0xFF800000> : vector<4xf32>
    %201 = vector.multi_reduction <maximumf>, %200, %cst_68 [1] : vector<4x8xf32> to vector<4xf32>
    %202 = vector.shape_cast %201 : vector<4xf32> to vector<4x1xf32>
    %203 = vector.broadcast %202 : vector<4x1xf32> to vector<4x8xf32>
    %204 = arith.subf %200, %203 : vector<4x8xf32>
    %205 = math.exp %204 : vector<4x8xf32>
    %cst_69 = arith.constant dense<0.000000e+00> : vector<4xf32>
    %206 = vector.multi_reduction <add>, %205, %cst_69 [1] : vector<4x8xf32> to vector<4xf32>
    %207 = vector.shape_cast %206 : vector<4xf32> to vector<4x1xf32>
    %208 = tpu.reciprocal %207 : vector<4x1xf32> -> vector<4x1xf32>
    %209 = vector.broadcast %208 : vector<4x1xf32> to vector<4x8xf32>
    %210 = arith.mulf %205, %209 : vector<4x8xf32>
    %cst_70 = arith.constant dense<0.000000e+00> : vector<16x4xf32>
    %211 = tpu.matmul %189, %210, %cst_70 {dimension_numbers = #tpu.dot_dimension_numbers<[1], [1], [0], [0], [0, 0, 1, 0], [], []>} : vector<16x8xf32>, vector<4x8xf32>, vector<16x4xf32> -> vector<16x4xf32>
    %c0_71 = arith.constant 0 : index
    %c4_72 = arith.constant 4 : index
    %212 = vector.load %arg12[%c0_71, %c4_72] : memref<16x16xf32, #tpu.memory_space<vmem>>, vector<16x4xf32>
    tpu.vector_store %arg12[%c0_71, %c4_72], %211 {strides = array<i32>} : memref<16x16xf32, #tpu.memory_space<vmem>>, vector<16x4xf32>,
    %213 = vector.extract_strided_slice %158 {offsets = [0, 10], sizes = [16, 4], strides = [1, 1]} : vector<16x20xf32> to vector<16x4xf32>
    %214 = vector.extract_strided_slice %159 {offsets = [0, 8], sizes = [16, 8], strides = [1, 1]} : vector<16x20xf32> to vector<16x8xf32>
    %215 = vector.extract_strided_slice %160 {offsets = [0, 8], sizes = [16, 8], strides = [1, 1]} : vector<16x20xf32> to vector<16x8xf32>
    %216 = vector.extract_strided_slice %2 {offsets = [0, 8], sizes = [1, 8], strides = [1, 1]} : vector<1x20xf32> to vector<1x8xf32>
    %217 = vector.broadcast %216 : vector<1x8xf32> to vector<4x8xf32>
    %218 = arith.mulf %32, %217 : vector<4x8xf32>
    %cst_73 = arith.constant dense<0.000000e+00> : vector<4x8xf32>
    %219 = tpu.matmul %213, %214, %cst_73 {dimension_numbers = #tpu.dot_dimension_numbers<[0], [0], [1], [1], [0, 1, 1, 1], [], []>} : vector<16x4xf32>, vector<16x8xf32>, vector<4x8xf32> -> vector<4x8xf32>
    %220 = arith.mulf %219, %218 : vector<4x8xf32>
    %cst_74 = arith.constant 2.500000e-01 : f32
    %221 = vector.broadcast %cst_74 : f32 to vector<4x8xf32>
    %222 = arith.mulf %220, %221 : vector<4x8xf32>
    %cst_75 = arith.constant 9.99999997E-7 : f32
    %223 = vector.broadcast %cst_75 : f32 to vector<4x8xf32>
    %224 = arith.addf %218, %223 : vector<4x8xf32>
    %225 = math.log %224 : vector<4x8xf32>
    %226 = arith.addf %222, %225 : vector<4x8xf32>
    %cst_76 = arith.constant dense<0xFF800000> : vector<4xf32>
    %227 = vector.multi_reduction <maximumf>, %226, %cst_76 [1] : vector<4x8xf32> to vector<4xf32>
    %228 = vector.shape_cast %227 : vector<4xf32> to vector<4x1xf32>
    %229 = vector.broadcast %228 : vector<4x1xf32> to vector<4x8xf32>
    %230 = arith.subf %226, %229 : vector<4x8xf32>
    %231 = math.exp %230 : vector<4x8xf32>
    %cst_77 = arith.constant dense<0.000000e+00> : vector<4xf32>
    %232 = vector.multi_reduction <add>, %231, %cst_77 [1] : vector<4x8xf32> to vector<4xf32>
    %233 = vector.shape_cast %232 : vector<4xf32> to vector<4x1xf32>
    %234 = tpu.reciprocal %233 : vector<4x1xf32> -> vector<4x1xf32>
    %235 = vector.broadcast %234 : vector<4x1xf32> to vector<4x8xf32>
    %236 = arith.mulf %231, %235 : vector<4x8xf32>
    %cst_78 = arith.constant dense<0.000000e+00> : vector<16x4xf32>
    %237 = tpu.matmul %215, %236, %cst_78 {dimension_numbers = #tpu.dot_dimension_numbers<[1], [1], [0], [0], [0, 0, 1, 0], [], []>} : vector<16x8xf32>, vector<4x8xf32>, vector<16x4xf32> -> vector<16x4xf32>
    %c0_79 = arith.constant 0 : index
    %c8_80 = arith.constant 8 : index
    %238 = vector.load %arg12[%c0_79, %c8_80] : memref<16x16xf32, #tpu.memory_space<vmem>>, vector<16x4xf32>
    tpu.vector_store %arg12[%c0_79, %c8_80], %237 {strides = array<i32>} : memref<16x16xf32, #tpu.memory_space<vmem>>, vector<16x4xf32>,
    %239 = vector.extract_strided_slice %158 {offsets = [0, 14], sizes = [16, 4], strides = [1, 1]} : vector<16x20xf32> to vector<16x4xf32>
    %240 = vector.extract_strided_slice %159 {offsets = [0, 12], sizes = [16, 8], strides = [1, 1]} : vector<16x20xf32> to vector<16x8xf32>
    %241 = vector.extract_strided_slice %160 {offsets = [0, 12], sizes = [16, 8], strides = [1, 1]} : vector<16x20xf32> to vector<16x8xf32>
    %242 = vector.extract_strided_slice %2 {offsets = [0, 12], sizes = [1, 8], strides = [1, 1]} : vector<1x20xf32> to vector<1x8xf32>
    %243 = vector.broadcast %242 : vector<1x8xf32> to vector<4x8xf32>
    %244 = arith.mulf %32, %243 : vector<4x8xf32>
    %cst_81 = arith.constant dense<0.000000e+00> : vector<4x8xf32>
    %245 = tpu.matmul %239, %240, %cst_81 {dimension_numbers = #tpu.dot_dimension_numbers<[0], [0], [1], [1], [0, 1, 1, 1], [], []>} : vector<16x4xf32>, vector<16x8xf32>, vector<4x8xf32> -> vector<4x8xf32>
    %246 = arith.mulf %245, %244 : vector<4x8xf32>
    %cst_82 = arith.constant 2.500000e-01 : f32
    %247 = vector.broadcast %cst_82 : f32 to vector<4x8xf32>
    %248 = arith.mulf %246, %247 : vector<4x8xf32>
    %cst_83 = arith.constant 9.99999997E-7 : f32
    %249 = vector.broadcast %cst_83 : f32 to vector<4x8xf32>
    %250 = arith.addf %244, %249 : vector<4x8xf32>
    %251 = math.log %250 : vector<4x8xf32>
    %252 = arith.addf %248, %251 : vector<4x8xf32>
    %cst_84 = arith.constant dense<0xFF800000> : vector<4xf32>
    %253 = vector.multi_reduction <maximumf>, %252, %cst_84 [1] : vector<4x8xf32> to vector<4xf32>
    %254 = vector.shape_cast %253 : vector<4xf32> to vector<4x1xf32>
    %255 = vector.broadcast %254 : vector<4x1xf32> to vector<4x8xf32>
    %256 = arith.subf %252, %255 : vector<4x8xf32>
    %257 = math.exp %256 : vector<4x8xf32>
    %cst_85 = arith.constant dense<0.000000e+00> : vector<4xf32>
    %258 = vector.multi_reduction <add>, %257, %cst_85 [1] : vector<4x8xf32> to vector<4xf32>
    %259 = vector.shape_cast %258 : vector<4xf32> to vector<4x1xf32>
    %260 = tpu.reciprocal %259 : vector<4x1xf32> -> vector<4x1xf32>
    %261 = vector.broadcast %260 : vector<4x1xf32> to vector<4x8xf32>
    %262 = arith.mulf %257, %261 : vector<4x8xf32>
    %cst_86 = arith.constant dense<0.000000e+00> : vector<16x4xf32>
    %263 = tpu.matmul %241, %262, %cst_86 {dimension_numbers = #tpu.dot_dimension_numbers<[1], [1], [0], [0], [0, 0, 1, 0], [], []>} : vector<16x8xf32>, vector<4x8xf32>, vector<16x4xf32> -> vector<16x4xf32>
    %c0_87 = arith.constant 0 : index
    %c12_88 = arith.constant 12 : index
    %264 = vector.load %arg12[%c0_87, %c12_88] : memref<16x16xf32, #tpu.memory_space<vmem>>, vector<16x4xf32>
    tpu.vector_store %arg12[%c0_87, %c12_88], %263 {strides = array<i32>} : memref<16x16xf32, #tpu.memory_space<vmem>>, vector<16x4xf32>,
    %c0_89 = arith.constant 0 : index
    %c0_90 = arith.constant 0 : index
    %265 = vector.load %arg12[%c0_89, %c0_90] : memref<16x16xf32, #tpu.memory_space<vmem>>, vector<16x16xf32>
    %c1 = arith.constant 1 : index
    %c0_91 = arith.constant 0 : index
    %c0_92 = arith.constant 0 : index
    %266 = vector.load %arg7[%c1, %c0_91, %c0_92] : memref<2x32x16xf32, #tpu.memory_space<vmem>>, vector<1x32x16xf32>
    %267 = vector.shape_cast %266 : vector<1x32x16xf32> to vector<32x16xf32>
    %cst_93 = arith.constant 0.000000e+00 : f32
    %268 = vector.broadcast %cst_93 : f32 to vector<16x16xf32>
    %269 = arith.maximumf %265, %268 : vector<16x16xf32>
    %cst_94 = arith.constant dense<0.000000e+00> : vector<32x16xf32>
    %270 = tpu.matmul %267, %269, %cst_94 {dimension_numbers = #tpu.dot_dimension_numbers<[1], [0], [0], [1], [0, 0, 1, 1], [], []>} : vector<32x16xf32>, vector<16x16xf32>, vector<32x16xf32> -> vector<32x16xf32>
    %c1_95 = arith.constant 1 : index
    %c0_96 = arith.constant 0 : index
    %c0_97 = arith.constant 0 : index
    %271 = vector.load %arg8[%c1_95, %c0_96, %c0_97] : memref<2x32x1xf32, #tpu.memory_space<vmem>>, vector<1x32x1xf32>
    %272 = vector.shape_cast %271 : vector<1x32x1xf32> to vector<32x1xf32>
    %273 = vector.broadcast %272 : vector<32x1xf32> to vector<32x16xf32>
    %274 = arith.addf %270, %273 : vector<32x16xf32>
    %275 = vector.broadcast %33 : vector<1x16xf32> to vector<32x16xf32>
    %276 = arith.mulf %274, %275 : vector<32x16xf32>
    %277 = vector.extract_strided_slice %34 {offsets = [0, 32], sizes = [32, 32], strides = [1, 1]} : vector<32x64xf32> to vector<32x32xf32>
    %cst_98 = arith.constant dense<0.000000e+00> : vector<32x16xf32>
    %278 = tpu.matmul %277, %276, %cst_98 {dimension_numbers = #tpu.dot_dimension_numbers<[1], [0], [0], [1], [0, 0, 1, 1], [], []>} : vector<32x32xf32>, vector<32x16xf32>, vector<32x16xf32> -> vector<32x16xf32>
    %279 = arith.addf %157, %278 : vector<32x16xf32>
    %c0_99 = arith.constant 0 : index
    %c0_100 = arith.constant 0 : index
    %280 = vector.load %arg10[%c0_99, %c0_100] : memref<32x1xf32, #tpu.memory_space<vmem>>, vector<32x1xf32>
    %281 = vector.broadcast %280 : vector<32x1xf32> to vector<32x16xf32>
    %282 = arith.addf %279, %281 : vector<32x16xf32>
    %c0_101 = arith.constant 0 : index
    %c0_102 = arith.constant 0 : index
    %283 = vector.load %arg11[%c0_101, %c0_102] : memref<32x16xf32, #tpu.memory_space<vmem>>, vector<32x16xf32>
    tpu.vector_store %arg11[%c0_101, %c0_102], %282 {strides = array<i32>} : memref<32x16xf32, #tpu.memory_space<vmem>>, vector<32x16xf32>,
    return
  }
}

</mosaic_0001>

<llo_original>
// kernel: multi_head_att_layer_forward.1
$region0: #{multi_head_att_layer_forward.1}
  #allocation0 [shape = 'u32[]', space=smem, size = 0x4, offset = 0x4, fixed_abs, tag = 'smem constant byte address 0x4 - core index']
  #allocation1 [shape = 'u32[144,128]{1,0:T(1,128)}', space=vmem, size = 0x12000, scoped, tag = 'internal scratch']
  #allocation2 [shape = 'f32[16,16]{1,0:T(8,128)}', space=vmem, size = 0x2000, scoped, tag = 'scratch operand']
  %s0 = inlined_call_operand.vmem [shape: f32[32,20], index: 0, kind: input, shape index: {}, may-alias: {0,1}]
  %s1 = inlined_call_operand.vmem [shape: f32[32,20], index: 1, kind: input, shape index: {}, may-alias: {0,1}]
  %s2 = inlined_call_operand.vmem [shape: f32[1,20], index: 2, kind: input, shape index: {}]
  %s3 = inlined_call_operand.vmem [shape: f32[64,32], index: 3, kind: input, shape index: {}]
  %s4 = inlined_call_operand.vmem [shape: f32[64,1], index: 4, kind: input, shape index: {}]
  %s5 = inlined_call_operand.vmem [shape: f32[32,32], index: 5, kind: input, shape index: {}]
  %s6 = inlined_call_operand.vmem [shape: f32[32,1], index: 6, kind: input, shape index: {}]
  %s7 = inlined_call_operand.vmem [shape: f32[2,32,16], index: 7, kind: input, shape index: {}]
  %s8 = inlined_call_operand.vmem [shape: f32[2,32,1], index: 8, kind: input, shape index: {}]
  %s9 = inlined_call_operand.vmem [shape: f32[32,64], index: 9, kind: input, shape index: {}]
  %s10 = inlined_call_operand.vmem [shape: f32[32,1], index: 10, kind: input, shape index: {}]
  %s11 = inlined_call_operand.vmem [shape: f32[32,16], index: 11, kind: output, shape index: {}]
  %s12 = sld [smem:[#allocation0]]
  $region54: #{multi_head_att_layer_forward.1} parent=0
    _
  %s14 = ssub.s32 1, %s12
  %s15 = scalar_select 0, %s14, %s12
  // Predicated region
  $region2: #{multi_head_att_layer_forward.1} parent=0 // pred_check
    _
  $region3: #{multi_head_att_layer_forward.1} parent=0 // pred_check_branch
    %17 = sbr.rel (0) target = $region5
  $region4: #{multi_head_att_layer_forward.1} parent=0 // pred_region
    _
  $region5: #{multi_head_att_layer_forward.1} parent=0 // pred_fallthru
    _
  // Predicated region
  $region6: #{multi_head_att_layer_forward.1} parent=0 // pred_check
    _
  $region7: #{multi_head_att_layer_forward.1} parent=0 // pred_check_branch
    %19 = sbr.rel (0) target = $region9
  $region8: #{multi_head_att_layer_forward.1} parent=0 // pred_region
    _
  $region9: #{multi_head_att_layer_forward.1} parent=0 // pred_fallthru
    _
  // Predicated region
  $region10: #{multi_head_att_layer_forward.1} parent=0 // pred_check
    _
  $region11: #{multi_head_att_layer_forward.1} parent=0 // pred_check_branch
    %21 = sbr.rel (0) target = $region13
  $region12: #{multi_head_att_layer_forward.1} parent=0 // pred_region
    _
  $region13: #{multi_head_att_layer_forward.1} parent=0 // pred_fallthru
    _
  // Predicated region
  $region14: #{multi_head_att_layer_forward.1} parent=0 // pred_check
    _
  $region15: #{multi_head_att_layer_forward.1} parent=0 // pred_check_branch
    %23 = sbr.rel (0) target = $region17
  $region16: #{multi_head_att_layer_forward.1} parent=0 // pred_region
    _
  $region17: #{multi_head_att_layer_forward.1} parent=0 // pred_fallthru
    _
  // Predicated region
  $region18: #{multi_head_att_layer_forward.1} parent=0 // pred_check
    _
  $region19: #{multi_head_att_layer_forward.1} parent=0 // pred_check_branch
    %25 = sbr.rel (0) target = $region21
  $region20: #{multi_head_att_layer_forward.1} parent=0 // pred_region
    _
  $region21: #{multi_head_att_layer_forward.1} parent=0 // pred_fallthru
    _
  // Predicated region
  $region22: #{multi_head_att_layer_forward.1} parent=0 // pred_check
    _
  $region23: #{multi_head_att_layer_forward.1} parent=0 // pred_check_branch
    %27 = sbr.rel (0) target = $region25
  $region24: #{multi_head_att_layer_forward.1} parent=0 // pred_region
    _
  $region25: #{multi_head_att_layer_forward.1} parent=0 // pred_fallthru
    _
  // Predicated region
  $region26: #{multi_head_att_layer_forward.1} parent=0 // pred_check
    _
  $region27: #{multi_head_att_layer_forward.1} parent=0 // pred_check_branch
    %29 = sbr.rel (0) target = $region29
  $region28: #{multi_head_att_layer_forward.1} parent=0 // pred_region
    _
  $region29: #{multi_head_att_layer_forward.1} parent=0 // pred_fallthru
    _
  // Predicated region
  $region30: #{multi_head_att_layer_forward.1} parent=0 // pred_check
    _
  $region31: #{multi_head_att_layer_forward.1} parent=0 // pred_check_branch
    %31 = sbr.rel (0) target = $region33
  $region32: #{multi_head_att_layer_forward.1} parent=0 // pred_region
    _
  $region33: #{multi_head_att_layer_forward.1} parent=0 // pred_fallthru
    _
  // Predicated region
  $region34: #{multi_head_att_layer_forward.1} parent=0 // pred_check
    _
  $region35: #{multi_head_att_layer_forward.1} parent=0 // pred_check_branch
    %33 = sbr.rel (0) target = $region37
  $region36: #{multi_head_att_layer_forward.1} parent=0 // pred_region
    _
  $region37: #{multi_head_att_layer_forward.1} parent=0 // pred_fallthru
    _
  // Predicated region
  $region38: #{multi_head_att_layer_forward.1} parent=0 // pred_check
    _
  $region39: #{multi_head_att_layer_forward.1} parent=0 // pred_check_branch
    %35 = sbr.rel (0) target = $region41
  $region40: #{multi_head_att_layer_forward.1} parent=0 // pred_region
    _
  $region41: #{multi_head_att_layer_forward.1} parent=0 // pred_fallthru
    _
  // Predicated region
  $region42: #{multi_head_att_layer_forward.1} parent=0 // pred_check
    _
  $region43: #{multi_head_att_layer_forward.1} parent=0 // pred_check_branch
    %37 = sbr.rel (0) target = $region45
  $region44: #{multi_head_att_layer_forward.1} parent=0 // pred_region
    _
  $region45: #{multi_head_att_layer_forward.1} parent=0 // pred_fallthru
    _
  %v38 = vld [vmem:[%s0] sm:$0xff]
  %v39 = vld [vmem:[%s0 + $0x8] sm:$0xff]
  %v40 = vld [vmem:[%s0 + $0x10] sm:$0xff]
  %v41 = vld [vmem:[%s0 + $0x18] sm:$0xff]
  %v42 = vld [vmem:[%s1] sm:$0xff]
  %v43 = vld [vmem:[%s1 + $0x8] sm:$0xff]
  %v44 = vld [vmem:[%s1 + $0x10] sm:$0xff]
  %v45 = vld [vmem:[%s1 + $0x18] sm:$0xff]
  %v46 = vld [vmem:[%s2] sm:$0x1]
  %v47 = vld [vmem:[%s3] sm:$0xff]
  %v48 = vld [vmem:[%s3 + $0x8] sm:$0xff]
  %v49 = vld [vmem:[%s3 + $0x10] sm:$0xff]
  %v50 = vld [vmem:[%s3 + $0x18] sm:$0xff]
  %v51 = vld [vmem:[%s3 + $0x20] sm:$0xff]
  %v52 = vld [vmem:[%s3 + $0x28] sm:$0xff]
  %v53 = vld [vmem:[%s3 + $0x30] sm:$0xff]
  %v54 = vld [vmem:[%s3 + $0x38] sm:$0xff]
  %v55 = vld [vmem:[%s4] sm:$0xff]
  %v56 = vld [vmem:[%s4 + $0x8] sm:$0xff]
  %v57 = vld [vmem:[%s4 + $0x10] sm:$0xff]
  %v58 = vld [vmem:[%s4 + $0x18] sm:$0xff]
  %v59 = vld [vmem:[%s4 + $0x20] sm:$0xff]
  %v60 = vld [vmem:[%s4 + $0x28] sm:$0xff]
  %v61 = vld [vmem:[%s4 + $0x30] sm:$0xff]
  %v62 = vld [vmem:[%s4 + $0x38] sm:$0xff]
  %64 = vset.pattern.permute.xlu0 0
  %65 = vperm.xlu0 %64, %v55
  %v66 = vpop.permute.xlu0 %65
  %69 = vset.pattern.permute.xlu0 0
  %70 = vperm.xlu0 %69, %v56
  %v71 = vpop.permute.xlu0 %70
  %74 = vset.pattern.permute.xlu0 0
  %75 = vperm.xlu0 %74, %v57
  %v76 = vpop.permute.xlu0 %75
  %79 = vset.pattern.permute.xlu0 0
  %80 = vperm.xlu0 %79, %v58
  %v81 = vpop.permute.xlu0 %80
  %84 = vset.pattern.permute.xlu0 0
  %85 = vperm.xlu0 %84, %v59
  %v86 = vpop.permute.xlu0 %85
  %89 = vset.pattern.permute.xlu0 0
  %90 = vperm.xlu0 %89, %v60
  %v91 = vpop.permute.xlu0 %90
  %94 = vset.pattern.permute.xlu0 0
  %95 = vperm.xlu0 %94, %v61
  %v96 = vpop.permute.xlu0 %95
  %99 = vset.pattern.permute.xlu0 0
  %100 = vperm.xlu0 %99, %v62
  %v101 = vpop.permute.xlu0 %100
  %vm103 = vcmask 261120
  %v105 = vsel %vm103, %v47, 0
  %v108 = vsel %vm103, %v48, 0
  %v111 = vsel %vm103, %v49, 0
  %v114 = vsel %vm103, %v50, 0
  %v117 = vsel %vm103, %v51, 0
  %v120 = vsel %vm103, %v52, 0
  %v123 = vsel %vm103, %v53, 0
  %v126 = vsel %vm103, %v54, 0
  %128 = vmatprep.subr.mxu0 0.0
  %129 = vmatpush1.msra.mxu0 0.0
  %130 = vmatprep.subr.mxu0 0.0
  %131 = vmatpush1.msra.mxu0 0.0
  %132 = vmatprep.subr.mxu0 0.0
  %133 = vmatpush1.msra.mxu0 0.0
  %134 = vmatprep.subr.mxu0 0.0
  %135 = vmatpush1.msra.mxu0 0.0
  %136 = vmatprep.subr.mxu0 0.0
  %137 = vmatpush1.msra.mxu0 0.0
  %138 = vmatprep.subr.mxu0 0.0
  %139 = vmatpush1.msra.mxu0 0.0
  %140 = vmatprep.subr.mxu0 0.0
  %141 = vmatpush1.msra.mxu0 0.0
  %142 = vmatprep.subr.mxu0 0.0
  %143 = vmatpush1.msra.mxu0 0.0
  %144 = vmatprep.subr.mxu0 0.0
  %145 = vmatpush1.msra.mxu0 0.0
  %146 = vmatprep.subr.mxu0 0.0
  %147 = vmatpush1.msra.mxu0 0.0
  %148 = vmatprep.subr.mxu0 0.0
  %149 = vmatpush1.msra.mxu0 0.0
  %150 = vmatprep.subr.mxu0 0.0
  %151 = vmatpush1.msra.mxu0 0.0
  %152 = vmatprep.subr.mxu0 0.0
  %153 = vmatpush1.msra.mxu0 %v41
  %154 = vmatprep.subr.mxu0 0.0
  %155 = vmatpush1.msra.mxu0 %v40
  %156 = vmatprep.subr.mxu0 0.0
  %157 = vmatpush1.msra.mxu0 %v39
  %158 = vmatprep.subr.mxu0 0.0
  %159 = vmatpush1.msra.mxu0 %v38
  %160 = vmatprep.subr.mxu0 0.0
  %161 = vmatpush2.msra.mxu0 0.0
  %162 = vmatprep.subr.mxu0 0.0
  %163 = vmatpush2.msra.mxu0 0.0
  %164 = vmatprep.subr.mxu0 0.0
  %165 = vmatpush2.msra.mxu0 0.0
  %166 = vmatprep.subr.mxu0 0.0
  %167 = vmatpush2.msra.mxu0 0.0
  %168 = vmatprep.subr.mxu0 0.0
  %169 = vmatpush2.msra.mxu0 0.0
  %170 = vmatprep.subr.mxu0 0.0
  %171 = vmatpush2.msra.mxu0 0.0
  %172 = vmatprep.subr.mxu0 0.0
  %173 = vmatpush2.msra.mxu0 0.0
  %174 = vmatprep.subr.mxu0 0.0
  %175 = vmatpush2.msra.mxu0 0.0
  %176 = vmatprep.subr.mxu0 0.0
  %177 = vmatpush2.msra.mxu0 0.0
  %178 = vmatprep.subr.mxu0 0.0
  %179 = vmatpush2.msra.mxu0 0.0
  %180 = vmatprep.subr.mxu0 0.0
  %181 = vmatpush2.msra.mxu0 0.0
  %182 = vmatprep.subr.mxu0 0.0
  %183 = vmatpush2.msra.mxu0 0.0
  %184 = vmatprep.subr.mxu0 0.0
  %185 = vmatpush2.msra.mxu0 0.0
  %186 = vmatprep.subr.mxu0 0.0
  %187 = vmatpush2.msra.mxu0 0.0
  %188 = vmatprep.subr.mxu0 0.0
  %189 = vmatpush2.msra.mxu0 0.0
  %190 = vmatprep.subr.mxu0 0.0
  %191 = vmatpush2.msra.mxu0 0.0
  %192 = vmatprep.mubr.f32.mxu0 0.0
  %193 = vmatmul.mubr.f32.gmra.mxu0 %v105
  %v194 = vpop.f32.mrf.mxu0
  %v195 = vadd.f32 %v66, %v194
  %v196 = vpop.f32.mrf.mxu0
  %197 = vmatprep.mubr.f32.mxu0 0.0
  %198 = vmatmul.mubr.f32.gmra.mxu0 %v108
  %v199 = vpop.f32.mrf.mxu0
  %v200 = vadd.f32 %v71, %v199
  %v201 = vpop.f32.mrf.mxu0
  %202 = vmatprep.mubr.f32.mxu0 0.0
  %203 = vmatmul.mubr.f32.gmra.mxu0 %v111
  %v204 = vpop.f32.mrf.mxu0
  %v205 = vadd.f32 %v76, %v204
  %v206 = vpop.f32.mrf.mxu0
  %207 = vmatprep.mubr.f32.mxu0 0.0
  %208 = vmatmul.mubr.f32.gmra.mxu0 %v114
  %v209 = vpop.f32.mrf.mxu0
  %v210 = vadd.f32 %v81, %v209
  %v211 = vpop.f32.mrf.mxu0
  %212 = vmatprep.mubr.f32.mxu0 0.0
  %213 = vmatmul.mubr.f32.gmra.mxu0 %v117
  %v214 = vpop.f32.mrf.mxu0
  %v215 = vadd.f32 %v86, %v214
  %v216 = vpop.f32.mrf.mxu0
  %217 = vmatprep.mubr.f32.mxu0 0.0
  %218 = vmatmul.mubr.f32.gmra.mxu0 %v120
  %v219 = vpop.f32.mrf.mxu0
  %v220 = vadd.f32 %v91, %v219
  %v221 = vpop.f32.mrf.mxu0
  %222 = vmatprep.mubr.f32.mxu0 0.0
  %223 = vmatmul.mubr.f32.gmra.mxu0 %v123
  %v224 = vpop.f32.mrf.mxu0
  %v225 = vadd.f32 %v96, %v224
  %v226 = vpop.f32.mrf.mxu0
  %227 = vmatprep.mubr.f32.mxu0 0.0
  %228 = vmatmul.mubr.f32.gmra.mxu0 %v126
  %v229 = vpop.f32.mrf.mxu0
  %v230 = vadd.f32 %v101, %v229
  %v231 = vpop.f32.mrf.mxu0
  %232 = vdwg.mxu0
  %v233 = vld [vmem:[%s5] sm:$0xff]
  %v234 = vld [vmem:[%s5 + $0x8] sm:$0xff]
  %v235 = vld [vmem:[%s5 + $0x10] sm:$0xff]
  %v236 = vld [vmem:[%s5 + $0x18] sm:$0xff]
  %v237 = vld [vmem:[%s6] sm:$0xff]
  %v238 = vld [vmem:[%s6 + $0x8] sm:$0xff]
  %v239 = vld [vmem:[%s6 + $0x10] sm:$0xff]
  %v240 = vld [vmem:[%s6 + $0x18] sm:$0xff]
  %242 = vset.pattern.permute.xlu0 0
  %243 = vperm.xlu0 %242, %v237
  %v244 = vpop.permute.xlu0 %243
  %247 = vset.pattern.permute.xlu0 0
  %248 = vperm.xlu0 %247, %v238
  %v249 = vpop.permute.xlu0 %248
  %252 = vset.pattern.permute.xlu0 0
  %253 = vperm.xlu0 %252, %v239
  %v254 = vpop.permute.xlu0 %253
  %257 = vset.pattern.permute.xlu0 0
  %258 = vperm.xlu0 %257, %v240
  %v259 = vpop.permute.xlu0 %258
  %v262 = vsel %vm103, %v233, 0
  %v265 = vsel %vm103, %v234, 0
  %v268 = vsel %vm103, %v235, 0
  %v271 = vsel %vm103, %v236, 0
  %273 = vmatprep.subr.mxu0 0.0
  %274 = vmatpush1.msra.mxu0 0.0
  %275 = vmatprep.subr.mxu0 0.0
  %276 = vmatpush1.msra.mxu0 0.0
  %277 = vmatprep.subr.mxu0 0.0
  %278 = vmatpush1.msra.mxu0 0.0
  %279 = vmatprep.subr.mxu0 0.0
  %280 = vmatpush1.msra.mxu0 0.0
  %281 = vmatprep.subr.mxu0 0.0
  %282 = vmatpush1.msra.mxu0 0.0
  %283 = vmatprep.subr.mxu0 0.0
  %284 = vmatpush1.msra.mxu0 0.0
  %285 = vmatprep.subr.mxu0 0.0
  %286 = vmatpush1.msra.mxu0 0.0
  %287 = vmatprep.subr.mxu0 0.0
  %288 = vmatpush1.msra.mxu0 0.0
  %289 = vmatprep.subr.mxu0 0.0
  %290 = vmatpush1.msra.mxu0 0.0
  %291 = vmatprep.subr.mxu0 0.0
  %292 = vmatpush1.msra.mxu0 0.0
  %293 = vmatprep.subr.mxu0 0.0
  %294 = vmatpush1.msra.mxu0 0.0
  %295 = vmatprep.subr.mxu0 0.0
  %296 = vmatpush1.msra.mxu0 0.0
  %297 = vmatprep.subr.mxu0 0.0
  %298 = vmatpush1.msra.mxu0 %v45
  %299 = vmatprep.subr.mxu0 0.0
  %300 = vmatpush1.msra.mxu0 %v44
  %301 = vmatprep.subr.mxu0 0.0
  %302 = vmatpush1.msra.mxu0 %v43
  %303 = vmatprep.subr.mxu0 0.0
  %304 = vmatpush1.msra.mxu0 %v42
  %305 = vmatprep.subr.mxu0 0.0
  %306 = vmatpush2.msra.mxu0 0.0
  %307 = vmatprep.subr.mxu0 0.0
  %308 = vmatpush2.msra.mxu0 0.0
  %309 = vmatprep.subr.mxu0 0.0
  %310 = vmatpush2.msra.mxu0 0.0
  %311 = vmatprep.subr.mxu0 0.0
  %312 = vmatpush2.msra.mxu0 0.0
  %313 = vmatprep.subr.mxu0 0.0
  %314 = vmatpush2.msra.mxu0 0.0
  %315 = vmatprep.subr.mxu0 0.0
  %316 = vmatpush2.msra.mxu0 0.0
  %317 = vmatprep.subr.mxu0 0.0
  %318 = vmatpush2.msra.mxu0 0.0
  %319 = vmatprep.subr.mxu0 0.0
  %320 = vmatpush2.msra.mxu0 0.0
  %321 = vmatprep.subr.mxu0 0.0
  %322 = vmatpush2.msra.mxu0 0.0
  %323 = vmatprep.subr.mxu0 0.0
  %324 = vmatpush2.msra.mxu0 0.0
  %325 = vmatprep.subr.mxu0 0.0
  %326 = vmatpush2.msra.mxu0 0.0
  %327 = vmatprep.subr.mxu0 0.0
  %328 = vmatpush2.msra.mxu0 0.0
  %329 = vmatprep.subr.mxu0 0.0
  %330 = vmatpush2.msra.mxu0 0.0
  %331 = vmatprep.subr.mxu0 0.0
  %332 = vmatpush2.msra.mxu0 0.0
  %333 = vmatprep.subr.mxu0 0.0
  %334 = vmatpush2.msra.mxu0 0.0
  %335 = vmatprep.subr.mxu0 0.0
  %336 = vmatpush2.msra.mxu0 0.0
  %337 = vmatprep.mubr.f32.mxu0 0.0
  %338 = vmatmul.mubr.f32.gmra.mxu0 %v262
  %v339 = vpop.f32.mrf.mxu0
  %v340 = vadd.f32 %v244, %v339
  %v341 = vpop.f32.mrf.mxu0
  %342 = vmatprep.mubr.f32.mxu0 0.0
  %343 = vmatmul.mubr.f32.gmra.mxu0 %v265
  %v344 = vpop.f32.mrf.mxu0
  %v345 = vadd.f32 %v249, %v344
  %v346 = vpop.f32.mrf.mxu0
  %347 = vmatprep.mubr.f32.mxu0 0.0
  %348 = vmatmul.mubr.f32.gmra.mxu0 %v268
  %v349 = vpop.f32.mrf.mxu0
  %v350 = vadd.f32 %v254, %v349
  %v351 = vpop.f32.mrf.mxu0
  %352 = vmatprep.mubr.f32.mxu0 0.0
  %353 = vmatmul.mubr.f32.gmra.mxu0 %v271
  %v354 = vpop.f32.mrf.mxu0
  %v355 = vadd.f32 %v259, %v354
  %v356 = vpop.f32.mrf.mxu0
  %357 = vdwg.mxu0
  %v358 = vlaneseq
  %v359 = vand.u32 %v358, 127
  %vm360 = vcmp.ge.s32.totalorder %v359, 2
  %vm361 = vcmp.lt.s32.totalorder %v359, 16
  %vm362 = vmand %vm360, %vm361
  %v363 = vsel %vm362, 1, 0
  %v364 = vcvt.s32.f32 %v363
  %v365 = vmul.f32 %v340, %v364
  %v366 = vmul.f32 %v345, %v364
  %v367 = vmul.f32 %v350, %v364
  %v368 = vmul.f32 %v355, %v364
  %v369 = vlaneseq
  %v370 = vshrl.u32 %v369, 7
  %vm371 = vcmp.le.s32.totalorder %v359, 6
  %v372 = vsub.s32 %v359, %v370
  %vm373 = vcmp.le.s32.totalorder %v372, 4
  %vm374 = vmand %vm371, %vm373
  %v375 = vsel %vm374, 1, 0
  %v376 = vcvt.s32.f32 %v375
  %v377 = vld [vmem:[%s9] sm:$0xff]
  %v378 = vld [vmem:[%s9 + $0x8] sm:$0xff]
  %v379 = vld [vmem:[%s9 + $0x10] sm:$0xff]
  %v380 = vld [vmem:[%s9 + $0x18] sm:$0xff]
  %v382 = vlaneseq
  %v383 = vshrl.u32 %v382, 7
  %v384 = vsub.s32 0, %v383
  %v385 = vrot.slane %v46, %v384
  %v387 = vmul.f32 %v376, %v385
  %390 = vrot.lane.b32.xlu0 %v195, 126
  %v391 = vpop.permute.xlu0 %390
  %392 = vrot.lane.b32.xlu0 %v200, 126
  %v393 = vpop.permute.xlu0 %392
  %396 = vxpose.xlu0.b32.start [1/16] %v391, 128
  %397 = vxpose.xlu0.b32.cont [2/16] %v393, 128
  %398 = vxpose.xlu0.b32.cont [3/16] 0.0, 128
  %399 = vxpose.xlu0.b32.cont [4/16] 0.0, 128
  %400 = vxpose.xlu0.b32.cont [5/16] 0.0, 128
  %401 = vxpose.xlu0.b32.cont [6/16] 0.0, 128
  %402 = vxpose.xlu0.b32.cont [7/16] 0.0, 128
  %403 = vxpose.xlu0.b32.cont [8/16] 0.0, 128
  %404 = vxpose.xlu0.b32.cont [9/16] 0.0, 128
  %405 = vxpose.xlu0.b32.cont [10/16] 0.0, 128
  %406 = vxpose.xlu0.b32.cont [11/16] 0.0, 128
  %407 = vxpose.xlu0.b32.cont [12/16] 0.0, 128
  %408 = vxpose.xlu0.b32.cont [13/16] 0.0, 128
  %409 = vxpose.xlu0.b32.cont [14/16] 0.0, 128
  %410 = vxpose.xlu0.b32.cont [15/16] 0.0, 128
  %411 = vxpose.xlu0.b32.end [16/16] 0.0, 128
  %v412 = vpop.trf.xlu0
  %v413 = vpop.trf.xlu0
  %v414 = vpop.trf.xlu0
  %v415 = vpop.trf.xlu0
  %v416 = vpop.trf.xlu0
  %v417 = vpop.trf.xlu0
  %v418 = vpop.trf.xlu0
  %v419 = vpop.trf.xlu0
  %v420 = vpop.trf.xlu0
  %v421 = vpop.trf.xlu0
  %v422 = vpop.trf.xlu0
  %v423 = vpop.trf.xlu0
  %v424 = vpop.trf.xlu0
  %v425 = vpop.trf.xlu0
  %v426 = vpop.trf.xlu0
  %v427 = vpop.trf.xlu0
  %vm428 = vcmask 130048
  %v430 = vsel %vm428, %v412, 0
  %432 = vmatprep.subr.mxu0 0.0
  %433 = vmatpush1.msra.mxu0 0.0
  %434 = vmatprep.subr.mxu0 0.0
  %435 = vmatpush1.msra.mxu0 0.0
  %436 = vmatprep.subr.mxu0 0.0
  %437 = vmatpush1.msra.mxu0 0.0
  %438 = vmatprep.subr.mxu0 0.0
  %439 = vmatpush1.msra.mxu0 0.0
  %440 = vmatprep.subr.mxu0 0.0
  %441 = vmatpush1.msra.mxu0 0.0
  %442 = vmatprep.subr.mxu0 0.0
  %443 = vmatpush1.msra.mxu0 0.0
  %444 = vmatprep.subr.mxu0 0.0
  %445 = vmatpush1.msra.mxu0 0.0
  %446 = vmatprep.subr.mxu0 0.0
  %447 = vmatpush1.msra.mxu0 0.0
  %448 = vmatprep.subr.mxu0 0.0
  %449 = vmatpush1.msra.mxu0 0.0
  %450 = vmatprep.subr.mxu0 0.0
  %451 = vmatpush1.msra.mxu0 0.0
  %452 = vmatprep.subr.mxu0 0.0
  %453 = vmatpush1.msra.mxu0 0.0
  %454 = vmatprep.subr.mxu0 0.0
  %455 = vmatpush1.msra.mxu0 0.0
  %456 = vmatprep.subr.mxu0 0.0
  %457 = vmatpush1.msra.mxu0 0.0
  %458 = vmatprep.subr.mxu0 0.0
  %459 = vmatpush1.msra.mxu0 0.0
  %460 = vmatprep.subr.mxu0 0.0
  %461 = vmatpush1.msra.mxu0 %v210
  %462 = vmatprep.subr.mxu0 0.0
  %463 = vmatpush1.msra.mxu0 %v205
  %464 = vmatprep.subr.mxu0 0.0
  %465 = vmatpush2.msra.mxu0 0.0
  %466 = vmatprep.subr.mxu0 0.0
  %467 = vmatpush2.msra.mxu0 0.0
  %468 = vmatprep.subr.mxu0 0.0
  %469 = vmatpush2.msra.mxu0 0.0
  %470 = vmatprep.subr.mxu0 0.0
  %471 = vmatpush2.msra.mxu0 0.0
  %472 = vmatprep.subr.mxu0 0.0
  %473 = vmatpush2.msra.mxu0 0.0
  %474 = vmatprep.subr.mxu0 0.0
  %475 = vmatpush2.msra.mxu0 0.0
  %476 = vmatprep.subr.mxu0 0.0
  %477 = vmatpush2.msra.mxu0 0.0
  %478 = vmatprep.subr.mxu0 0.0
  %479 = vmatpush2.msra.mxu0 0.0
  %480 = vmatprep.subr.mxu0 0.0
  %481 = vmatpush2.msra.mxu0 0.0
  %482 = vmatprep.subr.mxu0 0.0
  %483 = vmatpush2.msra.mxu0 0.0
  %484 = vmatprep.subr.mxu0 0.0
  %485 = vmatpush2.msra.mxu0 0.0
  %486 = vmatprep.subr.mxu0 0.0
  %487 = vmatpush2.msra.mxu0 0.0
  %488 = vmatprep.subr.mxu0 0.0
  %489 = vmatpush2.msra.mxu0 0.0
  %490 = vmatprep.subr.mxu0 0.0
  %491 = vmatpush2.msra.mxu0 0.0
  %492 = vmatprep.subr.mxu0 0.0
  %493 = vmatpush2.msra.mxu0 0.0
  %494 = vmatprep.subr.mxu0 0.0
  %495 = vmatpush2.msra.mxu0 0.0
  %496 = vmatprep.mubr.f32.mxu0 0.0
  %497 = vmatmul.mubr.f32.gmra.mxu0 %v430
  %v498 = vpop.f32.mrf.mxu0
  %v499 = vadd.f32 0.0, %v498
  %v500 = vpop.f32.mrf.mxu0
  %501 = vdwg.mxu0
  %v502 = vmul.f32 %v499, %v387
  %v503 = vmul.f32 %v502, 0.25
  %v504 = vadd.f32 %v387, 1e-06
  %v505 = vlog2.pop %v504
  %v506 = vmul.f32 %v505, 0.6931472
  %v507 = vadd.f32 %v503, %v506
  %vm508 = vcmask 60416
  %v509 = vsel %vm508, %v507, -inf
  %510 = vmax.xlane.f32.xlu0 %v509
  %v511 = vpop.xlane.xlu0 %510
  %v512 = vsub.f32 %v507, %v511
  %v513 = vmul.f32 %v512, 1.442695
  %v514 = vpow.pop %v513
  %v515 = vsel %vm508, %v514, 0.0
  %516 = vadd.xlane.f32.xlu0 %v515
  %v517 = vpop.xlane.xlu0 %516
  %v518 = vrcp.pop %v517
  %v519 = vmul.f32 %v514, %v518
  %vm520 = vcmask 64512
  %v522 = vsel %vm520, %v365, 0
  %v525 = vsel %vm520, %v366, 0
  %v528 = vsel %vm520, %v519, 0
  %530 = vmatprep.subr.mxu0 0.0
  %531 = vmatpush1.xpose.msra.mxu0 0.0
  %532 = vmatprep.subr.mxu0 0.0
  %533 = vmatpush1.xpose.msra.mxu0 0.0
  %534 = vmatprep.subr.mxu0 0.0
  %535 = vmatpush1.xpose.msra.mxu0 0.0
  %536 = vmatprep.subr.mxu0 0.0
  %537 = vmatpush1.xpose.msra.mxu0 0.0
  %538 = vmatprep.subr.mxu0 0.0
  %539 = vmatpush1.xpose.msra.mxu0 0.0
  %540 = vmatprep.subr.mxu0 0.0
  %541 = vmatpush1.xpose.msra.mxu0 0.0
  %542 = vmatprep.subr.mxu0 0.0
  %543 = vmatpush1.xpose.msra.mxu0 0.0
  %544 = vmatprep.subr.mxu0 0.0
  %545 = vmatpush1.xpose.msra.mxu0 0.0
  %546 = vmatprep.subr.mxu0 0.0
  %547 = vmatpush1.xpose.msra.mxu0 0.0
  %548 = vmatprep.subr.mxu0 0.0
  %549 = vmatpush1.xpose.msra.mxu0 0.0
  %550 = vmatprep.subr.mxu0 0.0
  %551 = vmatpush1.xpose.msra.mxu0 0.0
  %552 = vmatprep.subr.mxu0 0.0
  %553 = vmatpush1.xpose.msra.mxu0 0.0
  %554 = vmatprep.subr.mxu0 0.0
  %555 = vmatpush1.xpose.msra.mxu0 0.0
  %556 = vmatprep.subr.mxu0 0.0
  %557 = vmatpush1.xpose.msra.mxu0 0.0
  %558 = vmatprep.subr.mxu0 0.0
  %559 = vmatpush1.xpose.msra.mxu0 0.0
  %560 = vmatprep.subr.mxu0 0.0
  %561 = vmatpush1.xpose.msra.mxu0 %v528
  %562 = vmatprep.subr.mxu0 0.0
  %563 = vmatpush2.xpose.msra.mxu0 0.0
  %564 = vmatprep.subr.mxu0 0.0
  %565 = vmatpush2.xpose.msra.mxu0 0.0
  %566 = vmatprep.subr.mxu0 0.0
  %567 = vmatpush2.xpose.msra.mxu0 0.0
  %568 = vmatprep.subr.mxu0 0.0
  %569 = vmatpush2.xpose.msra.mxu0 0.0
  %570 = vmatprep.subr.mxu0 0.0
  %571 = vmatpush2.xpose.msra.mxu0 0.0
  %572 = vmatprep.subr.mxu0 0.0
  %573 = vmatpush2.xpose.msra.mxu0 0.0
  %574 = vmatprep.subr.mxu0 0.0
  %575 = vmatpush2.xpose.msra.mxu0 0.0
  %576 = vmatprep.subr.mxu0 0.0
  %577 = vmatpush2.xpose.msra.mxu0 0.0
  %578 = vmatprep.subr.mxu0 0.0
  %579 = vmatpush2.xpose.msra.mxu0 0.0
  %580 = vmatprep.subr.mxu0 0.0
  %581 = vmatpush2.xpose.msra.mxu0 0.0
  %582 = vmatprep.subr.mxu0 0.0
  %583 = vmatpush2.xpose.msra.mxu0 0.0
  %584 = vmatprep.subr.mxu0 0.0
  %585 = vmatpush2.xpose.msra.mxu0 0.0
  %586 = vmatprep.subr.mxu0 0.0
  %587 = vmatpush2.xpose.msra.mxu0 0.0
  %588 = vmatprep.subr.mxu0 0.0
  %589 = vmatpush2.xpose.msra.mxu0 0.0
  %590 = vmatprep.subr.mxu0 0.0
  %591 = vmatpush2.xpose.msra.mxu0 0.0
  %592 = vmatprep.subr.mxu0 0.0
  %593 = vmatpush2.xpose.msra.mxu0 0.0
  %594 = vmatprep.mubr.f32.mxu0 0.0
  %595 = vmatmul.mubr.f32.gmra.mxu0 %v522
  %v596 = vpop.f32.mrf.mxu0
  %v597 = vadd.f32 0.0, %v596
  %v598 = vpop.f32.mrf.mxu0
  %599 = vmatprep.mubr.f32.mxu0 0.0
  %600 = vmatmul.mubr.f32.gmra.mxu0 %v525
  %v601 = vpop.f32.mrf.mxu0
  %v602 = vadd.f32 0.0, %v601
  %v603 = vpop.f32.mrf.mxu0
  %604 = vdwg.mxu0
  %vm605 = vcmask 31744
  %606 = vst.msk [vmem:[#allocation2] sm:$0xff] %vm605, %v597
  %607 = vst.msk [vmem:[#allocation2 + $0x8] sm:$0xff] %vm605, %v602
  %608 = vrot.lane.b32.xlu0 %v385, 124
  %v609 = vpop.permute.xlu0 %608
  %v611 = vmul.f32 %v376, %v609
  %612 = vrot.lane.b32.xlu0 %v195, 122
  %v613 = vpop.permute.xlu0 %612
  %614 = vrot.lane.b32.xlu0 %v200, 122
  %v615 = vpop.permute.xlu0 %614
  %618 = vxpose.xlu0.b32.start [1/16] %v613, 128
  %619 = vxpose.xlu0.b32.cont [2/16] %v615, 128
  %620 = vxpose.xlu0.b32.cont [3/16] 0.0, 128
  %621 = vxpose.xlu0.b32.cont [4/16] 0.0, 128
  %622 = vxpose.xlu0.b32.cont [5/16] 0.0, 128
  %623 = vxpose.xlu0.b32.cont [6/16] 0.0, 128
  %624 = vxpose.xlu0.b32.cont [7/16] 0.0, 128
  %625 = vxpose.xlu0.b32.cont [8/16] 0.0, 128
  %626 = vxpose.xlu0.b32.cont [9/16] 0.0, 128
  %627 = vxpose.xlu0.b32.cont [10/16] 0.0, 128
  %628 = vxpose.xlu0.b32.cont [11/16] 0.0, 128
  %629 = vxpose.xlu0.b32.cont [12/16] 0.0, 128
  %630 = vxpose.xlu0.b32.cont [13/16] 0.0, 128
  %631 = vxpose.xlu0.b32.cont [14/16] 0.0, 128
  %632 = vxpose.xlu0.b32.cont [15/16] 0.0, 128
  %633 = vxpose.xlu0.b32.end [16/16] 0.0, 128
  %v634 = vpop.trf.xlu0
  %v635 = vpop.trf.xlu0
  %v636 = vpop.trf.xlu0
  %v637 = vpop.trf.xlu0
  %v638 = vpop.trf.xlu0
  %v639 = vpop.trf.xlu0
  %v640 = vpop.trf.xlu0
  %v641 = vpop.trf.xlu0
  %v642 = vpop.trf.xlu0
  %v643 = vpop.trf.xlu0
  %v644 = vpop.trf.xlu0
  %v645 = vpop.trf.xlu0
  %v646 = vpop.trf.xlu0
  %v647 = vpop.trf.xlu0
  %v648 = vpop.trf.xlu0
  %v649 = vpop.trf.xlu0
  %652 = vrot.lane.b32.xlu0 %v205, 124
  %v653 = vpop.permute.xlu0 %652
  %654 = vrot.lane.b32.xlu0 %v210, 124
  %v655 = vpop.permute.xlu0 %654
  %v659 = vsel %vm428, %v634, 0
  %661 = vmatprep.subr.mxu0 0.0
  %662 = vmatpush1.msra.mxu0 0.0
  %663 = vmatprep.subr.mxu0 0.0
  %664 = vmatpush1.msra.mxu0 0.0
  %665 = vmatprep.subr.mxu0 0.0
  %666 = vmatpush1.msra.mxu0 0.0
  %667 = vmatprep.subr.mxu0 0.0
  %668 = vmatpush1.msra.mxu0 0.0
  %669 = vmatprep.subr.mxu0 0.0
  %670 = vmatpush1.msra.mxu0 0.0
  %671 = vmatprep.subr.mxu0 0.0
  %672 = vmatpush1.msra.mxu0 0.0
  %673 = vmatprep.subr.mxu0 0.0
  %674 = vmatpush1.msra.mxu0 0.0
  %675 = vmatprep.subr.mxu0 0.0
  %676 = vmatpush1.msra.mxu0 0.0
  %677 = vmatprep.subr.mxu0 0.0
  %678 = vmatpush1.msra.mxu0 0.0
  %679 = vmatprep.subr.mxu0 0.0
  %680 = vmatpush1.msra.mxu0 0.0
  %681 = vmatprep.subr.mxu0 0.0
  %682 = vmatpush1.msra.mxu0 0.0
  %683 = vmatprep.subr.mxu0 0.0
  %684 = vmatpush1.msra.mxu0 0.0
  %685 = vmatprep.subr.mxu0 0.0
  %686 = vmatpush1.msra.mxu0 0.0
  %687 = vmatprep.subr.mxu0 0.0
  %688 = vmatpush1.msra.mxu0 0.0
  %689 = vmatprep.subr.mxu0 0.0
  %690 = vmatpush1.msra.mxu0 %v655
  %691 = vmatprep.subr.mxu0 0.0
  %692 = vmatpush1.msra.mxu0 %v653
  %693 = vmatprep.subr.mxu0 0.0
  %694 = vmatpush2.msra.mxu0 0.0
  %695 = vmatprep.subr.mxu0 0.0
  %696 = vmatpush2.msra.mxu0 0.0
  %697 = vmatprep.subr.mxu0 0.0
  %698 = vmatpush2.msra.mxu0 0.0
  %699 = vmatprep.subr.mxu0 0.0
  %700 = vmatpush2.msra.mxu0 0.0
  %701 = vmatprep.subr.mxu0 0.0
  %702 = vmatpush2.msra.mxu0 0.0
  %703 = vmatprep.subr.mxu0 0.0
  %704 = vmatpush2.msra.mxu0 0.0
  %705 = vmatprep.subr.mxu0 0.0
  %706 = vmatpush2.msra.mxu0 0.0
  %707 = vmatprep.subr.mxu0 0.0
  %708 = vmatpush2.msra.mxu0 0.0
  %709 = vmatprep.subr.mxu0 0.0
  %710 = vmatpush2.msra.mxu0 0.0
  %711 = vmatprep.subr.mxu0 0.0
  %712 = vmatpush2.msra.mxu0 0.0
  %713 = vmatprep.subr.mxu0 0.0
  %714 = vmatpush2.msra.mxu0 0.0
  %715 = vmatprep.subr.mxu0 0.0
  %716 = vmatpush2.msra.mxu0 0.0
  %717 = vmatprep.subr.mxu0 0.0
  %718 = vmatpush2.msra.mxu0 0.0
  %719 = vmatprep.subr.mxu0 0.0
  %720 = vmatpush2.msra.mxu0 0.0
  %721 = vmatprep.subr.mxu0 0.0
  %722 = vmatpush2.msra.mxu0 0.0
  %723 = vmatprep.subr.mxu0 0.0
  %724 = vmatpush2.msra.mxu0 0.0
  %725 = vmatprep.mubr.f32.mxu0 0.0
  %726 = vmatmul.mubr.f32.gmra.mxu0 %v659
  %v727 = vpop.f32.mrf.mxu0
  %v728 = vadd.f32 0.0, %v727
  %v729 = vpop.f32.mrf.mxu0
  %730 = vdwg.mxu0
  %v731 = vmul.f32 %v728, %v611
  %v732 = vmul.f32 %v731, 0.25
  %v733 = vadd.f32 %v611, 1e-06
  %v734 = vlog2.pop %v733
  %v735 = vmul.f32 %v734, 0.6931472
  %v736 = vadd.f32 %v732, %v735
  %v737 = vsel %vm508, %v736, -inf
  %738 = vmax.xlane.f32.xlu0 %v737
  %v739 = vpop.xlane.xlu0 %738
  %v740 = vsub.f32 %v736, %v739
  %v741 = vmul.f32 %v740, 1.442695
  %v742 = vpow.pop %v741
  %v743 = vsel %vm508, %v742, 0.0
  %744 = vadd.xlane.f32.xlu0 %v743
  %v745 = vpop.xlane.xlu0 %744
  %v746 = vrcp.pop %v745
  %v747 = vmul.f32 %v742, %v746
  %748 = vrot.lane.b32.xlu0 %v365, 124
  %v749 = vpop.permute.xlu0 %748
  %750 = vrot.lane.b32.xlu0 %v366, 124
  %v751 = vpop.permute.xlu0 %750
  %v752 = vsel %vm520, %v749, 0
  %v754 = vsel %vm520, %v751, 0
  %v757 = vsel %vm520, %v747, 0
  %759 = vmatprep.subr.mxu0 0.0
  %760 = vmatpush1.xpose.msra.mxu0 0.0
  %761 = vmatprep.subr.mxu0 0.0
  %762 = vmatpush1.xpose.msra.mxu0 0.0
  %763 = vmatprep.subr.mxu0 0.0
  %764 = vmatpush1.xpose.msra.mxu0 0.0
  %765 = vmatprep.subr.mxu0 0.0
  %766 = vmatpush1.xpose.msra.mxu0 0.0
  %767 = vmatprep.subr.mxu0 0.0
  %768 = vmatpush1.xpose.msra.mxu0 0.0
  %769 = vmatprep.subr.mxu0 0.0
  %770 = vmatpush1.xpose.msra.mxu0 0.0
  %771 = vmatprep.subr.mxu0 0.0
  %772 = vmatpush1.xpose.msra.mxu0 0.0
  %773 = vmatprep.subr.mxu0 0.0
  %774 = vmatpush1.xpose.msra.mxu0 0.0
  %775 = vmatprep.subr.mxu0 0.0
  %776 = vmatpush1.xpose.msra.mxu0 0.0
  %777 = vmatprep.subr.mxu0 0.0
  %778 = vmatpush1.xpose.msra.mxu0 0.0
  %779 = vmatprep.subr.mxu0 0.0
  %780 = vmatpush1.xpose.msra.mxu0 0.0
  %781 = vmatprep.subr.mxu0 0.0
  %782 = vmatpush1.xpose.msra.mxu0 0.0
  %783 = vmatprep.subr.mxu0 0.0
  %784 = vmatpush1.xpose.msra.mxu0 0.0
  %785 = vmatprep.subr.mxu0 0.0
  %786 = vmatpush1.xpose.msra.mxu0 0.0
  %787 = vmatprep.subr.mxu0 0.0
  %788 = vmatpush1.xpose.msra.mxu0 0.0
  %789 = vmatprep.subr.mxu0 0.0
  %790 = vmatpush1.xpose.msra.mxu0 %v757
  %791 = vmatprep.subr.mxu0 0.0
  %792 = vmatpush2.xpose.msra.mxu0 0.0
  %793 = vmatprep.subr.mxu0 0.0
  %794 = vmatpush2.xpose.msra.mxu0 0.0
  %795 = vmatprep.subr.mxu0 0.0
  %796 = vmatpush2.xpose.msra.mxu0 0.0
  %797 = vmatprep.subr.mxu0 0.0
  %798 = vmatpush2.xpose.msra.mxu0 0.0
  %799 = vmatprep.subr.mxu0 0.0
  %800 = vmatpush2.xpose.msra.mxu0 0.0
  %801 = vmatprep.subr.mxu0 0.0
  %802 = vmatpush2.xpose.msra.mxu0 0.0
  %803 = vmatprep.subr.mxu0 0.0
  %804 = vmatpush2.xpose.msra.mxu0 0.0
  %805 = vmatprep.subr.mxu0 0.0
  %806 = vmatpush2.xpose.msra.mxu0 0.0
  %807 = vmatprep.subr.mxu0 0.0
  %808 = vmatpush2.xpose.msra.mxu0 0.0
  %809 = vmatprep.subr.mxu0 0.0
  %810 = vmatpush2.xpose.msra.mxu0 0.0
  %811 = vmatprep.subr.mxu0 0.0
  %812 = vmatpush2.xpose.msra.mxu0 0.0
  %813 = vmatprep.subr.mxu0 0.0
  %814 = vmatpush2.xpose.msra.mxu0 0.0
  %815 = vmatprep.subr.mxu0 0.0
  %816 = vmatpush2.xpose.msra.mxu0 0.0
  %817 = vmatprep.subr.mxu0 0.0
  %818 = vmatpush2.xpose.msra.mxu0 0.0
  %819 = vmatprep.subr.mxu0 0.0
  %820 = vmatpush2.xpose.msra.mxu0 0.0
  %821 = vmatprep.subr.mxu0 0.0
  %822 = vmatpush2.xpose.msra.mxu0 0.0
  %823 = vmatprep.mubr.f32.mxu0 0.0
  %824 = vmatmul.mubr.f32.gmra.mxu0 %v752
  %v825 = vpop.f32.mrf.mxu0
  %v826 = vadd.f32 0.0, %v825
  %v827 = vpop.f32.mrf.mxu0
  %828 = vmatprep.mubr.f32.mxu0 0.0
  %829 = vmatmul.mubr.f32.gmra.mxu0 %v754
  %v830 = vpop.f32.mrf.mxu0
  %v831 = vadd.f32 0.0, %v830
  %v832 = vpop.f32.mrf.mxu0
  %833 = vdwg.mxu0
  %836 = vrot.lane.b32.xlu0 %v826, 4
  %v837 = vpop.permute.xlu0 %836
  %838 = vrot.lane.b32.xlu0 %v831, 4
  %v839 = vpop.permute.xlu0 %838
  %vm842 = vcmask 64544
  %843 = vst.msk [vmem:[#allocation2] sm:$0xff] %vm842, %v837
  %844 = vst.msk [vmem:[#allocation2 + $0x8] sm:$0xff] %vm842, %v839
  %845 = vrot.lane.b32.xlu0 %v385, 120
  %v846 = vpop.permute.xlu0 %845
  %v848 = vmul.f32 %v376, %v846
  %849 = vrot.lane.b32.xlu0 %v195, 118
  %v850 = vpop.permute.xlu0 %849
  %851 = vrot.lane.b32.xlu0 %v200, 118
  %v852 = vpop.permute.xlu0 %851
  %855 = vxpose.xlu0.b32.start [1/16] %v850, 128
  %856 = vxpose.xlu0.b32.cont [2/16] %v852, 128
  %857 = vxpose.xlu0.b32.cont [3/16] 0.0, 128
  %858 = vxpose.xlu0.b32.cont [4/16] 0.0, 128
  %859 = vxpose.xlu0.b32.cont [5/16] 0.0, 128
  %860 = vxpose.xlu0.b32.cont [6/16] 0.0, 128
  %861 = vxpose.xlu0.b32.cont [7/16] 0.0, 128
  %862 = vxpose.xlu0.b32.cont [8/16] 0.0, 128
  %863 = vxpose.xlu0.b32.cont [9/16] 0.0, 128
  %864 = vxpose.xlu0.b32.cont [10/16] 0.0, 128
  %865 = vxpose.xlu0.b32.cont [11/16] 0.0, 128
  %866 = vxpose.xlu0.b32.cont [12/16] 0.0, 128
  %867 = vxpose.xlu0.b32.cont [13/16] 0.0, 128
  %868 = vxpose.xlu0.b32.cont [14/16] 0.0, 128
  %869 = vxpose.xlu0.b32.cont [15/16] 0.0, 128
  %870 = vxpose.xlu0.b32.end [16/16] 0.0, 128
  %v871 = vpop.trf.xlu0
  %v872 = vpop.trf.xlu0
  %v873 = vpop.trf.xlu0
  %v874 = vpop.trf.xlu0
  %v875 = vpop.trf.xlu0
  %v876 = vpop.trf.xlu0
  %v877 = vpop.trf.xlu0
  %v878 = vpop.trf.xlu0
  %v879 = vpop.trf.xlu0
  %v880 = vpop.trf.xlu0
  %v881 = vpop.trf.xlu0
  %v882 = vpop.trf.xlu0
  %v883 = vpop.trf.xlu0
  %v884 = vpop.trf.xlu0
  %v885 = vpop.trf.xlu0
  %v886 = vpop.trf.xlu0
  %887 = vrot.lane.b32.xlu0 %v205, 120
  %v888 = vpop.permute.xlu0 %887
  %889 = vrot.lane.b32.xlu0 %v210, 120
  %v890 = vpop.permute.xlu0 %889
  %v894 = vsel %vm428, %v871, 0
  %896 = vmatprep.subr.mxu0 0.0
  %897 = vmatpush1.msra.mxu0 0.0
  %898 = vmatprep.subr.mxu0 0.0
  %899 = vmatpush1.msra.mxu0 0.0
  %900 = vmatprep.subr.mxu0 0.0
  %901 = vmatpush1.msra.mxu0 0.0
  %902 = vmatprep.subr.mxu0 0.0
  %903 = vmatpush1.msra.mxu0 0.0
  %904 = vmatprep.subr.mxu0 0.0
  %905 = vmatpush1.msra.mxu0 0.0
  %906 = vmatprep.subr.mxu0 0.0
  %907 = vmatpush1.msra.mxu0 0.0
  %908 = vmatprep.subr.mxu0 0.0
  %909 = vmatpush1.msra.mxu0 0.0
  %910 = vmatprep.subr.mxu0 0.0
  %911 = vmatpush1.msra.mxu0 0.0
  %912 = vmatprep.subr.mxu0 0.0
  %913 = vmatpush1.msra.mxu0 0.0
  %914 = vmatprep.subr.mxu0 0.0
  %915 = vmatpush1.msra.mxu0 0.0
  %916 = vmatprep.subr.mxu0 0.0
  %917 = vmatpush1.msra.mxu0 0.0
  %918 = vmatprep.subr.mxu0 0.0
  %919 = vmatpush1.msra.mxu0 0.0
  %920 = vmatprep.subr.mxu0 0.0
  %921 = vmatpush1.msra.mxu0 0.0
  %922 = vmatprep.subr.mxu0 0.0
  %923 = vmatpush1.msra.mxu0 0.0
  %924 = vmatprep.subr.mxu0 0.0
  %925 = vmatpush1.msra.mxu0 %v890
  %926 = vmatprep.subr.mxu0 0.0
  %927 = vmatpush1.msra.mxu0 %v888
  %928 = vmatprep.subr.mxu0 0.0
  %929 = vmatpush2.msra.mxu0 0.0
  %930 = vmatprep.subr.mxu0 0.0
  %931 = vmatpush2.msra.mxu0 0.0
  %932 = vmatprep.subr.mxu0 0.0
  %933 = vmatpush2.msra.mxu0 0.0
  %934 = vmatprep.subr.mxu0 0.0
  %935 = vmatpush2.msra.mxu0 0.0
  %936 = vmatprep.subr.mxu0 0.0
  %937 = vmatpush2.msra.mxu0 0.0
  %938 = vmatprep.subr.mxu0 0.0
  %939 = vmatpush2.msra.mxu0 0.0
  %940 = vmatprep.subr.mxu0 0.0
  %941 = vmatpush2.msra.mxu0 0.0
  %942 = vmatprep.subr.mxu0 0.0
  %943 = vmatpush2.msra.mxu0 0.0
  %944 = vmatprep.subr.mxu0 0.0
  %945 = vmatpush2.msra.mxu0 0.0
  %946 = vmatprep.subr.mxu0 0.0
  %947 = vmatpush2.msra.mxu0 0.0
  %948 = vmatprep.subr.mxu0 0.0
  %949 = vmatpush2.msra.mxu0 0.0
  %950 = vmatprep.subr.mxu0 0.0
  %951 = vmatpush2.msra.mxu0 0.0
  %952 = vmatprep.subr.mxu0 0.0
  %953 = vmatpush2.msra.mxu0 0.0
  %954 = vmatprep.subr.mxu0 0.0
  %955 = vmatpush2.msra.mxu0 0.0
  %956 = vmatprep.subr.mxu0 0.0
  %957 = vmatpush2.msra.mxu0 0.0
  %958 = vmatprep.subr.mxu0 0.0
  %959 = vmatpush2.msra.mxu0 0.0
  %960 = vmatprep.mubr.f32.mxu0 0.0
  %961 = vmatmul.mubr.f32.gmra.mxu0 %v894
  %v962 = vpop.f32.mrf.mxu0
  %v963 = vadd.f32 0.0, %v962
  %v964 = vpop.f32.mrf.mxu0
  %965 = vdwg.mxu0
  %v966 = vmul.f32 %v963, %v848
  %v967 = vmul.f32 %v966, 0.25
  %v968 = vadd.f32 %v848, 1e-06
  %v969 = vlog2.pop %v968
  %v970 = vmul.f32 %v969, 0.6931472
  %v971 = vadd.f32 %v967, %v970
  %v972 = vsel %vm508, %v971, -inf
  %973 = vmax.xlane.f32.xlu0 %v972
  %v974 = vpop.xlane.xlu0 %973
  %v975 = vsub.f32 %v971, %v974
  %v976 = vmul.f32 %v975, 1.442695
  %v977 = vpow.pop %v976
  %v978 = vsel %vm508, %v977, 0.0
  %979 = vadd.xlane.f32.xlu0 %v978
  %v980 = vpop.xlane.xlu0 %979
  %v981 = vrcp.pop %v980
  %v982 = vmul.f32 %v977, %v981
  %983 = vrot.lane.b32.xlu0 %v365, 120
  %v984 = vpop.permute.xlu0 %983
  %985 = vrot.lane.b32.xlu0 %v366, 120
  %v986 = vpop.permute.xlu0 %985
  %v987 = vsel %vm520, %v984, 0
  %v989 = vsel %vm520, %v986, 0
  %v992 = vsel %vm520, %v982, 0
  %994 = vmatprep.subr.mxu0 0.0
  %995 = vmatpush1.xpose.msra.mxu0 0.0
  %996 = vmatprep.subr.mxu0 0.0
  %997 = vmatpush1.xpose.msra.mxu0 0.0
  %998 = vmatprep.subr.mxu0 0.0
  %999 = vmatpush1.xpose.msra.mxu0 0.0
  %1000 = vmatprep.subr.mxu0 0.0
  %1001 = vmatpush1.xpose.msra.mxu0 0.0
  %1002 = vmatprep.subr.mxu0 0.0
  %1003 = vmatpush1.xpose.msra.mxu0 0.0
  %1004 = vmatprep.subr.mxu0 0.0
  %1005 = vmatpush1.xpose.msra.mxu0 0.0
  %1006 = vmatprep.subr.mxu0 0.0
  %1007 = vmatpush1.xpose.msra.mxu0 0.0
  %1008 = vmatprep.subr.mxu0 0.0
  %1009 = vmatpush1.xpose.msra.mxu0 0.0
  %1010 = vmatprep.subr.mxu0 0.0
  %1011 = vmatpush1.xpose.msra.mxu0 0.0
  %1012 = vmatprep.subr.mxu0 0.0
  %1013 = vmatpush1.xpose.msra.mxu0 0.0
  %1014 = vmatprep.subr.mxu0 0.0
  %1015 = vmatpush1.xpose.msra.mxu0 0.0
  %1016 = vmatprep.subr.mxu0 0.0
  %1017 = vmatpush1.xpose.msra.mxu0 0.0
  %1018 = vmatprep.subr.mxu0 0.0
  %1019 = vmatpush1.xpose.msra.mxu0 0.0
  %1020 = vmatprep.subr.mxu0 0.0
  %1021 = vmatpush1.xpose.msra.mxu0 0.0
  %1022 = vmatprep.subr.mxu0 0.0
  %1023 = vmatpush1.xpose.msra.mxu0 0.0
  %1024 = vmatprep.subr.mxu0 0.0
  %1025 = vmatpush1.xpose.msra.mxu0 %v992
  %1026 = vmatprep.subr.mxu0 0.0
  %1027 = vmatpush2.xpose.msra.mxu0 0.0
  %1028 = vmatprep.subr.mxu0 0.0
  %1029 = vmatpush2.xpose.msra.mxu0 0.0
  %1030 = vmatprep.subr.mxu0 0.0
  %1031 = vmatpush2.xpose.msra.mxu0 0.0
  %1032 = vmatprep.subr.mxu0 0.0
  %1033 = vmatpush2.xpose.msra.mxu0 0.0
  %1034 = vmatprep.subr.mxu0 0.0
  %1035 = vmatpush2.xpose.msra.mxu0 0.0
  %1036 = vmatprep.subr.mxu0 0.0
  %1037 = vmatpush2.xpose.msra.mxu0 0.0
  %1038 = vmatprep.subr.mxu0 0.0
  %1039 = vmatpush2.xpose.msra.mxu0 0.0
  %1040 = vmatprep.subr.mxu0 0.0
  %1041 = vmatpush2.xpose.msra.mxu0 0.0
  %1042 = vmatprep.subr.mxu0 0.0
  %1043 = vmatpush2.xpose.msra.mxu0 0.0
  %1044 = vmatprep.subr.mxu0 0.0
  %1045 = vmatpush2.xpose.msra.mxu0 0.0
  %1046 = vmatprep.subr.mxu0 0.0
  %1047 = vmatpush2.xpose.msra.mxu0 0.0
  %1048 = vmatprep.subr.mxu0 0.0
  %1049 = vmatpush2.xpose.msra.mxu0 0.0
  %1050 = vmatprep.subr.mxu0 0.0
  %1051 = vmatpush2.xpose.msra.mxu0 0.0
  %1052 = vmatprep.subr.mxu0 0.0
  %1053 = vmatpush2.xpose.msra.mxu0 0.0
  %1054 = vmatprep.subr.mxu0 0.0
  %1055 = vmatpush2.xpose.msra.mxu0 0.0
  %1056 = vmatprep.subr.mxu0 0.0
  %1057 = vmatpush2.xpose.msra.mxu0 0.0
  %1058 = vmatprep.mubr.f32.mxu0 0.0
  %1059 = vmatmul.mubr.f32.gmra.mxu0 %v987
  %v1060 = vpop.f32.mrf.mxu0
  %v1061 = vadd.f32 0.0, %v1060
  %v1062 = vpop.f32.mrf.mxu0
  %1063 = vmatprep.mubr.f32.mxu0 0.0
  %1064 = vmatmul.mubr.f32.gmra.mxu0 %v989
  %v1065 = vpop.f32.mrf.mxu0
  %v1066 = vadd.f32 0.0, %v1065
  %v1067 = vpop.f32.mrf.mxu0
  %1068 = vdwg.mxu0
  %1071 = vrot.lane.b32.xlu0 %v1061, 8
  %v1072 = vpop.permute.xlu0 %1071
  %1073 = vrot.lane.b32.xlu0 %v1066, 8
  %v1074 = vpop.permute.xlu0 %1073
  %vm1077 = vcmask 97344
  %1078 = vst.msk [vmem:[#allocation2] sm:$0xff] %vm1077, %v1072
  %1079 = vst.msk [vmem:[#allocation2 + $0x8] sm:$0xff] %vm1077, %v1074
  %1080 = vrot.lane.b32.xlu0 %v385, 116
  %v1081 = vpop.permute.xlu0 %1080
  %v1083 = vmul.f32 %v376, %v1081
  %1084 = vrot.lane.b32.xlu0 %v195, 114
  %v1085 = vpop.permute.xlu0 %1084
  %1086 = vrot.lane.b32.xlu0 %v200, 114
  %v1087 = vpop.permute.xlu0 %1086
  %1090 = vxpose.xlu0.b32.start [1/16] %v1085, 128
  %1091 = vxpose.xlu0.b32.cont [2/16] %v1087, 128
  %1092 = vxpose.xlu0.b32.cont [3/16] 0.0, 128
  %1093 = vxpose.xlu0.b32.cont [4/16] 0.0, 128
  %1094 = vxpose.xlu0.b32.cont [5/16] 0.0, 128
  %1095 = vxpose.xlu0.b32.cont [6/16] 0.0, 128
  %1096 = vxpose.xlu0.b32.cont [7/16] 0.0, 128
  %1097 = vxpose.xlu0.b32.cont [8/16] 0.0, 128
  %1098 = vxpose.xlu0.b32.cont [9/16] 0.0, 128
  %1099 = vxpose.xlu0.b32.cont [10/16] 0.0, 128
  %1100 = vxpose.xlu0.b32.cont [11/16] 0.0, 128
  %1101 = vxpose.xlu0.b32.cont [12/16] 0.0, 128
  %1102 = vxpose.xlu0.b32.cont [13/16] 0.0, 128
  %1103 = vxpose.xlu0.b32.cont [14/16] 0.0, 128
  %1104 = vxpose.xlu0.b32.cont [15/16] 0.0, 128
  %1105 = vxpose.xlu0.b32.end [16/16] 0.0, 128
  %v1106 = vpop.trf.xlu0
  %v1107 = vpop.trf.xlu0
  %v1108 = vpop.trf.xlu0
  %v1109 = vpop.trf.xlu0
  %v1110 = vpop.trf.xlu0
  %v1111 = vpop.trf.xlu0
  %v1112 = vpop.trf.xlu0
  %v1113 = vpop.trf.xlu0
  %v1114 = vpop.trf.xlu0
  %v1115 = vpop.trf.xlu0
  %v1116 = vpop.trf.xlu0
  %v1117 = vpop.trf.xlu0
  %v1118 = vpop.trf.xlu0
  %v1119 = vpop.trf.xlu0
  %v1120 = vpop.trf.xlu0
  %v1121 = vpop.trf.xlu0
  %1122 = vrot.lane.b32.xlu0 %v205, 116
  %v1123 = vpop.permute.xlu0 %1122
  %1124 = vrot.lane.b32.xlu0 %v210, 116
  %v1125 = vpop.permute.xlu0 %1124
  %v1129 = vsel %vm428, %v1106, 0
  %1131 = vmatprep.subr.mxu0 0.0
  %1132 = vmatpush1.msra.mxu0 0.0
  %1133 = vmatprep.subr.mxu0 0.0
  %1134 = vmatpush1.msra.mxu0 0.0
  %1135 = vmatprep.subr.mxu0 0.0
  %1136 = vmatpush1.msra.mxu0 0.0
  %1137 = vmatprep.subr.mxu0 0.0
  %1138 = vmatpush1.msra.mxu0 0.0
  %1139 = vmatprep.subr.mxu0 0.0
  %1140 = vmatpush1.msra.mxu0 0.0
  %1141 = vmatprep.subr.mxu0 0.0
  %1142 = vmatpush1.msra.mxu0 0.0
  %1143 = vmatprep.subr.mxu0 0.0
  %1144 = vmatpush1.msra.mxu0 0.0
  %1145 = vmatprep.subr.mxu0 0.0
  %1146 = vmatpush1.msra.mxu0 0.0
  %1147 = vmatprep.subr.mxu0 0.0
  %1148 = vmatpush1.msra.mxu0 0.0
  %1149 = vmatprep.subr.mxu0 0.0
  %1150 = vmatpush1.msra.mxu0 0.0
  %1151 = vmatprep.subr.mxu0 0.0
  %1152 = vmatpush1.msra.mxu0 0.0
  %1153 = vmatprep.subr.mxu0 0.0
  %1154 = vmatpush1.msra.mxu0 0.0
  %1155 = vmatprep.subr.mxu0 0.0
  %1156 = vmatpush1.msra.mxu0 0.0
  %1157 = vmatprep.subr.mxu0 0.0
  %1158 = vmatpush1.msra.mxu0 0.0
  %1159 = vmatprep.subr.mxu0 0.0
  %1160 = vmatpush1.msra.mxu0 %v1125
  %1161 = vmatprep.subr.mxu0 0.0
  %1162 = vmatpush1.msra.mxu0 %v1123
  %1163 = vmatprep.subr.mxu0 0.0
  %1164 = vmatpush2.msra.mxu0 0.0
  %1165 = vmatprep.subr.mxu0 0.0
  %1166 = vmatpush2.msra.mxu0 0.0
  %1167 = vmatprep.subr.mxu0 0.0
  %1168 = vmatpush2.msra.mxu0 0.0
  %1169 = vmatprep.subr.mxu0 0.0
  %1170 = vmatpush2.msra.mxu0 0.0
  %1171 = vmatprep.subr.mxu0 0.0
  %1172 = vmatpush2.msra.mxu0 0.0
  %1173 = vmatprep.subr.mxu0 0.0
  %1174 = vmatpush2.msra.mxu0 0.0
  %1175 = vmatprep.subr.mxu0 0.0
  %1176 = vmatpush2.msra.mxu0 0.0
  %1177 = vmatprep.subr.mxu0 0.0
  %1178 = vmatpush2.msra.mxu0 0.0
  %1179 = vmatprep.subr.mxu0 0.0
  %1180 = vmatpush2.msra.mxu0 0.0
  %1181 = vmatprep.subr.mxu0 0.0
  %1182 = vmatpush2.msra.mxu0 0.0
  %1183 = vmatprep.subr.mxu0 0.0
  %1184 = vmatpush2.msra.mxu0 0.0
  %1185 = vmatprep.subr.mxu0 0.0
  %1186 = vmatpush2.msra.mxu0 0.0
  %1187 = vmatprep.subr.mxu0 0.0
  %1188 = vmatpush2.msra.mxu0 0.0
  %1189 = vmatprep.subr.mxu0 0.0
  %1190 = vmatpush2.msra.mxu0 0.0
  %1191 = vmatprep.subr.mxu0 0.0
  %1192 = vmatpush2.msra.mxu0 0.0
  %1193 = vmatprep.subr.mxu0 0.0
  %1194 = vmatpush2.msra.mxu0 0.0
  %1195 = vmatprep.mubr.f32.mxu0 0.0
  %1196 = vmatmul.mubr.f32.gmra.mxu0 %v1129
  %v1197 = vpop.f32.mrf.mxu0
  %v1198 = vadd.f32 0.0, %v1197
  %v1199 = vpop.f32.mrf.mxu0
  %1200 = vdwg.mxu0
  %v1201 = vmul.f32 %v1198, %v1083
  %v1202 = vmul.f32 %v1201, 0.25
  %v1203 = vadd.f32 %v1083, 1e-06
  %v1204 = vlog2.pop %v1203
  %v1205 = vmul.f32 %v1204, 0.6931472
  %v1206 = vadd.f32 %v1202, %v1205
  %v1207 = vsel %vm508, %v1206, -inf
  %1208 = vmax.xlane.f32.xlu0 %v1207
  %v1209 = vpop.xlane.xlu0 %1208
  %v1210 = vsub.f32 %v1206, %v1209
  %v1211 = vmul.f32 %v1210, 1.442695
  %v1212 = vpow.pop %v1211
  %v1213 = vsel %vm508, %v1212, 0.0
  %1214 = vadd.xlane.f32.xlu0 %v1213
  %v1215 = vpop.xlane.xlu0 %1214
  %v1216 = vrcp.pop %v1215
  %v1217 = vmul.f32 %v1212, %v1216
  %1218 = vrot.lane.b32.xlu0 %v365, 116
  %v1219 = vpop.permute.xlu0 %1218
  %1220 = vrot.lane.b32.xlu0 %v366, 116
  %v1221 = vpop.permute.xlu0 %1220
  %v1222 = vsel %vm520, %v1219, 0
  %v1224 = vsel %vm520, %v1221, 0
  %v1227 = vsel %vm520, %v1217, 0
  %1229 = vmatprep.subr.mxu0 0.0
  %1230 = vmatpush1.xpose.msra.mxu0 0.0
  %1231 = vmatprep.subr.mxu0 0.0
  %1232 = vmatpush1.xpose.msra.mxu0 0.0
  %1233 = vmatprep.subr.mxu0 0.0
  %1234 = vmatpush1.xpose.msra.mxu0 0.0
  %1235 = vmatprep.subr.mxu0 0.0
  %1236 = vmatpush1.xpose.msra.mxu0 0.0
  %1237 = vmatprep.subr.mxu0 0.0
  %1238 = vmatpush1.xpose.msra.mxu0 0.0
  %1239 = vmatprep.subr.mxu0 0.0
  %1240 = vmatpush1.xpose.msra.mxu0 0.0
  %1241 = vmatprep.subr.mxu0 0.0
  %1242 = vmatpush1.xpose.msra.mxu0 0.0
  %1243 = vmatprep.subr.mxu0 0.0
  %1244 = vmatpush1.xpose.msra.mxu0 0.0
  %1245 = vmatprep.subr.mxu0 0.0
  %1246 = vmatpush1.xpose.msra.mxu0 0.0
  %1247 = vmatprep.subr.mxu0 0.0
  %1248 = vmatpush1.xpose.msra.mxu0 0.0
  %1249 = vmatprep.subr.mxu0 0.0
  %1250 = vmatpush1.xpose.msra.mxu0 0.0
  %1251 = vmatprep.subr.mxu0 0.0
  %1252 = vmatpush1.xpose.msra.mxu0 0.0
  %1253 = vmatprep.subr.mxu0 0.0
  %1254 = vmatpush1.xpose.msra.mxu0 0.0
  %1255 = vmatprep.subr.mxu0 0.0
  %1256 = vmatpush1.xpose.msra.mxu0 0.0
  %1257 = vmatprep.subr.mxu0 0.0
  %1258 = vmatpush1.xpose.msra.mxu0 0.0
  %1259 = vmatprep.subr.mxu0 0.0
  %1260 = vmatpush1.xpose.msra.mxu0 %v1227
  %1261 = vmatprep.subr.mxu0 0.0
  %1262 = vmatpush2.xpose.msra.mxu0 0.0
  %1263 = vmatprep.subr.mxu0 0.0
  %1264 = vmatpush2.xpose.msra.mxu0 0.0
  %1265 = vmatprep.subr.mxu0 0.0
  %1266 = vmatpush2.xpose.msra.mxu0 0.0
  %1267 = vmatprep.subr.mxu0 0.0
  %1268 = vmatpush2.xpose.msra.mxu0 0.0
  %1269 = vmatprep.subr.mxu0 0.0
  %1270 = vmatpush2.xpose.msra.mxu0 0.0
  %1271 = vmatprep.subr.mxu0 0.0
  %1272 = vmatpush2.xpose.msra.mxu0 0.0
  %1273 = vmatprep.subr.mxu0 0.0
  %1274 = vmatpush2.xpose.msra.mxu0 0.0
  %1275 = vmatprep.subr.mxu0 0.0
  %1276 = vmatpush2.xpose.msra.mxu0 0.0
  %1277 = vmatprep.subr.mxu0 0.0
  %1278 = vmatpush2.xpose.msra.mxu0 0.0
  %1279 = vmatprep.subr.mxu0 0.0
  %1280 = vmatpush2.xpose.msra.mxu0 0.0
  %1281 = vmatprep.subr.mxu0 0.0
  %1282 = vmatpush2.xpose.msra.mxu0 0.0
  %1283 = vmatprep.subr.mxu0 0.0
  %1284 = vmatpush2.xpose.msra.mxu0 0.0
  %1285 = vmatprep.subr.mxu0 0.0
  %1286 = vmatpush2.xpose.msra.mxu0 0.0
  %1287 = vmatprep.subr.mxu0 0.0
  %1288 = vmatpush2.xpose.msra.mxu0 0.0
  %1289 = vmatprep.subr.mxu0 0.0
  %1290 = vmatpush2.xpose.msra.mxu0 0.0
  %1291 = vmatprep.subr.mxu0 0.0
  %1292 = vmatpush2.xpose.msra.mxu0 0.0
  %1293 = vmatprep.mubr.f32.mxu0 0.0
  %1294 = vmatmul.mubr.f32.gmra.mxu0 %v1222
  %v1295 = vpop.f32.mrf.mxu0
  %v1296 = vadd.f32 0.0, %v1295
  %v1297 = vpop.f32.mrf.mxu0
  %1298 = vmatprep.mubr.f32.mxu0 0.0
  %1299 = vmatmul.mubr.f32.gmra.mxu0 %v1224
  %v1300 = vpop.f32.mrf.mxu0
  %v1301 = vadd.f32 0.0, %v1300
  %v1302 = vpop.f32.mrf.mxu0
  %1303 = vdwg.mxu0
  %1306 = vrot.lane.b32.xlu0 %v1296, 12
  %v1307 = vpop.permute.xlu0 %1306
  %1308 = vrot.lane.b32.xlu0 %v1301, 12
  %v1309 = vpop.permute.xlu0 %1308
  %vm1312 = vcmask 130144
  %1313 = vst.msk [vmem:[#allocation2] sm:$0xff] %vm1312, %v1307
  %1314 = vst.msk [vmem:[#allocation2 + $0x8] sm:$0xff] %vm1312, %v1309
  %v1315 = vld [vmem:[#allocation2] sm:$0xff]
  %v1316 = vld [vmem:[#allocation2 + $0x8] sm:$0xff]
  %v1317 = vld [vmem:[%s7] sm:$0xff]
  %v1318 = vld [vmem:[%s7 + $0x8] sm:$0xff]
  %v1319 = vld [vmem:[%s7 + $0x10] sm:$0xff]
  %v1320 = vld [vmem:[%s7 + $0x18] sm:$0xff]
  %v1321 = vmax.f32 %v1315, 0.0
  %v1322 = vmax.f32 %v1316, 0.0
  %v1323 = vld [vmem:[%s8] sm:$0xff]
  %v1324 = vld [vmem:[%s8 + $0x8] sm:$0xff]
  %v1325 = vld [vmem:[%s8 + $0x10] sm:$0xff]
  %v1326 = vld [vmem:[%s8 + $0x18] sm:$0xff]
  %1328 = vset.pattern.permute.xlu0 0
  %1329 = vperm.xlu0 %1328, %v1323
  %v1330 = vpop.permute.xlu0 %1329
  %1333 = vset.pattern.permute.xlu0 0
  %1334 = vperm.xlu0 %1333, %v1324
  %v1335 = vpop.permute.xlu0 %1334
  %1338 = vset.pattern.permute.xlu0 0
  %1339 = vperm.xlu0 %1338, %v1325
  %v1340 = vpop.permute.xlu0 %1339
  %1343 = vset.pattern.permute.xlu0 0
  %1344 = vperm.xlu0 %1343, %v1326
  %v1345 = vpop.permute.xlu0 %1344
  %v1348 = vsel %vm428, %v1317, 0
  %v1351 = vsel %vm428, %v1318, 0
  %v1354 = vsel %vm428, %v1319, 0
  %v1357 = vsel %vm428, %v1320, 0
  %1359 = vmatprep.subr.mxu0 0.0
  %1360 = vmatpush1.msra.mxu0 0.0
  %1361 = vmatprep.subr.mxu0 0.0
  %1362 = vmatpush1.msra.mxu0 0.0
  %1363 = vmatprep.subr.mxu0 0.0
  %1364 = vmatpush1.msra.mxu0 0.0
  %1365 = vmatprep.subr.mxu0 0.0
  %1366 = vmatpush1.msra.mxu0 0.0
  %1367 = vmatprep.subr.mxu0 0.0
  %1368 = vmatpush1.msra.mxu0 0.0
  %1369 = vmatprep.subr.mxu0 0.0
  %1370 = vmatpush1.msra.mxu0 0.0
  %1371 = vmatprep.subr.mxu0 0.0
  %1372 = vmatpush1.msra.mxu0 0.0
  %1373 = vmatprep.subr.mxu0 0.0
  %1374 = vmatpush1.msra.mxu0 0.0
  %1375 = vmatprep.subr.mxu0 0.0
  %1376 = vmatpush1.msra.mxu0 0.0
  %1377 = vmatprep.subr.mxu0 0.0
  %1378 = vmatpush1.msra.mxu0 0.0
  %1379 = vmatprep.subr.mxu0 0.0
  %1380 = vmatpush1.msra.mxu0 0.0
  %1381 = vmatprep.subr.mxu0 0.0
  %1382 = vmatpush1.msra.mxu0 0.0
  %1383 = vmatprep.subr.mxu0 0.0
  %1384 = vmatpush1.msra.mxu0 0.0
  %1385 = vmatprep.subr.mxu0 0.0
  %1386 = vmatpush1.msra.mxu0 0.0
  %1387 = vmatprep.subr.mxu0 0.0
  %1388 = vmatpush1.msra.mxu0 %v1322
  %1389 = vmatprep.subr.mxu0 0.0
  %1390 = vmatpush1.msra.mxu0 %v1321
  %1391 = vmatprep.subr.mxu0 0.0
  %1392 = vmatpush2.msra.mxu0 0.0
  %1393 = vmatprep.subr.mxu0 0.0
  %1394 = vmatpush2.msra.mxu0 0.0
  %1395 = vmatprep.subr.mxu0 0.0
  %1396 = vmatpush2.msra.mxu0 0.0
  %1397 = vmatprep.subr.mxu0 0.0
  %1398 = vmatpush2.msra.mxu0 0.0
  %1399 = vmatprep.subr.mxu0 0.0
  %1400 = vmatpush2.msra.mxu0 0.0
  %1401 = vmatprep.subr.mxu0 0.0
  %1402 = vmatpush2.msra.mxu0 0.0
  %1403 = vmatprep.subr.mxu0 0.0
  %1404 = vmatpush2.msra.mxu0 0.0
  %1405 = vmatprep.subr.mxu0 0.0
  %1406 = vmatpush2.msra.mxu0 0.0
  %1407 = vmatprep.subr.mxu0 0.0
  %1408 = vmatpush2.msra.mxu0 0.0
  %1409 = vmatprep.subr.mxu0 0.0
  %1410 = vmatpush2.msra.mxu0 0.0
  %1411 = vmatprep.subr.mxu0 0.0
  %1412 = vmatpush2.msra.mxu0 0.0
  %1413 = vmatprep.subr.mxu0 0.0
  %1414 = vmatpush2.msra.mxu0 0.0
  %1415 = vmatprep.subr.mxu0 0.0
  %1416 = vmatpush2.msra.mxu0 0.0
  %1417 = vmatprep.subr.mxu0 0.0
  %1418 = vmatpush2.msra.mxu0 0.0
  %1419 = vmatprep.subr.mxu0 0.0
  %1420 = vmatpush2.msra.mxu0 0.0
  %1421 = vmatprep.subr.mxu0 0.0
  %1422 = vmatpush2.msra.mxu0 0.0
  %1423 = vmatprep.mubr.f32.mxu0 0.0
  %1424 = vmatmul.mubr.f32.gmra.mxu0 %v1348
  %v1425 = vpop.f32.mrf.mxu0
  %v1426 = vadd.f32 %v1330, %v1425
  %v1427 = vpop.f32.mrf.mxu0
  %1428 = vmatprep.mubr.f32.mxu0 0.0
  %1429 = vmatmul.mubr.f32.gmra.mxu0 %v1351
  %v1430 = vpop.f32.mrf.mxu0
  %v1431 = vadd.f32 %v1335, %v1430
  %v1432 = vpop.f32.mrf.mxu0
  %1433 = vmatprep.mubr.f32.mxu0 0.0
  %1434 = vmatmul.mubr.f32.gmra.mxu0 %v1354
  %v1435 = vpop.f32.mrf.mxu0
  %v1436 = vadd.f32 %v1340, %v1435
  %v1437 = vpop.f32.mrf.mxu0
  %1438 = vmatprep.mubr.f32.mxu0 0.0
  %1439 = vmatmul.mubr.f32.gmra.mxu0 %v1357
  %v1440 = vpop.f32.mrf.mxu0
  %v1441 = vadd.f32 %v1345, %v1440
  %v1442 = vpop.f32.mrf.mxu0
  %1443 = vdwg.mxu0
  %1444 = vrot.lane.b32.xlu0 %v385, 126
  %v1445 = vpop.permute.xlu0 %1444
  %v1447 = vmul.f32 %v1426, %v1445
  %v1448 = vmul.f32 %v1431, %v1445
  %v1449 = vmul.f32 %v1436, %v1445
  %v1450 = vmul.f32 %v1441, %v1445
  %1453 = vrot.lane.b32.xlu0 %v215, 126
  %v1454 = vpop.permute.xlu0 %1453
  %1455 = vrot.lane.b32.xlu0 %v220, 126
  %v1456 = vpop.permute.xlu0 %1455
  %1459 = vxpose.xlu0.b32.start [1/16] %v1454, 128
  %1460 = vxpose.xlu0.b32.cont [2/16] %v1456, 128
  %1461 = vxpose.xlu0.b32.cont [3/16] 0.0, 128
  %1462 = vxpose.xlu0.b32.cont [4/16] 0.0, 128
  %1463 = vxpose.xlu0.b32.cont [5/16] 0.0, 128
  %1464 = vxpose.xlu0.b32.cont [6/16] 0.0, 128
  %1465 = vxpose.xlu0.b32.cont [7/16] 0.0, 128
  %1466 = vxpose.xlu0.b32.cont [8/16] 0.0, 128
  %1467 = vxpose.xlu0.b32.cont [9/16] 0.0, 128
  %1468 = vxpose.xlu0.b32.cont [10/16] 0.0, 128
  %1469 = vxpose.xlu0.b32.cont [11/16] 0.0, 128
  %1470 = vxpose.xlu0.b32.cont [12/16] 0.0, 128
  %1471 = vxpose.xlu0.b32.cont [13/16] 0.0, 128
  %1472 = vxpose.xlu0.b32.cont [14/16] 0.0, 128
  %1473 = vxpose.xlu0.b32.cont [15/16] 0.0, 128
  %1474 = vxpose.xlu0.b32.end [16/16] 0.0, 128
  %v1475 = vpop.trf.xlu0
  %v1476 = vpop.trf.xlu0
  %v1477 = vpop.trf.xlu0
  %v1478 = vpop.trf.xlu0
  %v1479 = vpop.trf.xlu0
  %v1480 = vpop.trf.xlu0
  %v1481 = vpop.trf.xlu0
  %v1482 = vpop.trf.xlu0
  %v1483 = vpop.trf.xlu0
  %v1484 = vpop.trf.xlu0
  %v1485 = vpop.trf.xlu0
  %v1486 = vpop.trf.xlu0
  %v1487 = vpop.trf.xlu0
  %v1488 = vpop.trf.xlu0
  %v1489 = vpop.trf.xlu0
  %v1490 = vpop.trf.xlu0
  %v1492 = vsel %vm428, %v1475, 0
  %1494 = vmatprep.subr.mxu0 0.0
  %1495 = vmatpush1.msra.mxu0 0.0
  %1496 = vmatprep.subr.mxu0 0.0
  %1497 = vmatpush1.msra.mxu0 0.0
  %1498 = vmatprep.subr.mxu0 0.0
  %1499 = vmatpush1.msra.mxu0 0.0
  %1500 = vmatprep.subr.mxu0 0.0
  %1501 = vmatpush1.msra.mxu0 0.0
  %1502 = vmatprep.subr.mxu0 0.0
  %1503 = vmatpush1.msra.mxu0 0.0
  %1504 = vmatprep.subr.mxu0 0.0
  %1505 = vmatpush1.msra.mxu0 0.0
  %1506 = vmatprep.subr.mxu0 0.0
  %1507 = vmatpush1.msra.mxu0 0.0
  %1508 = vmatprep.subr.mxu0 0.0
  %1509 = vmatpush1.msra.mxu0 0.0
  %1510 = vmatprep.subr.mxu0 0.0
  %1511 = vmatpush1.msra.mxu0 0.0
  %1512 = vmatprep.subr.mxu0 0.0
  %1513 = vmatpush1.msra.mxu0 0.0
  %1514 = vmatprep.subr.mxu0 0.0
  %1515 = vmatpush1.msra.mxu0 0.0
  %1516 = vmatprep.subr.mxu0 0.0
  %1517 = vmatpush1.msra.mxu0 0.0
  %1518 = vmatprep.subr.mxu0 0.0
  %1519 = vmatpush1.msra.mxu0 0.0
  %1520 = vmatprep.subr.mxu0 0.0
  %1521 = vmatpush1.msra.mxu0 0.0
  %1522 = vmatprep.subr.mxu0 0.0
  %1523 = vmatpush1.msra.mxu0 %v230
  %1524 = vmatprep.subr.mxu0 0.0
  %1525 = vmatpush1.msra.mxu0 %v225
  %1526 = vmatprep.subr.mxu0 0.0
  %1527 = vmatpush2.msra.mxu0 0.0
  %1528 = vmatprep.subr.mxu0 0.0
  %1529 = vmatpush2.msra.mxu0 0.0
  %1530 = vmatprep.subr.mxu0 0.0
  %1531 = vmatpush2.msra.mxu0 0.0
  %1532 = vmatprep.subr.mxu0 0.0
  %1533 = vmatpush2.msra.mxu0 0.0
  %1534 = vmatprep.subr.mxu0 0.0
  %1535 = vmatpush2.msra.mxu0 0.0
  %1536 = vmatprep.subr.mxu0 0.0
  %1537 = vmatpush2.msra.mxu0 0.0
  %1538 = vmatprep.subr.mxu0 0.0
  %1539 = vmatpush2.msra.mxu0 0.0
  %1540 = vmatprep.subr.mxu0 0.0
  %1541 = vmatpush2.msra.mxu0 0.0
  %1542 = vmatprep.subr.mxu0 0.0
  %1543 = vmatpush2.msra.mxu0 0.0
  %1544 = vmatprep.subr.mxu0 0.0
  %1545 = vmatpush2.msra.mxu0 0.0
  %1546 = vmatprep.subr.mxu0 0.0
  %1547 = vmatpush2.msra.mxu0 0.0
  %1548 = vmatprep.subr.mxu0 0.0
  %1549 = vmatpush2.msra.mxu0 0.0
  %1550 = vmatprep.subr.mxu0 0.0
  %1551 = vmatpush2.msra.mxu0 0.0
  %1552 = vmatprep.subr.mxu0 0.0
  %1553 = vmatpush2.msra.mxu0 0.0
  %1554 = vmatprep.subr.mxu0 0.0
  %1555 = vmatpush2.msra.mxu0 0.0
  %1556 = vmatprep.subr.mxu0 0.0
  %1557 = vmatpush2.msra.mxu0 0.0
  %1558 = vmatprep.mubr.f32.mxu0 0.0
  %1559 = vmatmul.mubr.f32.gmra.mxu0 %v1492
  %v1560 = vpop.f32.mrf.mxu0
  %v1561 = vadd.f32 0.0, %v1560
  %v1562 = vpop.f32.mrf.mxu0
  %1563 = vdwg.mxu0
  %v1564 = vmul.f32 %v1561, %v387
  %v1565 = vmul.f32 %v1564, 0.25
  %v1566 = vadd.f32 %v1565, %v506
  %v1567 = vsel %vm508, %v1566, -inf
  %1568 = vmax.xlane.f32.xlu0 %v1567
  %v1569 = vpop.xlane.xlu0 %1568
  %v1570 = vsub.f32 %v1566, %v1569
  %v1571 = vmul.f32 %v1570, 1.442695
  %v1572 = vpow.pop %v1571
  %v1573 = vsel %vm508, %v1572, 0.0
  %1574 = vadd.xlane.f32.xlu0 %v1573
  %v1575 = vpop.xlane.xlu0 %1574
  %v1576 = vrcp.pop %v1575
  %v1577 = vmul.f32 %v1572, %v1576
  %v1579 = vsel %vm520, %v367, 0
  %v1582 = vsel %vm520, %v368, 0
  %v1585 = vsel %vm520, %v1577, 0
  %1587 = vmatprep.subr.mxu0 0.0
  %1588 = vmatpush1.xpose.msra.mxu0 0.0
  %1589 = vmatprep.subr.mxu0 0.0
  %1590 = vmatpush1.xpose.msra.mxu0 0.0
  %1591 = vmatprep.subr.mxu0 0.0
  %1592 = vmatpush1.xpose.msra.mxu0 0.0
  %1593 = vmatprep.subr.mxu0 0.0
  %1594 = vmatpush1.xpose.msra.mxu0 0.0
  %1595 = vmatprep.subr.mxu0 0.0
  %1596 = vmatpush1.xpose.msra.mxu0 0.0
  %1597 = vmatprep.subr.mxu0 0.0
  %1598 = vmatpush1.xpose.msra.mxu0 0.0
  %1599 = vmatprep.subr.mxu0 0.0
  %1600 = vmatpush1.xpose.msra.mxu0 0.0
  %1601 = vmatprep.subr.mxu0 0.0
  %1602 = vmatpush1.xpose.msra.mxu0 0.0
  %1603 = vmatprep.subr.mxu0 0.0
  %1604 = vmatpush1.xpose.msra.mxu0 0.0
  %1605 = vmatprep.subr.mxu0 0.0
  %1606 = vmatpush1.xpose.msra.mxu0 0.0
  %1607 = vmatprep.subr.mxu0 0.0
  %1608 = vmatpush1.xpose.msra.mxu0 0.0
  %1609 = vmatprep.subr.mxu0 0.0
  %1610 = vmatpush1.xpose.msra.mxu0 0.0
  %1611 = vmatprep.subr.mxu0 0.0
  %1612 = vmatpush1.xpose.msra.mxu0 0.0
  %1613 = vmatprep.subr.mxu0 0.0
  %1614 = vmatpush1.xpose.msra.mxu0 0.0
  %1615 = vmatprep.subr.mxu0 0.0
  %1616 = vmatpush1.xpose.msra.mxu0 0.0
  %1617 = vmatprep.subr.mxu0 0.0
  %1618 = vmatpush1.xpose.msra.mxu0 %v1585
  %1619 = vmatprep.subr.mxu0 0.0
  %1620 = vmatpush2.xpose.msra.mxu0 0.0
  %1621 = vmatprep.subr.mxu0 0.0
  %1622 = vmatpush2.xpose.msra.mxu0 0.0
  %1623 = vmatprep.subr.mxu0 0.0
  %1624 = vmatpush2.xpose.msra.mxu0 0.0
  %1625 = vmatprep.subr.mxu0 0.0
  %1626 = vmatpush2.xpose.msra.mxu0 0.0
  %1627 = vmatprep.subr.mxu0 0.0
  %1628 = vmatpush2.xpose.msra.mxu0 0.0
  %1629 = vmatprep.subr.mxu0 0.0
  %1630 = vmatpush2.xpose.msra.mxu0 0.0
  %1631 = vmatprep.subr.mxu0 0.0
  %1632 = vmatpush2.xpose.msra.mxu0 0.0
  %1633 = vmatprep.subr.mxu0 0.0
  %1634 = vmatpush2.xpose.msra.mxu0 0.0
  %1635 = vmatprep.subr.mxu0 0.0
  %1636 = vmatpush2.xpose.msra.mxu0 0.0
  %1637 = vmatprep.subr.mxu0 0.0
  %1638 = vmatpush2.xpose.msra.mxu0 0.0
  %1639 = vmatprep.subr.mxu0 0.0
  %1640 = vmatpush2.xpose.msra.mxu0 0.0
  %1641 = vmatprep.subr.mxu0 0.0
  %1642 = vmatpush2.xpose.msra.mxu0 0.0
  %1643 = vmatprep.subr.mxu0 0.0
  %1644 = vmatpush2.xpose.msra.mxu0 0.0
  %1645 = vmatprep.subr.mxu0 0.0
  %1646 = vmatpush2.xpose.msra.mxu0 0.0
  %1647 = vmatprep.subr.mxu0 0.0
  %1648 = vmatpush2.xpose.msra.mxu0 0.0
  %1649 = vmatprep.subr.mxu0 0.0
  %1650 = vmatpush2.xpose.msra.mxu0 0.0
  %1651 = vmatprep.mubr.f32.mxu0 0.0
  %1652 = vmatmul.mubr.f32.gmra.mxu0 %v1579
  %v1653 = vpop.f32.mrf.mxu0
  %v1654 = vadd.f32 0.0, %v1653
  %v1655 = vpop.f32.mrf.mxu0
  %1656 = vmatprep.mubr.f32.mxu0 0.0
  %1657 = vmatmul.mubr.f32.gmra.mxu0 %v1582
  %v1658 = vpop.f32.mrf.mxu0
  %v1659 = vadd.f32 0.0, %v1658
  %v1660 = vpop.f32.mrf.mxu0
  %1661 = vdwg.mxu0
  %1662 = vst.msk [vmem:[#allocation2] sm:$0xff] %vm605, %v1654
  %1663 = vst.msk [vmem:[#allocation2 + $0x8] sm:$0xff] %vm605, %v1659
  %1664 = vrot.lane.b32.xlu0 %v215, 122
  %v1665 = vpop.permute.xlu0 %1664
  %1666 = vrot.lane.b32.xlu0 %v220, 122
  %v1667 = vpop.permute.xlu0 %1666
  %1670 = vxpose.xlu0.b32.start [1/16] %v1665, 128
  %1671 = vxpose.xlu0.b32.cont [2/16] %v1667, 128
  %1672 = vxpose.xlu0.b32.cont [3/16] 0.0, 128
  %1673 = vxpose.xlu0.b32.cont [4/16] 0.0, 128
  %1674 = vxpose.xlu0.b32.cont [5/16] 0.0, 128
  %1675 = vxpose.xlu0.b32.cont [6/16] 0.0, 128
  %1676 = vxpose.xlu0.b32.cont [7/16] 0.0, 128
  %1677 = vxpose.xlu0.b32.cont [8/16] 0.0, 128
  %1678 = vxpose.xlu0.b32.cont [9/16] 0.0, 128
  %1679 = vxpose.xlu0.b32.cont [10/16] 0.0, 128
  %1680 = vxpose.xlu0.b32.cont [11/16] 0.0, 128
  %1681 = vxpose.xlu0.b32.cont [12/16] 0.0, 128
  %1682 = vxpose.xlu0.b32.cont [13/16] 0.0, 128
  %1683 = vxpose.xlu0.b32.cont [14/16] 0.0, 128
  %1684 = vxpose.xlu0.b32.cont [15/16] 0.0, 128
  %1685 = vxpose.xlu0.b32.end [16/16] 0.0, 128
  %v1686 = vpop.trf.xlu0
  %v1687 = vpop.trf.xlu0
  %v1688 = vpop.trf.xlu0
  %v1689 = vpop.trf.xlu0
  %v1690 = vpop.trf.xlu0
  %v1691 = vpop.trf.xlu0
  %v1692 = vpop.trf.xlu0
  %v1693 = vpop.trf.xlu0
  %v1694 = vpop.trf.xlu0
  %v1695 = vpop.trf.xlu0
  %v1696 = vpop.trf.xlu0
  %v1697 = vpop.trf.xlu0
  %v1698 = vpop.trf.xlu0
  %v1699 = vpop.trf.xlu0
  %v1700 = vpop.trf.xlu0
  %v1701 = vpop.trf.xlu0
  %1704 = vrot.lane.b32.xlu0 %v225, 124
  %v1705 = vpop.permute.xlu0 %1704
  %1706 = vrot.lane.b32.xlu0 %v230, 124
  %v1707 = vpop.permute.xlu0 %1706
  %v1711 = vsel %vm428, %v1686, 0
  %1713 = vmatprep.subr.mxu0 0.0
  %1714 = vmatpush1.msra.mxu0 0.0
  %1715 = vmatprep.subr.mxu0 0.0
  %1716 = vmatpush1.msra.mxu0 0.0
  %1717 = vmatprep.subr.mxu0 0.0
  %1718 = vmatpush1.msra.mxu0 0.0
  %1719 = vmatprep.subr.mxu0 0.0
  %1720 = vmatpush1.msra.mxu0 0.0
  %1721 = vmatprep.subr.mxu0 0.0
  %1722 = vmatpush1.msra.mxu0 0.0
  %1723 = vmatprep.subr.mxu0 0.0
  %1724 = vmatpush1.msra.mxu0 0.0
  %1725 = vmatprep.subr.mxu0 0.0
  %1726 = vmatpush1.msra.mxu0 0.0
  %1727 = vmatprep.subr.mxu0 0.0
  %1728 = vmatpush1.msra.mxu0 0.0
  %1729 = vmatprep.subr.mxu0 0.0
  %1730 = vmatpush1.msra.mxu0 0.0
  %1731 = vmatprep.subr.mxu0 0.0
  %1732 = vmatpush1.msra.mxu0 0.0
  %1733 = vmatprep.subr.mxu0 0.0
  %1734 = vmatpush1.msra.mxu0 0.0
  %1735 = vmatprep.subr.mxu0 0.0
  %1736 = vmatpush1.msra.mxu0 0.0
  %1737 = vmatprep.subr.mxu0 0.0
  %1738 = vmatpush1.msra.mxu0 0.0
  %1739 = vmatprep.subr.mxu0 0.0
  %1740 = vmatpush1.msra.mxu0 0.0
  %1741 = vmatprep.subr.mxu0 0.0
  %1742 = vmatpush1.msra.mxu0 %v1707
  %1743 = vmatprep.subr.mxu0 0.0
  %1744 = vmatpush1.msra.mxu0 %v1705
  %1745 = vmatprep.subr.mxu0 0.0
  %1746 = vmatpush2.msra.mxu0 0.0
  %1747 = vmatprep.subr.mxu0 0.0
  %1748 = vmatpush2.msra.mxu0 0.0
  %1749 = vmatprep.subr.mxu0 0.0
  %1750 = vmatpush2.msra.mxu0 0.0
  %1751 = vmatprep.subr.mxu0 0.0
  %1752 = vmatpush2.msra.mxu0 0.0
  %1753 = vmatprep.subr.mxu0 0.0
  %1754 = vmatpush2.msra.mxu0 0.0
  %1755 = vmatprep.subr.mxu0 0.0
  %1756 = vmatpush2.msra.mxu0 0.0
  %1757 = vmatprep.subr.mxu0 0.0
  %1758 = vmatpush2.msra.mxu0 0.0
  %1759 = vmatprep.subr.mxu0 0.0
  %1760 = vmatpush2.msra.mxu0 0.0
  %1761 = vmatprep.subr.mxu0 0.0
  %1762 = vmatpush2.msra.mxu0 0.0
  %1763 = vmatprep.subr.mxu0 0.0
  %1764 = vmatpush2.msra.mxu0 0.0
  %1765 = vmatprep.subr.mxu0 0.0
  %1766 = vmatpush2.msra.mxu0 0.0
  %1767 = vmatprep.subr.mxu0 0.0
  %1768 = vmatpush2.msra.mxu0 0.0
  %1769 = vmatprep.subr.mxu0 0.0
  %1770 = vmatpush2.msra.mxu0 0.0
  %1771 = vmatprep.subr.mxu0 0.0
  %1772 = vmatpush2.msra.mxu0 0.0
  %1773 = vmatprep.subr.mxu0 0.0
  %1774 = vmatpush2.msra.mxu0 0.0
  %1775 = vmatprep.subr.mxu0 0.0
  %1776 = vmatpush2.msra.mxu0 0.0
  %1777 = vmatprep.mubr.f32.mxu0 0.0
  %1778 = vmatmul.mubr.f32.gmra.mxu0 %v1711
  %v1779 = vpop.f32.mrf.mxu0
  %v1780 = vadd.f32 0.0, %v1779
  %v1781 = vpop.f32.mrf.mxu0
  %1782 = vdwg.mxu0
  %v1783 = vmul.f32 %v1780, %v611
  %v1784 = vmul.f32 %v1783, 0.25
  %v1785 = vadd.f32 %v1784, %v735
  %v1786 = vsel %vm508, %v1785, -inf
  %1787 = vmax.xlane.f32.xlu0 %v1786
  %v1788 = vpop.xlane.xlu0 %1787
  %v1789 = vsub.f32 %v1785, %v1788
  %v1790 = vmul.f32 %v1789, 1.442695
  %v1791 = vpow.pop %v1790
  %v1792 = vsel %vm508, %v1791, 0.0
  %1793 = vadd.xlane.f32.xlu0 %v1792
  %v1794 = vpop.xlane.xlu0 %1793
  %v1795 = vrcp.pop %v1794
  %v1796 = vmul.f32 %v1791, %v1795
  %1797 = vrot.lane.b32.xlu0 %v367, 124
  %v1798 = vpop.permute.xlu0 %1797
  %1799 = vrot.lane.b32.xlu0 %v368, 124
  %v1800 = vpop.permute.xlu0 %1799
  %v1801 = vsel %vm520, %v1798, 0
  %v1803 = vsel %vm520, %v1800, 0
  %v1806 = vsel %vm520, %v1796, 0
  %1808 = vmatprep.subr.mxu0 0.0
  %1809 = vmatpush1.xpose.msra.mxu0 0.0
  %1810 = vmatprep.subr.mxu0 0.0
  %1811 = vmatpush1.xpose.msra.mxu0 0.0
  %1812 = vmatprep.subr.mxu0 0.0
  %1813 = vmatpush1.xpose.msra.mxu0 0.0
  %1814 = vmatprep.subr.mxu0 0.0
  %1815 = vmatpush1.xpose.msra.mxu0 0.0
  %1816 = vmatprep.subr.mxu0 0.0
  %1817 = vmatpush1.xpose.msra.mxu0 0.0
  %1818 = vmatprep.subr.mxu0 0.0
  %1819 = vmatpush1.xpose.msra.mxu0 0.0
  %1820 = vmatprep.subr.mxu0 0.0
  %1821 = vmatpush1.xpose.msra.mxu0 0.0
  %1822 = vmatprep.subr.mxu0 0.0
  %1823 = vmatpush1.xpose.msra.mxu0 0.0
  %1824 = vmatprep.subr.mxu0 0.0
  %1825 = vmatpush1.xpose.msra.mxu0 0.0
  %1826 = vmatprep.subr.mxu0 0.0
  %1827 = vmatpush1.xpose.msra.mxu0 0.0
  %1828 = vmatprep.subr.mxu0 0.0
  %1829 = vmatpush1.xpose.msra.mxu0 0.0
  %1830 = vmatprep.subr.mxu0 0.0
  %1831 = vmatpush1.xpose.msra.mxu0 0.0
  %1832 = vmatprep.subr.mxu0 0.0
  %1833 = vmatpush1.xpose.msra.mxu0 0.0
  %1834 = vmatprep.subr.mxu0 0.0
  %1835 = vmatpush1.xpose.msra.mxu0 0.0
  %1836 = vmatprep.subr.mxu0 0.0
  %1837 = vmatpush1.xpose.msra.mxu0 0.0
  %1838 = vmatprep.subr.mxu0 0.0
  %1839 = vmatpush1.xpose.msra.mxu0 %v1806
  %1840 = vmatprep.subr.mxu0 0.0
  %1841 = vmatpush2.xpose.msra.mxu0 0.0
  %1842 = vmatprep.subr.mxu0 0.0
  %1843 = vmatpush2.xpose.msra.mxu0 0.0
  %1844 = vmatprep.subr.mxu0 0.0
  %1845 = vmatpush2.xpose.msra.mxu0 0.0
  %1846 = vmatprep.subr.mxu0 0.0
  %1847 = vmatpush2.xpose.msra.mxu0 0.0
  %1848 = vmatprep.subr.mxu0 0.0
  %1849 = vmatpush2.xpose.msra.mxu0 0.0
  %1850 = vmatprep.subr.mxu0 0.0
  %1851 = vmatpush2.xpose.msra.mxu0 0.0
  %1852 = vmatprep.subr.mxu0 0.0
  %1853 = vmatpush2.xpose.msra.mxu0 0.0
  %1854 = vmatprep.subr.mxu0 0.0
  %1855 = vmatpush2.xpose.msra.mxu0 0.0
  %1856 = vmatprep.subr.mxu0 0.0
  %1857 = vmatpush2.xpose.msra.mxu0 0.0
  %1858 = vmatprep.subr.mxu0 0.0
  %1859 = vmatpush2.xpose.msra.mxu0 0.0
  %1860 = vmatprep.subr.mxu0 0.0
  %1861 = vmatpush2.xpose.msra.mxu0 0.0
  %1862 = vmatprep.subr.mxu0 0.0
  %1863 = vmatpush2.xpose.msra.mxu0 0.0
  %1864 = vmatprep.subr.mxu0 0.0
  %1865 = vmatpush2.xpose.msra.mxu0 0.0
  %1866 = vmatprep.subr.mxu0 0.0
  %1867 = vmatpush2.xpose.msra.mxu0 0.0
  %1868 = vmatprep.subr.mxu0 0.0
  %1869 = vmatpush2.xpose.msra.mxu0 0.0
  %1870 = vmatprep.subr.mxu0 0.0
  %1871 = vmatpush2.xpose.msra.mxu0 0.0
  %1872 = vmatprep.mubr.f32.mxu0 0.0
  %1873 = vmatmul.mubr.f32.gmra.mxu0 %v1801
  %v1874 = vpop.f32.mrf.mxu0
  %v1875 = vadd.f32 0.0, %v1874
  %v1876 = vpop.f32.mrf.mxu0
  %1877 = vmatprep.mubr.f32.mxu0 0.0
  %1878 = vmatmul.mubr.f32.gmra.mxu0 %v1803
  %v1879 = vpop.f32.mrf.mxu0
  %v1880 = vadd.f32 0.0, %v1879
  %v1881 = vpop.f32.mrf.mxu0
  %1882 = vdwg.mxu0
  %1885 = vrot.lane.b32.xlu0 %v1875, 4
  %v1886 = vpop.permute.xlu0 %1885
  %1887 = vrot.lane.b32.xlu0 %v1880, 4
  %v1888 = vpop.permute.xlu0 %1887
  %1891 = vst.msk [vmem:[#allocation2] sm:$0xff] %vm842, %v1886
  %1892 = vst.msk [vmem:[#allocation2 + $0x8] sm:$0xff] %vm842, %v1888
  %1893 = vrot.lane.b32.xlu0 %v215, 118
  %v1894 = vpop.permute.xlu0 %1893
  %1895 = vrot.lane.b32.xlu0 %v220, 118
  %v1896 = vpop.permute.xlu0 %1895
  %1899 = vxpose.xlu0.b32.start [1/16] %v1894, 128
  %1900 = vxpose.xlu0.b32.cont [2/16] %v1896, 128
  %1901 = vxpose.xlu0.b32.cont [3/16] 0.0, 128
  %1902 = vxpose.xlu0.b32.cont [4/16] 0.0, 128
  %1903 = vxpose.xlu0.b32.cont [5/16] 0.0, 128
  %1904 = vxpose.xlu0.b32.cont [6/16] 0.0, 128
  %1905 = vxpose.xlu0.b32.cont [7/16] 0.0, 128
  %1906 = vxpose.xlu0.b32.cont [8/16] 0.0, 128
  %1907 = vxpose.xlu0.b32.cont [9/16] 0.0, 128
  %1908 = vxpose.xlu0.b32.cont [10/16] 0.0, 128
  %1909 = vxpose.xlu0.b32.cont [11/16] 0.0, 128
  %1910 = vxpose.xlu0.b32.cont [12/16] 0.0, 128
  %1911 = vxpose.xlu0.b32.cont [13/16] 0.0, 128
  %1912 = vxpose.xlu0.b32.cont [14/16] 0.0, 128
  %1913 = vxpose.xlu0.b32.cont [15/16] 0.0, 128
  %1914 = vxpose.xlu0.b32.end [16/16] 0.0, 128
  %v1915 = vpop.trf.xlu0
  %v1916 = vpop.trf.xlu0
  %v1917 = vpop.trf.xlu0
  %v1918 = vpop.trf.xlu0
  %v1919 = vpop.trf.xlu0
  %v1920 = vpop.trf.xlu0
  %v1921 = vpop.trf.xlu0
  %v1922 = vpop.trf.xlu0
  %v1923 = vpop.trf.xlu0
  %v1924 = vpop.trf.xlu0
  %v1925 = vpop.trf.xlu0
  %v1926 = vpop.trf.xlu0
  %v1927 = vpop.trf.xlu0
  %v1928 = vpop.trf.xlu0
  %v1929 = vpop.trf.xlu0
  %v1930 = vpop.trf.xlu0
  %1931 = vrot.lane.b32.xlu0 %v225, 120
  %v1932 = vpop.permute.xlu0 %1931
  %1933 = vrot.lane.b32.xlu0 %v230, 120
  %v1934 = vpop.permute.xlu0 %1933
  %v1938 = vsel %vm428, %v1915, 0
  %1940 = vmatprep.subr.mxu0 0.0
  %1941 = vmatpush1.msra.mxu0 0.0
  %1942 = vmatprep.subr.mxu0 0.0
  %1943 = vmatpush1.msra.mxu0 0.0
  %1944 = vmatprep.subr.mxu0 0.0
  %1945 = vmatpush1.msra.mxu0 0.0
  %1946 = vmatprep.subr.mxu0 0.0
  %1947 = vmatpush1.msra.mxu0 0.0
  %1948 = vmatprep.subr.mxu0 0.0
  %1949 = vmatpush1.msra.mxu0 0.0
  %1950 = vmatprep.subr.mxu0 0.0
  %1951 = vmatpush1.msra.mxu0 0.0
  %1952 = vmatprep.subr.mxu0 0.0
  %1953 = vmatpush1.msra.mxu0 0.0
  %1954 = vmatprep.subr.mxu0 0.0
  %1955 = vmatpush1.msra.mxu0 0.0
  %1956 = vmatprep.subr.mxu0 0.0
  %1957 = vmatpush1.msra.mxu0 0.0
  %1958 = vmatprep.subr.mxu0 0.0
  %1959 = vmatpush1.msra.mxu0 0.0
  %1960 = vmatprep.subr.mxu0 0.0
  %1961 = vmatpush1.msra.mxu0 0.0
  %1962 = vmatprep.subr.mxu0 0.0
  %1963 = vmatpush1.msra.mxu0 0.0
  %1964 = vmatprep.subr.mxu0 0.0
  %1965 = vmatpush1.msra.mxu0 0.0
  %1966 = vmatprep.subr.mxu0 0.0
  %1967 = vmatpush1.msra.mxu0 0.0
  %1968 = vmatprep.subr.mxu0 0.0
  %1969 = vmatpush1.msra.mxu0 %v1934
  %1970 = vmatprep.subr.mxu0 0.0
  %1971 = vmatpush1.msra.mxu0 %v1932
  %1972 = vmatprep.subr.mxu0 0.0
  %1973 = vmatpush2.msra.mxu0 0.0
  %1974 = vmatprep.subr.mxu0 0.0
  %1975 = vmatpush2.msra.mxu0 0.0
  %1976 = vmatprep.subr.mxu0 0.0
  %1977 = vmatpush2.msra.mxu0 0.0
  %1978 = vmatprep.subr.mxu0 0.0
  %1979 = vmatpush2.msra.mxu0 0.0
  %1980 = vmatprep.subr.mxu0 0.0
  %1981 = vmatpush2.msra.mxu0 0.0
  %1982 = vmatprep.subr.mxu0 0.0
  %1983 = vmatpush2.msra.mxu0 0.0
  %1984 = vmatprep.subr.mxu0 0.0
  %1985 = vmatpush2.msra.mxu0 0.0
  %1986 = vmatprep.subr.mxu0 0.0
  %1987 = vmatpush2.msra.mxu0 0.0
  %1988 = vmatprep.subr.mxu0 0.0
  %1989 = vmatpush2.msra.mxu0 0.0
  %1990 = vmatprep.subr.mxu0 0.0
  %1991 = vmatpush2.msra.mxu0 0.0
  %1992 = vmatprep.subr.mxu0 0.0
  %1993 = vmatpush2.msra.mxu0 0.0
  %1994 = vmatprep.subr.mxu0 0.0
  %1995 = vmatpush2.msra.mxu0 0.0
  %1996 = vmatprep.subr.mxu0 0.0
  %1997 = vmatpush2.msra.mxu0 0.0
  %1998 = vmatprep.subr.mxu0 0.0
  %1999 = vmatpush2.msra.mxu0 0.0
  %2000 = vmatprep.subr.mxu0 0.0
  %2001 = vmatpush2.msra.mxu0 0.0
  %2002 = vmatprep.subr.mxu0 0.0
  %2003 = vmatpush2.msra.mxu0 0.0
  %2004 = vmatprep.mubr.f32.mxu0 0.0
  %2005 = vmatmul.mubr.f32.gmra.mxu0 %v1938
  %v2006 = vpop.f32.mrf.mxu0
  %v2007 = vadd.f32 0.0, %v2006
  %v2008 = vpop.f32.mrf.mxu0
  %2009 = vdwg.mxu0
  %v2010 = vmul.f32 %v2007, %v848
  %v2011 = vmul.f32 %v2010, 0.25
  %v2012 = vadd.f32 %v2011, %v970
  %v2013 = vsel %vm508, %v2012, -inf
  %2014 = vmax.xlane.f32.xlu0 %v2013
  %v2015 = vpop.xlane.xlu0 %2014
  %v2016 = vsub.f32 %v2012, %v2015
  %v2017 = vmul.f32 %v2016, 1.442695
  %v2018 = vpow.pop %v2017
  %v2019 = vsel %vm508, %v2018, 0.0
  %2020 = vadd.xlane.f32.xlu0 %v2019
  %v2021 = vpop.xlane.xlu0 %2020
  %v2022 = vrcp.pop %v2021
  %v2023 = vmul.f32 %v2018, %v2022
  %2024 = vrot.lane.b32.xlu0 %v367, 120
  %v2025 = vpop.permute.xlu0 %2024
  %2026 = vrot.lane.b32.xlu0 %v368, 120
  %v2027 = vpop.permute.xlu0 %2026
  %v2028 = vsel %vm520, %v2025, 0
  %v2030 = vsel %vm520, %v2027, 0
  %v2033 = vsel %vm520, %v2023, 0
  %2035 = vmatprep.subr.mxu0 0.0
  %2036 = vmatpush1.xpose.msra.mxu0 0.0
  %2037 = vmatprep.subr.mxu0 0.0
  %2038 = vmatpush1.xpose.msra.mxu0 0.0
  %2039 = vmatprep.subr.mxu0 0.0
  %2040 = vmatpush1.xpose.msra.mxu0 0.0
  %2041 = vmatprep.subr.mxu0 0.0
  %2042 = vmatpush1.xpose.msra.mxu0 0.0
  %2043 = vmatprep.subr.mxu0 0.0
  %2044 = vmatpush1.xpose.msra.mxu0 0.0
  %2045 = vmatprep.subr.mxu0 0.0
  %2046 = vmatpush1.xpose.msra.mxu0 0.0
  %2047 = vmatprep.subr.mxu0 0.0
  %2048 = vmatpush1.xpose.msra.mxu0 0.0
  %2049 = vmatprep.subr.mxu0 0.0
  %2050 = vmatpush1.xpose.msra.mxu0 0.0
  %2051 = vmatprep.subr.mxu0 0.0
  %2052 = vmatpush1.xpose.msra.mxu0 0.0
  %2053 = vmatprep.subr.mxu0 0.0
  %2054 = vmatpush1.xpose.msra.mxu0 0.0
  %2055 = vmatprep.subr.mxu0 0.0
  %2056 = vmatpush1.xpose.msra.mxu0 0.0
  %2057 = vmatprep.subr.mxu0 0.0
  %2058 = vmatpush1.xpose.msra.mxu0 0.0
  %2059 = vmatprep.subr.mxu0 0.0
  %2060 = vmatpush1.xpose.msra.mxu0 0.0
  %2061 = vmatprep.subr.mxu0 0.0
  %2062 = vmatpush1.xpose.msra.mxu0 0.0
  %2063 = vmatprep.subr.mxu0 0.0
  %2064 = vmatpush1.xpose.msra.mxu0 0.0
  %2065 = vmatprep.subr.mxu0 0.0
  %2066 = vmatpush1.xpose.msra.mxu0 %v2033
  %2067 = vmatprep.subr.mxu0 0.0
  %2068 = vmatpush2.xpose.msra.mxu0 0.0
  %2069 = vmatprep.subr.mxu0 0.0
  %2070 = vmatpush2.xpose.msra.mxu0 0.0
  %2071 = vmatprep.subr.mxu0 0.0
  %2072 = vmatpush2.xpose.msra.mxu0 0.0
  %2073 = vmatprep.subr.mxu0 0.0
  %2074 = vmatpush2.xpose.msra.mxu0 0.0
  %2075 = vmatprep.subr.mxu0 0.0
  %2076 = vmatpush2.xpose.msra.mxu0 0.0
  %2077 = vmatprep.subr.mxu0 0.0
  %2078 = vmatpush2.xpose.msra.mxu0 0.0
  %2079 = vmatprep.subr.mxu0 0.0
  %2080 = vmatpush2.xpose.msra.mxu0 0.0
  %2081 = vmatprep.subr.mxu0 0.0
  %2082 = vmatpush2.xpose.msra.mxu0 0.0
  %2083 = vmatprep.subr.mxu0 0.0
  %2084 = vmatpush2.xpose.msra.mxu0 0.0
  %2085 = vmatprep.subr.mxu0 0.0
  %2086 = vmatpush2.xpose.msra.mxu0 0.0
  %2087 = vmatprep.subr.mxu0 0.0
  %2088 = vmatpush2.xpose.msra.mxu0 0.0
  %2089 = vmatprep.subr.mxu0 0.0
  %2090 = vmatpush2.xpose.msra.mxu0 0.0
  %2091 = vmatprep.subr.mxu0 0.0
  %2092 = vmatpush2.xpose.msra.mxu0 0.0
  %2093 = vmatprep.subr.mxu0 0.0
  %2094 = vmatpush2.xpose.msra.mxu0 0.0
  %2095 = vmatprep.subr.mxu0 0.0
  %2096 = vmatpush2.xpose.msra.mxu0 0.0
  %2097 = vmatprep.subr.mxu0 0.0
  %2098 = vmatpush2.xpose.msra.mxu0 0.0
  %2099 = vmatprep.mubr.f32.mxu0 0.0
  %2100 = vmatmul.mubr.f32.gmra.mxu0 %v2028
  %v2101 = vpop.f32.mrf.mxu0
  %v2102 = vadd.f32 0.0, %v2101
  %v2103 = vpop.f32.mrf.mxu0
  %2104 = vmatprep.mubr.f32.mxu0 0.0
  %2105 = vmatmul.mubr.f32.gmra.mxu0 %v2030
  %v2106 = vpop.f32.mrf.mxu0
  %v2107 = vadd.f32 0.0, %v2106
  %v2108 = vpop.f32.mrf.mxu0
  %2109 = vdwg.mxu0
  %2112 = vrot.lane.b32.xlu0 %v2102, 8
  %v2113 = vpop.permute.xlu0 %2112
  %2114 = vrot.lane.b32.xlu0 %v2107, 8
  %v2115 = vpop.permute.xlu0 %2114
  %2118 = vst.msk [vmem:[#allocation2] sm:$0xff] %vm1077, %v2113
  %2119 = vst.msk [vmem:[#allocation2 + $0x8] sm:$0xff] %vm1077, %v2115
  %2120 = vrot.lane.b32.xlu0 %v215, 114
  %v2121 = vpop.permute.xlu0 %2120
  %2122 = vrot.lane.b32.xlu0 %v220, 114
  %v2123 = vpop.permute.xlu0 %2122
  %2126 = vxpose.xlu0.b32.start [1/16] %v2121, 128
  %2127 = vxpose.xlu0.b32.cont [2/16] %v2123, 128
  %2128 = vxpose.xlu0.b32.cont [3/16] 0.0, 128
  %2129 = vxpose.xlu0.b32.cont [4/16] 0.0, 128
  %2130 = vxpose.xlu0.b32.cont [5/16] 0.0, 128
  %2131 = vxpose.xlu0.b32.cont [6/16] 0.0, 128
  %2132 = vxpose.xlu0.b32.cont [7/16] 0.0, 128
  %2133 = vxpose.xlu0.b32.cont [8/16] 0.0, 128
  %2134 = vxpose.xlu0.b32.cont [9/16] 0.0, 128
  %2135 = vxpose.xlu0.b32.cont [10/16] 0.0, 128
  %2136 = vxpose.xlu0.b32.cont [11/16] 0.0, 128
  %2137 = vxpose.xlu0.b32.cont [12/16] 0.0, 128
  %2138 = vxpose.xlu0.b32.cont [13/16] 0.0, 128
  %2139 = vxpose.xlu0.b32.cont [14/16] 0.0, 128
  %2140 = vxpose.xlu0.b32.cont [15/16] 0.0, 128
  %2141 = vxpose.xlu0.b32.end [16/16] 0.0, 128
  %v2142 = vpop.trf.xlu0
  %v2143 = vpop.trf.xlu0
  %v2144 = vpop.trf.xlu0
  %v2145 = vpop.trf.xlu0
  %v2146 = vpop.trf.xlu0
  %v2147 = vpop.trf.xlu0
  %v2148 = vpop.trf.xlu0
  %v2149 = vpop.trf.xlu0
  %v2150 = vpop.trf.xlu0
  %v2151 = vpop.trf.xlu0
  %v2152 = vpop.trf.xlu0
  %v2153 = vpop.trf.xlu0
  %v2154 = vpop.trf.xlu0
  %v2155 = vpop.trf.xlu0
  %v2156 = vpop.trf.xlu0
  %v2157 = vpop.trf.xlu0
  %2158 = vrot.lane.b32.xlu0 %v225, 116
  %v2159 = vpop.permute.xlu0 %2158
  %2160 = vrot.lane.b32.xlu0 %v230, 116
  %v2161 = vpop.permute.xlu0 %2160
  %v2165 = vsel %vm428, %v2142, 0
  %2167 = vmatprep.subr.mxu0 0.0
  %2168 = vmatpush1.msra.mxu0 0.0
  %2169 = vmatprep.subr.mxu0 0.0
  %2170 = vmatpush1.msra.mxu0 0.0
  %2171 = vmatprep.subr.mxu0 0.0
  %2172 = vmatpush1.msra.mxu0 0.0
  %2173 = vmatprep.subr.mxu0 0.0
  %2174 = vmatpush1.msra.mxu0 0.0
  %2175 = vmatprep.subr.mxu0 0.0
  %2176 = vmatpush1.msra.mxu0 0.0
  %2177 = vmatprep.subr.mxu0 0.0
  %2178 = vmatpush1.msra.mxu0 0.0
  %2179 = vmatprep.subr.mxu0 0.0
  %2180 = vmatpush1.msra.mxu0 0.0
  %2181 = vmatprep.subr.mxu0 0.0
  %2182 = vmatpush1.msra.mxu0 0.0
  %2183 = vmatprep.subr.mxu0 0.0
  %2184 = vmatpush1.msra.mxu0 0.0
  %2185 = vmatprep.subr.mxu0 0.0
  %2186 = vmatpush1.msra.mxu0 0.0
  %2187 = vmatprep.subr.mxu0 0.0
  %2188 = vmatpush1.msra.mxu0 0.0
  %2189 = vmatprep.subr.mxu0 0.0
  %2190 = vmatpush1.msra.mxu0 0.0
  %2191 = vmatprep.subr.mxu0 0.0
  %2192 = vmatpush1.msra.mxu0 0.0
  %2193 = vmatprep.subr.mxu0 0.0
  %2194 = vmatpush1.msra.mxu0 0.0
  %2195 = vmatprep.subr.mxu0 0.0
  %2196 = vmatpush1.msra.mxu0 %v2161
  %2197 = vmatprep.subr.mxu0 0.0
  %2198 = vmatpush1.msra.mxu0 %v2159
  %2199 = vmatprep.subr.mxu0 0.0
  %2200 = vmatpush2.msra.mxu0 0.0
  %2201 = vmatprep.subr.mxu0 0.0
  %2202 = vmatpush2.msra.mxu0 0.0
  %2203 = vmatprep.subr.mxu0 0.0
  %2204 = vmatpush2.msra.mxu0 0.0
  %2205 = vmatprep.subr.mxu0 0.0
  %2206 = vmatpush2.msra.mxu0 0.0
  %2207 = vmatprep.subr.mxu0 0.0
  %2208 = vmatpush2.msra.mxu0 0.0
  %2209 = vmatprep.subr.mxu0 0.0
  %2210 = vmatpush2.msra.mxu0 0.0
  %2211 = vmatprep.subr.mxu0 0.0
  %2212 = vmatpush2.msra.mxu0 0.0
  %2213 = vmatprep.subr.mxu0 0.0
  %2214 = vmatpush2.msra.mxu0 0.0
  %2215 = vmatprep.subr.mxu0 0.0
  %2216 = vmatpush2.msra.mxu0 0.0
  %2217 = vmatprep.subr.mxu0 0.0
  %2218 = vmatpush2.msra.mxu0 0.0
  %2219 = vmatprep.subr.mxu0 0.0
  %2220 = vmatpush2.msra.mxu0 0.0
  %2221 = vmatprep.subr.mxu0 0.0
  %2222 = vmatpush2.msra.mxu0 0.0
  %2223 = vmatprep.subr.mxu0 0.0
  %2224 = vmatpush2.msra.mxu0 0.0
  %2225 = vmatprep.subr.mxu0 0.0
  %2226 = vmatpush2.msra.mxu0 0.0
  %2227 = vmatprep.subr.mxu0 0.0
  %2228 = vmatpush2.msra.mxu0 0.0
  %2229 = vmatprep.subr.mxu0 0.0
  %2230 = vmatpush2.msra.mxu0 0.0
  %2231 = vmatprep.mubr.f32.mxu0 0.0
  %2232 = vmatmul.mubr.f32.gmra.mxu0 %v2165
  %v2233 = vpop.f32.mrf.mxu0
  %v2234 = vadd.f32 0.0, %v2233
  %v2235 = vpop.f32.mrf.mxu0
  %2236 = vdwg.mxu0
  %v2237 = vmul.f32 %v2234, %v1083
  %v2238 = vmul.f32 %v2237, 0.25
  %v2239 = vadd.f32 %v2238, %v1205
  %v2240 = vsel %vm508, %v2239, -inf
  %2241 = vmax.xlane.f32.xlu0 %v2240
  %v2242 = vpop.xlane.xlu0 %2241
  %v2243 = vsub.f32 %v2239, %v2242
  %v2244 = vmul.f32 %v2243, 1.442695
  %v2245 = vpow.pop %v2244
  %v2246 = vsel %vm508, %v2245, 0.0
  %2247 = vadd.xlane.f32.xlu0 %v2246
  %v2248 = vpop.xlane.xlu0 %2247
  %v2249 = vrcp.pop %v2248
  %v2250 = vmul.f32 %v2245, %v2249
  %2251 = vrot.lane.b32.xlu0 %v367, 116
  %v2252 = vpop.permute.xlu0 %2251
  %2253 = vrot.lane.b32.xlu0 %v368, 116
  %v2254 = vpop.permute.xlu0 %2253
  %v2255 = vsel %vm520, %v2252, 0
  %v2257 = vsel %vm520, %v2254, 0
  %v2260 = vsel %vm520, %v2250, 0
  %2262 = vmatprep.subr.mxu0 0.0
  %2263 = vmatpush1.xpose.msra.mxu0 0.0
  %2264 = vmatprep.subr.mxu0 0.0
  %2265 = vmatpush1.xpose.msra.mxu0 0.0
  %2266 = vmatprep.subr.mxu0 0.0
  %2267 = vmatpush1.xpose.msra.mxu0 0.0
  %2268 = vmatprep.subr.mxu0 0.0
  %2269 = vmatpush1.xpose.msra.mxu0 0.0
  %2270 = vmatprep.subr.mxu0 0.0
  %2271 = vmatpush1.xpose.msra.mxu0 0.0
  %2272 = vmatprep.subr.mxu0 0.0
  %2273 = vmatpush1.xpose.msra.mxu0 0.0
  %2274 = vmatprep.subr.mxu0 0.0
  %2275 = vmatpush1.xpose.msra.mxu0 0.0
  %2276 = vmatprep.subr.mxu0 0.0
  %2277 = vmatpush1.xpose.msra.mxu0 0.0
  %2278 = vmatprep.subr.mxu0 0.0
  %2279 = vmatpush1.xpose.msra.mxu0 0.0
  %2280 = vmatprep.subr.mxu0 0.0
  %2281 = vmatpush1.xpose.msra.mxu0 0.0
  %2282 = vmatprep.subr.mxu0 0.0
  %2283 = vmatpush1.xpose.msra.mxu0 0.0
  %2284 = vmatprep.subr.mxu0 0.0
  %2285 = vmatpush1.xpose.msra.mxu0 0.0
  %2286 = vmatprep.subr.mxu0 0.0
  %2287 = vmatpush1.xpose.msra.mxu0 0.0
  %2288 = vmatprep.subr.mxu0 0.0
  %2289 = vmatpush1.xpose.msra.mxu0 0.0
  %2290 = vmatprep.subr.mxu0 0.0
  %2291 = vmatpush1.xpose.msra.mxu0 0.0
  %2292 = vmatprep.subr.mxu0 0.0
  %2293 = vmatpush1.xpose.msra.mxu0 %v2260
  %2294 = vmatprep.subr.mxu0 0.0
  %2295 = vmatpush2.xpose.msra.mxu0 0.0
  %2296 = vmatprep.subr.mxu0 0.0
  %2297 = vmatpush2.xpose.msra.mxu0 0.0
  %2298 = vmatprep.subr.mxu0 0.0
  %2299 = vmatpush2.xpose.msra.mxu0 0.0
  %2300 = vmatprep.subr.mxu0 0.0
  %2301 = vmatpush2.xpose.msra.mxu0 0.0
  %2302 = vmatprep.subr.mxu0 0.0
  %2303 = vmatpush2.xpose.msra.mxu0 0.0
  %2304 = vmatprep.subr.mxu0 0.0
  %2305 = vmatpush2.xpose.msra.mxu0 0.0
  %2306 = vmatprep.subr.mxu0 0.0
  %2307 = vmatpush2.xpose.msra.mxu0 0.0
  %2308 = vmatprep.subr.mxu0 0.0
  %2309 = vmatpush2.xpose.msra.mxu0 0.0
  %2310 = vmatprep.subr.mxu0 0.0
  %2311 = vmatpush2.xpose.msra.mxu0 0.0
  %2312 = vmatprep.subr.mxu0 0.0
  %2313 = vmatpush2.xpose.msra.mxu0 0.0
  %2314 = vmatprep.subr.mxu0 0.0
  %2315 = vmatpush2.xpose.msra.mxu0 0.0
  %2316 = vmatprep.subr.mxu0 0.0
  %2317 = vmatpush2.xpose.msra.mxu0 0.0
  %2318 = vmatprep.subr.mxu0 0.0
  %2319 = vmatpush2.xpose.msra.mxu0 0.0
  %2320 = vmatprep.subr.mxu0 0.0
  %2321 = vmatpush2.xpose.msra.mxu0 0.0
  %2322 = vmatprep.subr.mxu0 0.0
  %2323 = vmatpush2.xpose.msra.mxu0 0.0
  %2324 = vmatprep.subr.mxu0 0.0
  %2325 = vmatpush2.xpose.msra.mxu0 0.0
  %2326 = vmatprep.mubr.f32.mxu0 0.0
  %2327 = vmatmul.mubr.f32.gmra.mxu0 %v2255
  %v2328 = vpop.f32.mrf.mxu0
  %v2329 = vadd.f32 0.0, %v2328
  %v2330 = vpop.f32.mrf.mxu0
  %2331 = vmatprep.mubr.f32.mxu0 0.0
  %2332 = vmatmul.mubr.f32.gmra.mxu0 %v2257
  %v2333 = vpop.f32.mrf.mxu0
  %v2334 = vadd.f32 0.0, %v2333
  %v2335 = vpop.f32.mrf.mxu0
  %2336 = vdwg.mxu0
  %2339 = vrot.lane.b32.xlu0 %v2329, 12
  %v2340 = vpop.permute.xlu0 %2339
  %2341 = vrot.lane.b32.xlu0 %v2334, 12
  %v2342 = vpop.permute.xlu0 %2341
  %2345 = vst.msk [vmem:[#allocation2] sm:$0xff] %vm1312, %v2340
  %2346 = vst.msk [vmem:[#allocation2 + $0x8] sm:$0xff] %vm1312, %v2342
  %v2347 = vld [vmem:[#allocation2] sm:$0xff]
  %v2348 = vld [vmem:[#allocation2 + $0x8] sm:$0xff]
  %s2349 = scalar_lea.vmem %s7, 32
  %v2350 = vld [vmem:[%s2349] sm:$0xff]
  %v2351 = vld [vmem:[%s2349 + $0x8] sm:$0xff]
  %v2352 = vld [vmem:[%s2349 + $0x10] sm:$0xff]
  %v2353 = vld [vmem:[%s2349 + $0x18] sm:$0xff]
  %v2354 = vmax.f32 %v2347, 0.0
  %v2355 = vmax.f32 %v2348, 0.0
  %s2356 = scalar_lea.vmem %s8, 32
  %v2357 = vld [vmem:[%s2356] sm:$0xff]
  %v2358 = vld [vmem:[%s2356 + $0x8] sm:$0xff]
  %v2359 = vld [vmem:[%s2356 + $0x10] sm:$0xff]
  %v2360 = vld [vmem:[%s2356 + $0x18] sm:$0xff]
  %2362 = vset.pattern.permute.xlu0 0
  %2363 = vperm.xlu0 %2362, %v2357
  %v2364 = vpop.permute.xlu0 %2363
  %2367 = vset.pattern.permute.xlu0 0
  %2368 = vperm.xlu0 %2367, %v2358
  %v2369 = vpop.permute.xlu0 %2368
  %2372 = vset.pattern.permute.xlu0 0
  %2373 = vperm.xlu0 %2372, %v2359
  %v2374 = vpop.permute.xlu0 %2373
  %2377 = vset.pattern.permute.xlu0 0
  %2378 = vperm.xlu0 %2377, %v2360
  %v2379 = vpop.permute.xlu0 %2378
  %v2382 = vsel %vm428, %v2350, 0
  %v2385 = vsel %vm428, %v2351, 0
  %v2388 = vsel %vm428, %v2352, 0
  %v2391 = vsel %vm428, %v2353, 0
  %2393 = vmatprep.subr.mxu0 0.0
  %2394 = vmatpush1.msra.mxu0 0.0
  %2395 = vmatprep.subr.mxu0 0.0
  %2396 = vmatpush1.msra.mxu0 0.0
  %2397 = vmatprep.subr.mxu0 0.0
  %2398 = vmatpush1.msra.mxu0 0.0
  %2399 = vmatprep.subr.mxu0 0.0
  %2400 = vmatpush1.msra.mxu0 0.0
  %2401 = vmatprep.subr.mxu0 0.0
  %2402 = vmatpush1.msra.mxu0 0.0
  %2403 = vmatprep.subr.mxu0 0.0
  %2404 = vmatpush1.msra.mxu0 0.0
  %2405 = vmatprep.subr.mxu0 0.0
  %2406 = vmatpush1.msra.mxu0 0.0
  %2407 = vmatprep.subr.mxu0 0.0
  %2408 = vmatpush1.msra.mxu0 0.0
  %2409 = vmatprep.subr.mxu0 0.0
  %2410 = vmatpush1.msra.mxu0 0.0
  %2411 = vmatprep.subr.mxu0 0.0
  %2412 = vmatpush1.msra.mxu0 0.0
  %2413 = vmatprep.subr.mxu0 0.0
  %2414 = vmatpush1.msra.mxu0 0.0
  %2415 = vmatprep.subr.mxu0 0.0
  %2416 = vmatpush1.msra.mxu0 0.0
  %2417 = vmatprep.subr.mxu0 0.0
  %2418 = vmatpush1.msra.mxu0 0.0
  %2419 = vmatprep.subr.mxu0 0.0
  %2420 = vmatpush1.msra.mxu0 0.0
  %2421 = vmatprep.subr.mxu0 0.0
  %2422 = vmatpush1.msra.mxu0 %v2355
  %2423 = vmatprep.subr.mxu0 0.0
  %2424 = vmatpush1.msra.mxu0 %v2354
  %2425 = vmatprep.subr.mxu0 0.0
  %2426 = vmatpush2.msra.mxu0 0.0
  %2427 = vmatprep.subr.mxu0 0.0
  %2428 = vmatpush2.msra.mxu0 0.0
  %2429 = vmatprep.subr.mxu0 0.0
  %2430 = vmatpush2.msra.mxu0 0.0
  %2431 = vmatprep.subr.mxu0 0.0
  %2432 = vmatpush2.msra.mxu0 0.0
  %2433 = vmatprep.subr.mxu0 0.0
  %2434 = vmatpush2.msra.mxu0 0.0
  %2435 = vmatprep.subr.mxu0 0.0
  %2436 = vmatpush2.msra.mxu0 0.0
  %2437 = vmatprep.subr.mxu0 0.0
  %2438 = vmatpush2.msra.mxu0 0.0
  %2439 = vmatprep.subr.mxu0 0.0
  %2440 = vmatpush2.msra.mxu0 0.0
  %2441 = vmatprep.subr.mxu0 0.0
  %2442 = vmatpush2.msra.mxu0 0.0
  %2443 = vmatprep.subr.mxu0 0.0
  %2444 = vmatpush2.msra.mxu0 0.0
  %2445 = vmatprep.subr.mxu0 0.0
  %2446 = vmatpush2.msra.mxu0 0.0
  %2447 = vmatprep.subr.mxu0 0.0
  %2448 = vmatpush2.msra.mxu0 0.0
  %2449 = vmatprep.subr.mxu0 0.0
  %2450 = vmatpush2.msra.mxu0 0.0
  %2451 = vmatprep.subr.mxu0 0.0
  %2452 = vmatpush2.msra.mxu0 0.0
  %2453 = vmatprep.subr.mxu0 0.0
  %2454 = vmatpush2.msra.mxu0 0.0
  %2455 = vmatprep.subr.mxu0 0.0
  %2456 = vmatpush2.msra.mxu0 0.0
  %2457 = vmatprep.mubr.f32.mxu0 0.0
  %2458 = vmatmul.mubr.f32.gmra.mxu0 %v2382
  %v2459 = vpop.f32.mrf.mxu0
  %v2460 = vadd.f32 %v2364, %v2459
  %v2461 = vpop.f32.mrf.mxu0
  %2462 = vmatprep.mubr.f32.mxu0 0.0
  %2463 = vmatmul.mubr.f32.gmra.mxu0 %v2385
  %v2464 = vpop.f32.mrf.mxu0
  %v2465 = vadd.f32 %v2369, %v2464
  %v2466 = vpop.f32.mrf.mxu0
  %2467 = vmatprep.mubr.f32.mxu0 0.0
  %2468 = vmatmul.mubr.f32.gmra.mxu0 %v2388
  %v2469 = vpop.f32.mrf.mxu0
  %v2470 = vadd.f32 %v2374, %v2469
  %v2471 = vpop.f32.mrf.mxu0
  %2472 = vmatprep.mubr.f32.mxu0 0.0
  %2473 = vmatmul.mubr.f32.gmra.mxu0 %v2391
  %v2474 = vpop.f32.mrf.mxu0
  %v2475 = vadd.f32 %v2379, %v2474
  %v2476 = vpop.f32.mrf.mxu0
  %2477 = vdwg.mxu0
  %v2478 = vmul.f32 %v2460, %v1445
  %v2479 = vmul.f32 %v2465, %v1445
  %v2480 = vmul.f32 %v2470, %v1445
  %v2481 = vmul.f32 %v2475, %v1445
  %2486 = vrot.lane.b32.xlu0 %v377, 96
  %v2487 = vpop.permute.xlu0 %2486
  %2488 = vrot.lane.b32.xlu0 %v378, 96
  %v2489 = vpop.permute.xlu0 %2488
  %2490 = vrot.lane.b32.xlu0 %v379, 96
  %v2491 = vpop.permute.xlu0 %2490
  %2492 = vrot.lane.b32.xlu0 %v380, 96
  %v2493 = vpop.permute.xlu0 %2492
  %v2494 = vsel %vm103, %v2487, 0
  %v2496 = vsel %vm103, %v2489, 0
  %v2498 = vsel %vm103, %v2491, 0
  %v2500 = vsel %vm103, %v2493, 0
  %2502 = vmatprep.subr.mxu0 0.0
  %2503 = vmatpush1.msra.mxu0 0.0
  %2504 = vmatprep.subr.mxu0 0.0
  %2505 = vmatpush1.msra.mxu0 0.0
  %2506 = vmatprep.subr.mxu0 0.0
  %2507 = vmatpush1.msra.mxu0 0.0
  %2508 = vmatprep.subr.mxu0 0.0
  %2509 = vmatpush1.msra.mxu0 0.0
  %2510 = vmatprep.subr.mxu0 0.0
  %2511 = vmatpush1.msra.mxu0 0.0
  %2512 = vmatprep.subr.mxu0 0.0
  %2513 = vmatpush1.msra.mxu0 0.0
  %2514 = vmatprep.subr.mxu0 0.0
  %2515 = vmatpush1.msra.mxu0 0.0
  %2516 = vmatprep.subr.mxu0 0.0
  %2517 = vmatpush1.msra.mxu0 0.0
  %2518 = vmatprep.subr.mxu0 0.0
  %2519 = vmatpush1.msra.mxu0 0.0
  %2520 = vmatprep.subr.mxu0 0.0
  %2521 = vmatpush1.msra.mxu0 0.0
  %2522 = vmatprep.subr.mxu0 0.0
  %2523 = vmatpush1.msra.mxu0 0.0
  %2524 = vmatprep.subr.mxu0 0.0
  %2525 = vmatpush1.msra.mxu0 0.0
  %2526 = vmatprep.subr.mxu0 0.0
  %2527 = vmatpush1.msra.mxu0 %v2481
  %2528 = vmatprep.subr.mxu0 0.0
  %2529 = vmatpush1.msra.mxu0 %v2480
  %2530 = vmatprep.subr.mxu0 0.0
  %2531 = vmatpush1.msra.mxu0 %v2479
  %2532 = vmatprep.subr.mxu0 0.0
  %2533 = vmatpush1.msra.mxu0 %v2478
  %2534 = vmatprep.subr.mxu0 0.0
  %2535 = vmatpush2.msra.mxu0 0.0
  %2536 = vmatprep.subr.mxu0 0.0
  %2537 = vmatpush2.msra.mxu0 0.0
  %2538 = vmatprep.subr.mxu0 0.0
  %2539 = vmatpush2.msra.mxu0 0.0
  %2540 = vmatprep.subr.mxu0 0.0
  %2541 = vmatpush2.msra.mxu0 0.0
  %2542 = vmatprep.subr.mxu0 0.0
  %2543 = vmatpush2.msra.mxu0 0.0
  %2544 = vmatprep.subr.mxu0 0.0
  %2545 = vmatpush2.msra.mxu0 0.0
  %2546 = vmatprep.subr.mxu0 0.0
  %2547 = vmatpush2.msra.mxu0 0.0
  %2548 = vmatprep.subr.mxu0 0.0
  %2549 = vmatpush2.msra.mxu0 0.0
  %2550 = vmatprep.subr.mxu0 0.0
  %2551 = vmatpush2.msra.mxu0 0.0
  %2552 = vmatprep.subr.mxu0 0.0
  %2553 = vmatpush2.msra.mxu0 0.0
  %2554 = vmatprep.subr.mxu0 0.0
  %2555 = vmatpush2.msra.mxu0 0.0
  %2556 = vmatprep.subr.mxu0 0.0
  %2557 = vmatpush2.msra.mxu0 0.0
  %2558 = vmatprep.subr.mxu0 0.0
  %2559 = vmatpush2.msra.mxu0 0.0
  %2560 = vmatprep.subr.mxu0 0.0
  %2561 = vmatpush2.msra.mxu0 0.0
  %2562 = vmatprep.subr.mxu0 0.0
  %2563 = vmatpush2.msra.mxu0 0.0
  %2564 = vmatprep.subr.mxu0 0.0
  %2565 = vmatpush2.msra.mxu0 0.0
  %2566 = vmatprep.mubr.f32.mxu0 0.0
  %2567 = vmatmul.mubr.f32.gmra.mxu0 %v2494
  %v2568 = vpop.f32.mrf.mxu0
  %v2569 = vadd.f32 0.0, %v2568
  %v2570 = vpop.f32.mrf.mxu0
  %2571 = vmatprep.mubr.f32.mxu0 0.0
  %2572 = vmatmul.mubr.f32.gmra.mxu0 %v2496
  %v2573 = vpop.f32.mrf.mxu0
  %v2574 = vadd.f32 0.0, %v2573
  %v2575 = vpop.f32.mrf.mxu0
  %2576 = vmatprep.mubr.f32.mxu0 0.0
  %2577 = vmatmul.mubr.f32.gmra.mxu0 %v2498
  %v2578 = vpop.f32.mrf.mxu0
  %v2579 = vadd.f32 0.0, %v2578
  %v2580 = vpop.f32.mrf.mxu0
  %2581 = vmatprep.mubr.f32.mxu0 0.0
  %2582 = vmatmul.mubr.f32.gmra.mxu0 %v2500
  %v2583 = vpop.f32.mrf.mxu0
  %v2584 = vadd.f32 0.0, %v2583
  %v2585 = vpop.f32.mrf.mxu0
  %2586 = vdwg.mxu0
  %v2587 = vsel %vm103, %v377, 0
  %v2589 = vsel %vm103, %v378, 0
  %v2591 = vsel %vm103, %v379, 0
  %v2593 = vsel %vm103, %v380, 0
  %2595 = vmatprep.subr.mxu0 0.0
  %2596 = vmatpush1.msra.mxu0 0.0
  %2597 = vmatprep.subr.mxu0 0.0
  %2598 = vmatpush1.msra.mxu0 0.0
  %2599 = vmatprep.subr.mxu0 0.0
  %2600 = vmatpush1.msra.mxu0 0.0
  %2601 = vmatprep.subr.mxu0 0.0
  %2602 = vmatpush1.msra.mxu0 0.0
  %2603 = vmatprep.subr.mxu0 0.0
  %2604 = vmatpush1.msra.mxu0 0.0
  %2605 = vmatprep.subr.mxu0 0.0
  %2606 = vmatpush1.msra.mxu0 0.0
  %2607 = vmatprep.subr.mxu0 0.0
  %2608 = vmatpush1.msra.mxu0 0.0
  %2609 = vmatprep.subr.mxu0 0.0
  %2610 = vmatpush1.msra.mxu0 0.0
  %2611 = vmatprep.subr.mxu0 0.0
  %2612 = vmatpush1.msra.mxu0 0.0
  %2613 = vmatprep.subr.mxu0 0.0
  %2614 = vmatpush1.msra.mxu0 0.0
  %2615 = vmatprep.subr.mxu0 0.0
  %2616 = vmatpush1.msra.mxu0 0.0
  %2617 = vmatprep.subr.mxu0 0.0
  %2618 = vmatpush1.msra.mxu0 0.0
  %2619 = vmatprep.subr.mxu0 0.0
  %2620 = vmatpush1.msra.mxu0 %v1450
  %2621 = vmatprep.subr.mxu0 0.0
  %2622 = vmatpush1.msra.mxu0 %v1449
  %2623 = vmatprep.subr.mxu0 0.0
  %2624 = vmatpush1.msra.mxu0 %v1448
  %2625 = vmatprep.subr.mxu0 0.0
  %2626 = vmatpush1.msra.mxu0 %v1447
  %2627 = vmatprep.subr.mxu0 0.0
  %2628 = vmatpush2.msra.mxu0 0.0
  %2629 = vmatprep.subr.mxu0 0.0
  %2630 = vmatpush2.msra.mxu0 0.0
  %2631 = vmatprep.subr.mxu0 0.0
  %2632 = vmatpush2.msra.mxu0 0.0
  %2633 = vmatprep.subr.mxu0 0.0
  %2634 = vmatpush2.msra.mxu0 0.0
  %2635 = vmatprep.subr.mxu0 0.0
  %2636 = vmatpush2.msra.mxu0 0.0
  %2637 = vmatprep.subr.mxu0 0.0
  %2638 = vmatpush2.msra.mxu0 0.0
  %2639 = vmatprep.subr.mxu0 0.0
  %2640 = vmatpush2.msra.mxu0 0.0
  %2641 = vmatprep.subr.mxu0 0.0
  %2642 = vmatpush2.msra.mxu0 0.0
  %2643 = vmatprep.subr.mxu0 0.0
  %2644 = vmatpush2.msra.mxu0 0.0
  %2645 = vmatprep.subr.mxu0 0.0
  %2646 = vmatpush2.msra.mxu0 0.0
  %2647 = vmatprep.subr.mxu0 0.0
  %2648 = vmatpush2.msra.mxu0 0.0
  %2649 = vmatprep.subr.mxu0 0.0
  %2650 = vmatpush2.msra.mxu0 0.0
  %2651 = vmatprep.subr.mxu0 0.0
  %2652 = vmatpush2.msra.mxu0 0.0
  %2653 = vmatprep.subr.mxu0 0.0
  %2654 = vmatpush2.msra.mxu0 0.0
  %2655 = vmatprep.subr.mxu0 0.0
  %2656 = vmatpush2.msra.mxu0 0.0
  %2657 = vmatprep.subr.mxu0 0.0
  %2658 = vmatpush2.msra.mxu0 0.0
  %2659 = vmatprep.mubr.f32.mxu0 0.0
  %2660 = vmatmul.mubr.f32.gmra.mxu0 %v2587
  %v2661 = vpop.f32.mrf.mxu0
  %v2662 = vadd.f32 %v2569, %v2661
  %v2663 = vpop.f32.mrf.mxu0
  %2664 = vmatprep.mubr.f32.mxu0 0.0
  %2665 = vmatmul.mubr.f32.gmra.mxu0 %v2589
  %v2666 = vpop.f32.mrf.mxu0
  %v2667 = vadd.f32 %v2574, %v2666
  %v2668 = vpop.f32.mrf.mxu0
  %2669 = vmatprep.mubr.f32.mxu0 0.0
  %2670 = vmatmul.mubr.f32.gmra.mxu0 %v2591
  %v2671 = vpop.f32.mrf.mxu0
  %v2672 = vadd.f32 %v2579, %v2671
  %v2673 = vpop.f32.mrf.mxu0
  %2674 = vmatprep.mubr.f32.mxu0 0.0
  %2675 = vmatmul.mubr.f32.gmra.mxu0 %v2593
  %v2676 = vpop.f32.mrf.mxu0
  %v2677 = vadd.f32 %v2584, %v2676
  %v2678 = vpop.f32.mrf.mxu0
  %2679 = vdwg.mxu0
  %v2680 = vld [vmem:[%s10] sm:$0xff]
  %v2681 = vld [vmem:[%s10 + $0x8] sm:$0xff]
  %v2682 = vld [vmem:[%s10 + $0x10] sm:$0xff]
  %v2683 = vld [vmem:[%s10 + $0x18] sm:$0xff]
  %2685 = vset.pattern.permute.xlu0 0
  %2686 = vperm.xlu0 %2685, %v2680
  %v2687 = vpop.permute.xlu0 %2686
  %2690 = vset.pattern.permute.xlu0 0
  %2691 = vperm.xlu0 %2690, %v2681
  %v2692 = vpop.permute.xlu0 %2691
  %2695 = vset.pattern.permute.xlu0 0
  %2696 = vperm.xlu0 %2695, %v2682
  %v2697 = vpop.permute.xlu0 %2696
  %2700 = vset.pattern.permute.xlu0 0
  %2701 = vperm.xlu0 %2700, %v2683
  %v2702 = vpop.permute.xlu0 %2701
  %v2704 = vadd.f32 %v2662, %v2687
  %v2705 = vadd.f32 %v2667, %v2692
  %v2706 = vadd.f32 %v2672, %v2697
  %v2707 = vadd.f32 %v2677, %v2702
  %2708 = vst.msk [vmem:[%s11] sm:$0xff] %vm428, %v2704
  %2709 = vst.msk [vmem:[%s11 + $0x8] sm:$0xff] %vm428, %v2705
  %2710 = vst.msk [vmem:[%s11 + $0x10] sm:$0xff] %vm428, %v2706
  %2711 = vst.msk [vmem:[%s11 + $0x18] sm:$0xff] %vm428, %v2707
  // Predicated region
  $region46: #{multi_head_att_layer_forward.1} parent=0 // pred_check
    _
  $region47: #{multi_head_att_layer_forward.1} parent=0 // pred_check_branch
    %2713 = sbr.rel (0) target = $region49
  $region48: #{multi_head_att_layer_forward.1} parent=0 // pred_region
    _
  $region49: #{multi_head_att_layer_forward.1} parent=0 // pred_fallthru
    _
  // Predicated region
  $region50: #{multi_head_att_layer_forward.1} parent=0 // pred_check
    _
  $region51: #{multi_head_att_layer_forward.1} parent=0 // pred_check_branch
    %2715 = sbr.rel (0) target = $region53
  $region52: #{multi_head_att_layer_forward.1} parent=0 // pred_region
    _
  $region53: #{multi_head_att_layer_forward.1} parent=0 // pred_fallthru
    _

</llo_original>
